<compile_context>
chip_gen: v5e
topology: v5e:2x2
jax: 0.10.0
libtpu: 0.0.40
codegen_flags: <defaults>
</compile_context>

<pallas_src>
import functools

import jax
import jax.numpy as jnp
from jax.experimental import pallas as pl
from jax.experimental.pallas import tpu as pltpu

BN_EPS = 1e-5
LEAKY_SLOPE = 0.01  # PyTorch nn.LeakyReLU default negative_slope


def _conv_out(d, k, s):
    return (d - (k - 1) - 1) // s + 1


def _stack_dims(h, w):
    h1, w1 = _conv_out(h, 8, 4), _conv_out(w, 8, 4)
    h2, w2 = _conv_out(h1, 4, 2), _conv_out(w1, 4, 2)
    h3, w3 = _conv_out(h2, 3, 1), _conv_out(w2, 3, 1)
    return h1, w1, h2, w2, h3, w3


def _vmem_spec():
    # Whole (small) array resident in VMEM as a single block.
    return pl.BlockSpec(memory_space=pltpu.MemorySpace.VMEM)


# ----------------------------- Fused Pallas kernel ----------------------------- #

def make_fused_kernel(n, h, w, out_size):
    """Builds the fused DuelCNN forward kernel with all loop bounds static."""
    assert h % 4 == 0 and w % 4 == 0, "input spatial dims must be multiples of 4"
    hb, wb = h // 4, w // 4                                 # space-to-depth(4) grid
    oh1, ow1, oh2, ow2, oh3, ow3 = _stack_dims(h, w)
    assert oh1 == hb - 1 and ow1 == wb - 1                  # 2x2 stride-1 on s2d grid
    c1, c2, c3 = 32, 64, 64
    cs2d = 16 * 4                                           # s2d channels = 4*4*ci(=4)
    hw3 = oh3 * ow3

    def kernel(x4_ref, w1_ref, t1_ref, w2_ref, t2_ref, w3_ref, t3_ref,
               wh1_ref, bh1_ref, wh2_ref, bh2_ref, perm_ref,
               q_ref, feats_ref):
        dot = functools.partial(jnp.dot, preferred_element_type=jnp.float32)

        # ---- conv1: 8x8 stride-4 == 2x2 stride-1 over the space-to-depth(4) input --
        # x4 rows ordered (h_blk, w_blk, n); cols (dh, dw, ci).  BN scale pre-folded.
        x4 = x4_ref[...]                                    # (hb*wb*n, 64)
        w1 = w1_ref[...]                                    # (2*2*64, c1)
        acc = None
        for kh in range(2):
            for kw in range(2):
                rows = [x4[((r + kh) * wb + kw) * n:
                           ((r + kh) * wb + kw) * n + ow1 * n, :]
                        for r in range(oh1)]
                shifted = jnp.concatenate(rows, axis=0)     # (oh1*ow1*n, 64)
                blk = w1[(kh * 2 + kw) * cs2d:(kh * 2 + kw + 1) * cs2d, :]
                term = dot(shifted, blk)
                acc = term if acc is None else acc + term
        y1 = jnp.maximum(acc + t1_ref[...], 0.0)            # (oh1*ow1*n, c1), rows (h,w,n)

        # ---- conv2: 4x4 stride-2, in-kernel im2col via per-offset row gathers ------
        w2 = w2_ref[...]                                    # (4*4*c1, c2)
        acc = None
        for kh in range(4):
            for kw in range(4):
                rows = [y1[((2 * rr + kh) * ow1 + (2 * cc + kw)) * n:
                           ((2 * rr + kh) * ow1 + (2 * cc + kw)) * n + n, :]
                        for rr in range(oh2) for cc in range(ow2)]
                gathered = jnp.concatenate(rows, axis=0)    # (oh2*ow2*n, c1)
                blk = w2[(kh * 4 + kw) * c1:(kh * 4 + kw + 1) * c1, :]
                term = dot(gathered, blk)
                acc = term if acc is None else acc + term
        y2 = jnp.maximum(acc + t2_ref[...], 0.0)            # (oh2*ow2*n, c2), rows (h,w,n)

        # ---- conv3: 3x3 stride-1 --------------------------------------------------
        w3 = w3_ref[...]                                    # (3*3*c2, c3)
        acc = None
        for kh in range(3):
            for kw in range(3):
                rows = [y2[((r + kh) * ow2 + kw) * n:
                           ((r + kh) * ow2 + kw) * n + ow3 * n, :]
                        for r in range(oh3)]
                gathered = jnp.concatenate(rows, axis=0)    # (oh3*ow3*n, c2)
                blk = w3[(kh * 3 + kw) * c2:(kh * 3 + kw + 1) * c2, :]
                term = dot(gathered, blk)
                acc = term if acc is None else acc + term
        y3 = jnp.maximum(acc + t3_ref[...], 0.0)            # (hw3*n, c3), rows (h,w,n)

        # ---- flatten + dueling head ------------------------------------------------
        # y3 rows are (h, w, n).  Both the head weights and the feature-permutation
        # matrix were row-blocked at init, so the flatten is just a sum of
        # per-spatial-position block matmuls (no transpose / lane concat at runtime).
        blocks = [y3[p * n:(p + 1) * n, :] for p in range(hw3)]      # each (n, c3)
        perm = perm_ref[...]
        wh1 = wh1_ref[...]
        feats = sum(dot(blocks[p], perm[p * c3:(p + 1) * c3, :]) for p in range(hw3))
        feats_ref[...] = feats.astype(feats_ref.dtype)       # PyTorch (c,h,w) flatten order

        hid = sum(dot(blocks[p], wh1[p * c3:(p + 1) * c3, :]) for p in range(hw3))
        hid = hid + bh1_ref[...]
        hid = jnp.where(hid > 0, hid, LEAKY_SLOPE * hid)     # LeakyReLU, (n, 256)
        av = dot(hid, wh2_ref[...]) + bh2_ref[...]           # (n, out_size + 1)
        a = av[:, :out_size]
        v = av[:, out_size:out_size + 1]
        # Global mean over batch AND actions == torch `Ax.mean()`.
        q_ref[...] = (v + (a - jnp.mean(a))).astype(q_ref.dtype)

    return kernel


# ----------------------------------- Wrapper ----------------------------------- #

def duel_cnn_forward(x_nchw, K):
    """Fused Pallas forward.  Returns (q, feats) with feats in PyTorch NCHW-flatten order."""
    n, c, h, w = x_nchw.shape
    assert c == 4, "DuelCNN expects 4 input channels"
    out_size = K["wh2"].shape[1] - 1
    _, _, _, _, oh3, ow3 = _stack_dims(h, w)
    lin_in = oh3 * ow3 * 64
    kernel = make_fused_kernel(n, h, w, out_size)

    # One-time pure-layout transform of the input: NCHW -> space-to-depth(4) 2D matrix
    # with rows (h_blk, w_blk, n) and columns (dh, dw, ci).  Same byte count as input.
    hb, wb = h // 4, w // 4
    x4 = (jnp.transpose(x_nchw, (2, 3, 0, 1))               # (h, w, n, c)
          .reshape(hb, 4, wb, 4, n, c)
          .transpose(0, 2, 4, 1, 3, 5)                      # (hb, wb, n, dh, dw, c)
          .reshape(hb * wb * n, 16 * c))

    q, feats = pl.pallas_call(
        kernel,
        out_shape=(jax.ShapeDtypeStruct((n, out_size), jnp.float32),
                   jax.ShapeDtypeStruct((n, lin_in), jnp.float32)),
        in_specs=[_vmem_spec()] * 12,
        out_specs=(_vmem_spec(), _vmem_spec()),
    )(x4, K["w1"], K["t1"], K["w2"], K["t2"], K["w3"], K["t3"],
      K["wh1"], K["bh1"], K["wh2"], K["bh2"], K["perm"])
    return q, feats


# ----------------------- Deterministic parameter initialization ----------------- #

def init_params(key, h, w, output_size):
    """Reference (PyTorch-layout) parameters."""
    _, _, _, _, h3, w3 = _stack_dims(h, w)
    lin_in = h3 * w3 * 64

    keys = iter(jax.random.split(key, 26))
    P = {}

    def conv_block(name, k, ci, co):
        w4 = 0.05 * jax.random.normal(next(keys), (k, k, ci, co), jnp.float32)
        b = 0.05 * jax.random.normal(next(keys), (co,), jnp.float32)
        gamma = 1.0 + 0.1 * jax.random.normal(next(keys), (co,), jnp.float32)
        beta = 0.1 * jax.random.normal(next(keys), (co,), jnp.float32)
        rmean = 0.1 * jax.random.normal(next(keys), (co,), jnp.float32)
        rvar = jax.random.uniform(next(keys), (co,), jnp.float32, 0.5, 1.5)
        scale = gamma / jnp.sqrt(rvar + BN_EPS)              # BN eval-mode fold
        shift = (b - rmean) * scale + beta
        P[f"w{name}_4d"] = w4                                # (KH, KW, CI, CO) HWIO
        P[f"s{name}"] = scale
        P[f"t{name}"] = shift

    conv_block("1", 8, 4, 32)
    conv_block("2", 4, 32, 64)
    conv_block("3", 3, 64, 64)

    def lin(fi, fo):
        wk, bk = next(keys), next(keys)
        return (0.05 * jax.random.normal(wk, (fi, fo), jnp.float32),
                0.05 * jax.random.normal(bk, (1, fo), jnp.float32))

    P["wa1"], P["ba1"] = lin(lin_in, 128)
    P["wa2"], P["ba2"] = lin(128, output_size)
    P["wv1"], P["bv1"] = lin(lin_in, 128)
    P["wv2"], P["bv2"] = lin(128, 1)
    return P


def pack_kernel_params(P, h, w, output_size):
    """One-time repack into the fused-kernel layout:
       - BN scale folded into conv weights; conv bias folded into the shift;
       - conv1 rearranged for the space-to-depth(4) input layout;
       - head weights fused (A|V concatenated / block-diagonal) and the PyTorch
         NCHW-flatten permutation folded into them (and into a perm matrix for feats).
    """
    _, _, _, _, h3, w3 = _stack_dims(h, w)
    hw3 = h3 * w3
    c3 = 64
    lin_in = hw3 * c3

    w1_4d = P["w1_4d"]                                       # (8, 8, 4, 32)
    ci, co = w1_4d.shape[2], w1_4d.shape[3]
    w1k = (w1_4d.reshape(2, 4, 2, 4, ci, co)                 # (kh2, dh, kw2, dw, ci, co)
           .transpose(0, 2, 1, 3, 4, 5)                      # (kh2, kw2, dh, dw, ci, co)
           .reshape(2 * 2 * 16 * ci, co))

    K = {
        "w1": w1k * P["s1"][None, :],
        "t1": P["t1"].reshape(1, -1),
        "w2": P["w2_4d"].reshape(-1, P["w2_4d"].shape[3]) * P["s2"][None, :],
        "t2": P["t2"].reshape(1, -1),
        "w3": P["w3_4d"].reshape(-1, P["w3_4d"].shape[3]) * P["s3"][None, :],
        "t3": P["t3"].reshape(1, -1),
    }

    # Permutation taking kernel flatten order (h, w, c) -> PyTorch order (c, h, w):
    # feats_pytorch = feats_hwc @ perm
    i = jnp.arange(lin_in)
    cols = (i % c3) * hw3 + i // c3
    K["perm"] = jnp.zeros((lin_in, lin_in), jnp.float32).at[i, cols].set(1.0)

    # Fused head, layer 1: [wa1 | wv1] with rows re-ordered to (h, w, c).
    K["wh1"] = K["perm"] @ jnp.concatenate([P["wa1"], P["wv1"]], axis=1)   # (lin_in, 256)
    K["bh1"] = jnp.concatenate([P["ba1"], P["bv1"]], axis=1)               # (1, 256)
    # Layer 2: block-diagonal [wa2 0; 0 wv2], bias [ba2 | bv2].
    wh2 = jnp.zeros((256, output_size + 1), jnp.float32)
    wh2 = wh2.at[:128, :output_size].set(P["wa2"])
    wh2 = wh2.at[128:, output_size:].set(P["wv2"])
    K["wh2"] = wh2
    K["bh2"] = jnp.concatenate([P["ba2"], P["bv2"]], axis=1)               # (1, out+1)
    return K


# ------------------------------- Pure-JAX reference ------------------------------ #

def ref_forward(x_nchw, P):
    x = jnp.transpose(x_nchw, (0, 2, 3, 1))

    def block(x, w4, scale, shift, s):
        y = jax.lax.conv_general_dilated(
            x, w4, (s, s), "VALID",
            dimension_numbers=("NHWC", "HWIO", "NHWC"))
        return jnp.maximum(y * scale + shift, 0.0)

    x = block(x, P["w1_4d"], P["s1"], P["t1"], 4)
    x = block(x, P["w2_4d"], P["s2"], P["t2"], 2)
    x = block(x, P["w3_4d"], P["s3"], P["t3"], 1)
    feats = jnp.transpose(x, (0, 3, 1, 2)).reshape(x.shape[0], -1)   # PyTorch flatten

    def leaky(z):
        return jnp.where(z > 0, z, LEAKY_SLOPE * z)

    a = leaky(feats @ P["wa1"] + P["ba1"]) @ P["wa2"] + P["ba2"]
    v = leaky(feats @ P["wv1"] + P["bv1"]) @ P["wv2"] + P["bv2"]
    q = v + (a - jnp.mean(a))
    return q, feats


# ------------------------------------- Main -------------------------------------- #

if __name__ == "__main__":
    N, C, H, W = 2, 4, 44, 44          # smallest-ish spatial size that survives 3 convs
    OUTPUT_SIZE = 6

    key = jax.random.PRNGKey(0)
    kparam, kx = jax.random.split(key)
    P = init_params(kparam, H, W, OUTPUT_SIZE)
    K = pack_kernel_params(P, H, W, OUTPUT_SIZE)
    x = jax.random.normal(kx, (N, C, H, W), dtype=jnp.float32)

    fwd = jax.jit(duel_cnn_forward)
    q, feats = fwd(x, K)
    jax.block_until_ready(q)
    jax.block_until_ready(feats)

    q_ref, f_ref = ref_forward(x, P)
    assert q.shape == (N, OUTPUT_SIZE) and feats.shape == f_ref.shape
    assert jnp.allclose(q, q_ref, atol=1e-4, rtol=1e-4), "q mismatch vs reference"
    assert jnp.allclose(feats, f_ref, atol=1e-4, rtol=1e-4), "features mismatch vs reference"

    print("KERNEL_OK")
</pallas_src>

<mosaic_0001>
module attributes {stable_mosaic.version = 11 : i64} {
  func.func @kernel(%arg0: memref<242x64xf32, #tpu.memory_space<vmem>>, %arg1: memref<256x32xf32, #tpu.memory_space<vmem>>, %arg2: memref<1x32xf32, #tpu.memory_space<vmem>>, %arg3: memref<512x64xf32, #tpu.memory_space<vmem>>, %arg4: memref<1x64xf32, #tpu.memory_space<vmem>>, %arg5: memref<576x64xf32, #tpu.memory_space<vmem>>, %arg6: memref<1x64xf32, #tpu.memory_space<vmem>>, %arg7: memref<256x256xf32, #tpu.memory_space<vmem>>, %arg8: memref<1x256xf32, #tpu.memory_space<vmem>>, %arg9: memref<256x7xf32, #tpu.memory_space<vmem>>, %arg10: memref<1x7xf32, #tpu.memory_space<vmem>>, %arg11: memref<256x256xf32, #tpu.memory_space<vmem>>, %arg12: memref<2x6xf32, #tpu.memory_space<vmem>>, %arg13: memref<2x256xf32, #tpu.memory_space<vmem>>) attributes {dimension_semantics = [], scalar_prefetch = 0 : i64, scratch_operands = 0 : i64, tpu.core_type = #tpu.core_type<tc>} {
    %c0 = arith.constant 0 : index
    %c0_0 = arith.constant 0 : index
    %0 = vector.load %arg0[%c0, %c0_0] : memref<242x64xf32, #tpu.memory_space<vmem>>, vector<242x64xf32>
    %c0_1 = arith.constant 0 : index
    %c0_2 = arith.constant 0 : index
    %1 = vector.load %arg1[%c0_1, %c0_2] : memref<256x32xf32, #tpu.memory_space<vmem>>, vector<256x32xf32>
    %2 = vector.extract_strided_slice %0 {offsets = [0, 0], sizes = [20, 64], strides = [1, 1]} : vector<242x64xf32> to vector<20x64xf32>
    %3 = vector.extract_strided_slice %0 {offsets = [22, 0], sizes = [20, 64], strides = [1, 1]} : vector<242x64xf32> to vector<20x64xf32>
    %4 = vector.extract_strided_slice %0 {offsets = [44, 0], sizes = [20, 64], strides = [1, 1]} : vector<242x64xf32> to vector<20x64xf32>
    %5 = vector.extract_strided_slice %0 {offsets = [66, 0], sizes = [20, 64], strides = [1, 1]} : vector<242x64xf32> to vector<20x64xf32>
    %6 = vector.extract_strided_slice %0 {offsets = [88, 0], sizes = [20, 64], strides = [1, 1]} : vector<242x64xf32> to vector<20x64xf32>
    %7 = vector.extract_strided_slice %0 {offsets = [110, 0], sizes = [20, 64], strides = [1, 1]} : vector<242x64xf32> to vector<20x64xf32>
    %8 = vector.extract_strided_slice %0 {offsets = [132, 0], sizes = [20, 64], strides = [1, 1]} : vector<242x64xf32> to vector<20x64xf32>
    %9 = vector.extract_strided_slice %0 {offsets = [154, 0], sizes = [20, 64], strides = [1, 1]} : vector<242x64xf32> to vector<20x64xf32>
    %10 = vector.extract_strided_slice %0 {offsets = [176, 0], sizes = [20, 64], strides = [1, 1]} : vector<242x64xf32> to vector<20x64xf32>
    %11 = vector.extract_strided_slice %0 {offsets = [198, 0], sizes = [20, 64], strides = [1, 1]} : vector<242x64xf32> to vector<20x64xf32>
    %12 = tpu.concatenate %2, %3, %4, %5, %6, %7, %8, %9, %10, %11 in 0 : vector<20x64xf32>, vector<20x64xf32>, vector<20x64xf32>, vector<20x64xf32>, vector<20x64xf32>, vector<20x64xf32>, vector<20x64xf32>, vector<20x64xf32>, vector<20x64xf32>, vector<20x64xf32> -> vector<200x64xf32>
    %13 = vector.extract_strided_slice %1 {offsets = [0, 0], sizes = [64, 32], strides = [1, 1]} : vector<256x32xf32> to vector<64x32xf32>
    %cst = arith.constant dense<0.000000e+00> : vector<200x32xf32>
    %14 = tpu.matmul %12, %13, %cst {dimension_numbers = #tpu.dot_dimension_numbers<[1], [0], [0], [1], [0, 0, 1, 1], [], []>} : vector<200x64xf32>, vector<64x32xf32>, vector<200x32xf32> -> vector<200x32xf32>
    %15 = vector.extract_strided_slice %0 {offsets = [2, 0], sizes = [20, 64], strides = [1, 1]} : vector<242x64xf32> to vector<20x64xf32>
    %16 = vector.extract_strided_slice %0 {offsets = [24, 0], sizes = [20, 64], strides = [1, 1]} : vector<242x64xf32> to vector<20x64xf32>
    %17 = vector.extract_strided_slice %0 {offsets = [46, 0], sizes = [20, 64], strides = [1, 1]} : vector<242x64xf32> to vector<20x64xf32>
    %18 = vector.extract_strided_slice %0 {offsets = [68, 0], sizes = [20, 64], strides = [1, 1]} : vector<242x64xf32> to vector<20x64xf32>
    %19 = vector.extract_strided_slice %0 {offsets = [90, 0], sizes = [20, 64], strides = [1, 1]} : vector<242x64xf32> to vector<20x64xf32>
    %20 = vector.extract_strided_slice %0 {offsets = [112, 0], sizes = [20, 64], strides = [1, 1]} : vector<242x64xf32> to vector<20x64xf32>
    %21 = vector.extract_strided_slice %0 {offsets = [134, 0], sizes = [20, 64], strides = [1, 1]} : vector<242x64xf32> to vector<20x64xf32>
    %22 = vector.extract_strided_slice %0 {offsets = [156, 0], sizes = [20, 64], strides = [1, 1]} : vector<242x64xf32> to vector<20x64xf32>
    %23 = vector.extract_strided_slice %0 {offsets = [178, 0], sizes = [20, 64], strides = [1, 1]} : vector<242x64xf32> to vector<20x64xf32>
    %24 = vector.extract_strided_slice %0 {offsets = [200, 0], sizes = [20, 64], strides = [1, 1]} : vector<242x64xf32> to vector<20x64xf32>
    %25 = tpu.concatenate %15, %16, %17, %18, %19, %20, %21, %22, %23, %24 in 0 : vector<20x64xf32>, vector<20x64xf32>, vector<20x64xf32>, vector<20x64xf32>, vector<20x64xf32>, vector<20x64xf32>, vector<20x64xf32>, vector<20x64xf32>, vector<20x64xf32>, vector<20x64xf32> -> vector<200x64xf32>
    %26 = vector.extract_strided_slice %1 {offsets = [64, 0], sizes = [64, 32], strides = [1, 1]} : vector<256x32xf32> to vector<64x32xf32>
    %cst_3 = arith.constant dense<0.000000e+00> : vector<200x32xf32>
    %27 = tpu.matmul %25, %26, %cst_3 {dimension_numbers = #tpu.dot_dimension_numbers<[1], [0], [0], [1], [0, 0, 1, 1], [], []>} : vector<200x64xf32>, vector<64x32xf32>, vector<200x32xf32> -> vector<200x32xf32>
    %28 = arith.addf %14, %27 : vector<200x32xf32>
    %29 = vector.extract_strided_slice %0 {offsets = [22, 0], sizes = [20, 64], strides = [1, 1]} : vector<242x64xf32> to vector<20x64xf32>
    %30 = vector.extract_strided_slice %0 {offsets = [44, 0], sizes = [20, 64], strides = [1, 1]} : vector<242x64xf32> to vector<20x64xf32>
    %31 = vector.extract_strided_slice %0 {offsets = [66, 0], sizes = [20, 64], strides = [1, 1]} : vector<242x64xf32> to vector<20x64xf32>
    %32 = vector.extract_strided_slice %0 {offsets = [88, 0], sizes = [20, 64], strides = [1, 1]} : vector<242x64xf32> to vector<20x64xf32>
    %33 = vector.extract_strided_slice %0 {offsets = [110, 0], sizes = [20, 64], strides = [1, 1]} : vector<242x64xf32> to vector<20x64xf32>
    %34 = vector.extract_strided_slice %0 {offsets = [132, 0], sizes = [20, 64], strides = [1, 1]} : vector<242x64xf32> to vector<20x64xf32>
    %35 = vector.extract_strided_slice %0 {offsets = [154, 0], sizes = [20, 64], strides = [1, 1]} : vector<242x64xf32> to vector<20x64xf32>
    %36 = vector.extract_strided_slice %0 {offsets = [176, 0], sizes = [20, 64], strides = [1, 1]} : vector<242x64xf32> to vector<20x64xf32>
    %37 = vector.extract_strided_slice %0 {offsets = [198, 0], sizes = [20, 64], strides = [1, 1]} : vector<242x64xf32> to vector<20x64xf32>
    %38 = vector.extract_strided_slice %0 {offsets = [220, 0], sizes = [20, 64], strides = [1, 1]} : vector<242x64xf32> to vector<20x64xf32>
    %39 = tpu.concatenate %29, %30, %31, %32, %33, %34, %35, %36, %37, %38 in 0 : vector<20x64xf32>, vector<20x64xf32>, vector<20x64xf32>, vector<20x64xf32>, vector<20x64xf32>, vector<20x64xf32>, vector<20x64xf32>, vector<20x64xf32>, vector<20x64xf32>, vector<20x64xf32> -> vector<200x64xf32>
    %40 = vector.extract_strided_slice %1 {offsets = [128, 0], sizes = [64, 32], strides = [1, 1]} : vector<256x32xf32> to vector<64x32xf32>
    %cst_4 = arith.constant dense<0.000000e+00> : vector<200x32xf32>
    %41 = tpu.matmul %39, %40, %cst_4 {dimension_numbers = #tpu.dot_dimension_numbers<[1], [0], [0], [1], [0, 0, 1, 1], [], []>} : vector<200x64xf32>, vector<64x32xf32>, vector<200x32xf32> -> vector<200x32xf32>
    %42 = arith.addf %28, %41 : vector<200x32xf32>
    %43 = vector.extract_strided_slice %0 {offsets = [24, 0], sizes = [20, 64], strides = [1, 1]} : vector<242x64xf32> to vector<20x64xf32>
    %44 = vector.extract_strided_slice %0 {offsets = [46, 0], sizes = [20, 64], strides = [1, 1]} : vector<242x64xf32> to vector<20x64xf32>
    %45 = vector.extract_strided_slice %0 {offsets = [68, 0], sizes = [20, 64], strides = [1, 1]} : vector<242x64xf32> to vector<20x64xf32>
    %46 = vector.extract_strided_slice %0 {offsets = [90, 0], sizes = [20, 64], strides = [1, 1]} : vector<242x64xf32> to vector<20x64xf32>
    %47 = vector.extract_strided_slice %0 {offsets = [112, 0], sizes = [20, 64], strides = [1, 1]} : vector<242x64xf32> to vector<20x64xf32>
    %48 = vector.extract_strided_slice %0 {offsets = [134, 0], sizes = [20, 64], strides = [1, 1]} : vector<242x64xf32> to vector<20x64xf32>
    %49 = vector.extract_strided_slice %0 {offsets = [156, 0], sizes = [20, 64], strides = [1, 1]} : vector<242x64xf32> to vector<20x64xf32>
    %50 = vector.extract_strided_slice %0 {offsets = [178, 0], sizes = [20, 64], strides = [1, 1]} : vector<242x64xf32> to vector<20x64xf32>
    %51 = vector.extract_strided_slice %0 {offsets = [200, 0], sizes = [20, 64], strides = [1, 1]} : vector<242x64xf32> to vector<20x64xf32>
    %52 = vector.extract_strided_slice %0 {offsets = [222, 0], sizes = [20, 64], strides = [1, 1]} : vector<242x64xf32> to vector<20x64xf32>
    %53 = tpu.concatenate %43, %44, %45, %46, %47, %48, %49, %50, %51, %52 in 0 : vector<20x64xf32>, vector<20x64xf32>, vector<20x64xf32>, vector<20x64xf32>, vector<20x64xf32>, vector<20x64xf32>, vector<20x64xf32>, vector<20x64xf32>, vector<20x64xf32>, vector<20x64xf32> -> vector<200x64xf32>
    %54 = vector.extract_strided_slice %1 {offsets = [192, 0], sizes = [64, 32], strides = [1, 1]} : vector<256x32xf32> to vector<64x32xf32>
    %cst_5 = arith.constant dense<0.000000e+00> : vector<200x32xf32>
    %55 = tpu.matmul %53, %54, %cst_5 {dimension_numbers = #tpu.dot_dimension_numbers<[1], [0], [0], [1], [0, 0, 1, 1], [], []>} : vector<200x64xf32>, vector<64x32xf32>, vector<200x32xf32> -> vector<200x32xf32>
    %56 = arith.addf %42, %55 : vector<200x32xf32>
    %c0_6 = arith.constant 0 : index
    %c0_7 = arith.constant 0 : index
    %57 = vector.load %arg2[%c0_6, %c0_7] : memref<1x32xf32, #tpu.memory_space<vmem>>, vector<1x32xf32>
    %58 = vector.broadcast %57 : vector<1x32xf32> to vector<200x32xf32>
    %59 = arith.addf %56, %58 : vector<200x32xf32>
    %cst_8 = arith.constant 0.000000e+00 : f32
    %60 = vector.broadcast %cst_8 : f32 to vector<200x32xf32>
    %61 = arith.maximumf %59, %60 : vector<200x32xf32>
    %c0_9 = arith.constant 0 : index
    %c0_10 = arith.constant 0 : index
    %62 = vector.load %arg3[%c0_9, %c0_10] : memref<512x64xf32, #tpu.memory_space<vmem>>, vector<512x64xf32>
    %63 = vector.extract_strided_slice %61 {offsets = [0, 0], sizes = [2, 32], strides = [1, 1]} : vector<200x32xf32> to vector<2x32xf32>
    %64 = vector.extract_strided_slice %61 {offsets = [4, 0], sizes = [2, 32], strides = [1, 1]} : vector<200x32xf32> to vector<2x32xf32>
    %65 = vector.extract_strided_slice %61 {offsets = [8, 0], sizes = [2, 32], strides = [1, 1]} : vector<200x32xf32> to vector<2x32xf32>
    %66 = vector.extract_strided_slice %61 {offsets = [12, 0], sizes = [2, 32], strides = [1, 1]} : vector<200x32xf32> to vector<2x32xf32>
    %67 = vector.extract_strided_slice %61 {offsets = [40, 0], sizes = [2, 32], strides = [1, 1]} : vector<200x32xf32> to vector<2x32xf32>
    %68 = vector.extract_strided_slice %61 {offsets = [44, 0], sizes = [2, 32], strides = [1, 1]} : vector<200x32xf32> to vector<2x32xf32>
    %69 = vector.extract_strided_slice %61 {offsets = [48, 0], sizes = [2, 32], strides = [1, 1]} : vector<200x32xf32> to vector<2x32xf32>
    %70 = vector.extract_strided_slice %61 {offsets = [52, 0], sizes = [2, 32], strides = [1, 1]} : vector<200x32xf32> to vector<2x32xf32>
    %71 = vector.extract_strided_slice %61 {offsets = [80, 0], sizes = [2, 32], strides = [1, 1]} : vector<200x32xf32> to vector<2x32xf32>
    %72 = vector.extract_strided_slice %61 {offsets = [84, 0], sizes = [2, 32], strides = [1, 1]} : vector<200x32xf32> to vector<2x32xf32>
    %73 = vector.extract_strided_slice %61 {offsets = [88, 0], sizes = [2, 32], strides = [1, 1]} : vector<200x32xf32> to vector<2x32xf32>
    %74 = vector.extract_strided_slice %61 {offsets = [92, 0], sizes = [2, 32], strides = [1, 1]} : vector<200x32xf32> to vector<2x32xf32>
    %75 = vector.extract_strided_slice %61 {offsets = [120, 0], sizes = [2, 32], strides = [1, 1]} : vector<200x32xf32> to vector<2x32xf32>
    %76 = vector.extract_strided_slice %61 {offsets = [124, 0], sizes = [2, 32], strides = [1, 1]} : vector<200x32xf32> to vector<2x32xf32>
    %77 = vector.extract_strided_slice %61 {offsets = [128, 0], sizes = [2, 32], strides = [1, 1]} : vector<200x32xf32> to vector<2x32xf32>
    %78 = vector.extract_strided_slice %61 {offsets = [132, 0], sizes = [2, 32], strides = [1, 1]} : vector<200x32xf32> to vector<2x32xf32>
    %79 = tpu.concatenate %63, %64, %65, %66, %67, %68, %69, %70, %71, %72, %73, %74, %75, %76, %77, %78 in 0 : vector<2x32xf32>, vector<2x32xf32>, vector<2x32xf32>, vector<2x32xf32>, vector<2x32xf32>, vector<2x32xf32>, vector<2x32xf32>, vector<2x32xf32>, vector<2x32xf32>, vector<2x32xf32>, vector<2x32xf32>, vector<2x32xf32>, vector<2x32xf32>, vector<2x32xf32>, vector<2x32xf32>, vector<2x32xf32> -> vector<32x32xf32>
    %80 = vector.extract_strided_slice %62 {offsets = [0, 0], sizes = [32, 64], strides = [1, 1]} : vector<512x64xf32> to vector<32x64xf32>
    %cst_11 = arith.constant dense<0.000000e+00> : vector<32x64xf32>
    %81 = tpu.matmul %79, %80, %cst_11 {dimension_numbers = #tpu.dot_dimension_numbers<[1], [0], [0], [1], [0, 0, 1, 1], [], []>} : vector<32x32xf32>, vector<32x64xf32>, vector<32x64xf32> -> vector<32x64xf32>
    %82 = vector.extract_strided_slice %61 {offsets = [2, 0], sizes = [2, 32], strides = [1, 1]} : vector<200x32xf32> to vector<2x32xf32>
    %83 = vector.extract_strided_slice %61 {offsets = [6, 0], sizes = [2, 32], strides = [1, 1]} : vector<200x32xf32> to vector<2x32xf32>
    %84 = vector.extract_strided_slice %61 {offsets = [10, 0], sizes = [2, 32], strides = [1, 1]} : vector<200x32xf32> to vector<2x32xf32>
    %85 = vector.extract_strided_slice %61 {offsets = [14, 0], sizes = [2, 32], strides = [1, 1]} : vector<200x32xf32> to vector<2x32xf32>
    %86 = vector.extract_strided_slice %61 {offsets = [42, 0], sizes = [2, 32], strides = [1, 1]} : vector<200x32xf32> to vector<2x32xf32>
    %87 = vector.extract_strided_slice %61 {offsets = [46, 0], sizes = [2, 32], strides = [1, 1]} : vector<200x32xf32> to vector<2x32xf32>
    %88 = vector.extract_strided_slice %61 {offsets = [50, 0], sizes = [2, 32], strides = [1, 1]} : vector<200x32xf32> to vector<2x32xf32>
    %89 = vector.extract_strided_slice %61 {offsets = [54, 0], sizes = [2, 32], strides = [1, 1]} : vector<200x32xf32> to vector<2x32xf32>
    %90 = vector.extract_strided_slice %61 {offsets = [82, 0], sizes = [2, 32], strides = [1, 1]} : vector<200x32xf32> to vector<2x32xf32>
    %91 = vector.extract_strided_slice %61 {offsets = [86, 0], sizes = [2, 32], strides = [1, 1]} : vector<200x32xf32> to vector<2x32xf32>
    %92 = vector.extract_strided_slice %61 {offsets = [90, 0], sizes = [2, 32], strides = [1, 1]} : vector<200x32xf32> to vector<2x32xf32>
    %93 = vector.extract_strided_slice %61 {offsets = [94, 0], sizes = [2, 32], strides = [1, 1]} : vector<200x32xf32> to vector<2x32xf32>
    %94 = vector.extract_strided_slice %61 {offsets = [122, 0], sizes = [2, 32], strides = [1, 1]} : vector<200x32xf32> to vector<2x32xf32>
    %95 = vector.extract_strided_slice %61 {offsets = [126, 0], sizes = [2, 32], strides = [1, 1]} : vector<200x32xf32> to vector<2x32xf32>
    %96 = vector.extract_strided_slice %61 {offsets = [130, 0], sizes = [2, 32], strides = [1, 1]} : vector<200x32xf32> to vector<2x32xf32>
    %97 = vector.extract_strided_slice %61 {offsets = [134, 0], sizes = [2, 32], strides = [1, 1]} : vector<200x32xf32> to vector<2x32xf32>
    %98 = tpu.concatenate %82, %83, %84, %85, %86, %87, %88, %89, %90, %91, %92, %93, %94, %95, %96, %97 in 0 : vector<2x32xf32>, vector<2x32xf32>, vector<2x32xf32>, vector<2x32xf32>, vector<2x32xf32>, vector<2x32xf32>, vector<2x32xf32>, vector<2x32xf32>, vector<2x32xf32>, vector<2x32xf32>, vector<2x32xf32>, vector<2x32xf32>, vector<2x32xf32>, vector<2x32xf32>, vector<2x32xf32>, vector<2x32xf32> -> vector<32x32xf32>
    %99 = vector.extract_strided_slice %62 {offsets = [32, 0], sizes = [32, 64], strides = [1, 1]} : vector<512x64xf32> to vector<32x64xf32>
    %cst_12 = arith.constant dense<0.000000e+00> : vector<32x64xf32>
    %100 = tpu.matmul %98, %99, %cst_12 {dimension_numbers = #tpu.dot_dimension_numbers<[1], [0], [0], [1], [0, 0, 1, 1], [], []>} : vector<32x32xf32>, vector<32x64xf32>, vector<32x64xf32> -> vector<32x64xf32>
    %101 = arith.addf %81, %100 : vector<32x64xf32>
    %102 = vector.extract_strided_slice %61 {offsets = [4, 0], sizes = [2, 32], strides = [1, 1]} : vector<200x32xf32> to vector<2x32xf32>
    %103 = vector.extract_strided_slice %61 {offsets = [8, 0], sizes = [2, 32], strides = [1, 1]} : vector<200x32xf32> to vector<2x32xf32>
    %104 = vector.extract_strided_slice %61 {offsets = [12, 0], sizes = [2, 32], strides = [1, 1]} : vector<200x32xf32> to vector<2x32xf32>
    %105 = vector.extract_strided_slice %61 {offsets = [16, 0], sizes = [2, 32], strides = [1, 1]} : vector<200x32xf32> to vector<2x32xf32>
    %106 = vector.extract_strided_slice %61 {offsets = [44, 0], sizes = [2, 32], strides = [1, 1]} : vector<200x32xf32> to vector<2x32xf32>
    %107 = vector.extract_strided_slice %61 {offsets = [48, 0], sizes = [2, 32], strides = [1, 1]} : vector<200x32xf32> to vector<2x32xf32>
    %108 = vector.extract_strided_slice %61 {offsets = [52, 0], sizes = [2, 32], strides = [1, 1]} : vector<200x32xf32> to vector<2x32xf32>
    %109 = vector.extract_strided_slice %61 {offsets = [56, 0], sizes = [2, 32], strides = [1, 1]} : vector<200x32xf32> to vector<2x32xf32>
    %110 = vector.extract_strided_slice %61 {offsets = [84, 0], sizes = [2, 32], strides = [1, 1]} : vector<200x32xf32> to vector<2x32xf32>
    %111 = vector.extract_strided_slice %61 {offsets = [88, 0], sizes = [2, 32], strides = [1, 1]} : vector<200x32xf32> to vector<2x32xf32>
    %112 = vector.extract_strided_slice %61 {offsets = [92, 0], sizes = [2, 32], strides = [1, 1]} : vector<200x32xf32> to vector<2x32xf32>
    %113 = vector.extract_strided_slice %61 {offsets = [96, 0], sizes = [2, 32], strides = [1, 1]} : vector<200x32xf32> to vector<2x32xf32>
    %114 = vector.extract_strided_slice %61 {offsets = [124, 0], sizes = [2, 32], strides = [1, 1]} : vector<200x32xf32> to vector<2x32xf32>
    %115 = vector.extract_strided_slice %61 {offsets = [128, 0], sizes = [2, 32], strides = [1, 1]} : vector<200x32xf32> to vector<2x32xf32>
    %116 = vector.extract_strided_slice %61 {offsets = [132, 0], sizes = [2, 32], strides = [1, 1]} : vector<200x32xf32> to vector<2x32xf32>
    %117 = vector.extract_strided_slice %61 {offsets = [136, 0], sizes = [2, 32], strides = [1, 1]} : vector<200x32xf32> to vector<2x32xf32>
    %118 = tpu.concatenate %102, %103, %104, %105, %106, %107, %108, %109, %110, %111, %112, %113, %114, %115, %116, %117 in 0 : vector<2x32xf32>, vector<2x32xf32>, vector<2x32xf32>, vector<2x32xf32>, vector<2x32xf32>, vector<2x32xf32>, vector<2x32xf32>, vector<2x32xf32>, vector<2x32xf32>, vector<2x32xf32>, vector<2x32xf32>, vector<2x32xf32>, vector<2x32xf32>, vector<2x32xf32>, vector<2x32xf32>, vector<2x32xf32> -> vector<32x32xf32>
    %119 = vector.extract_strided_slice %62 {offsets = [64, 0], sizes = [32, 64], strides = [1, 1]} : vector<512x64xf32> to vector<32x64xf32>
    %cst_13 = arith.constant dense<0.000000e+00> : vector<32x64xf32>
    %120 = tpu.matmul %118, %119, %cst_13 {dimension_numbers = #tpu.dot_dimension_numbers<[1], [0], [0], [1], [0, 0, 1, 1], [], []>} : vector<32x32xf32>, vector<32x64xf32>, vector<32x64xf32> -> vector<32x64xf32>
    %121 = arith.addf %101, %120 : vector<32x64xf32>
    %122 = vector.extract_strided_slice %61 {offsets = [6, 0], sizes = [2, 32], strides = [1, 1]} : vector<200x32xf32> to vector<2x32xf32>
    %123 = vector.extract_strided_slice %61 {offsets = [10, 0], sizes = [2, 32], strides = [1, 1]} : vector<200x32xf32> to vector<2x32xf32>
    %124 = vector.extract_strided_slice %61 {offsets = [14, 0], sizes = [2, 32], strides = [1, 1]} : vector<200x32xf32> to vector<2x32xf32>
    %125 = vector.extract_strided_slice %61 {offsets = [18, 0], sizes = [2, 32], strides = [1, 1]} : vector<200x32xf32> to vector<2x32xf32>
    %126 = vector.extract_strided_slice %61 {offsets = [46, 0], sizes = [2, 32], strides = [1, 1]} : vector<200x32xf32> to vector<2x32xf32>
    %127 = vector.extract_strided_slice %61 {offsets = [50, 0], sizes = [2, 32], strides = [1, 1]} : vector<200x32xf32> to vector<2x32xf32>
    %128 = vector.extract_strided_slice %61 {offsets = [54, 0], sizes = [2, 32], strides = [1, 1]} : vector<200x32xf32> to vector<2x32xf32>
    %129 = vector.extract_strided_slice %61 {offsets = [58, 0], sizes = [2, 32], strides = [1, 1]} : vector<200x32xf32> to vector<2x32xf32>
    %130 = vector.extract_strided_slice %61 {offsets = [86, 0], sizes = [2, 32], strides = [1, 1]} : vector<200x32xf32> to vector<2x32xf32>
    %131 = vector.extract_strided_slice %61 {offsets = [90, 0], sizes = [2, 32], strides = [1, 1]} : vector<200x32xf32> to vector<2x32xf32>
    %132 = vector.extract_strided_slice %61 {offsets = [94, 0], sizes = [2, 32], strides = [1, 1]} : vector<200x32xf32> to vector<2x32xf32>
    %133 = vector.extract_strided_slice %61 {offsets = [98, 0], sizes = [2, 32], strides = [1, 1]} : vector<200x32xf32> to vector<2x32xf32>
    %134 = vector.extract_strided_slice %61 {offsets = [126, 0], sizes = [2, 32], strides = [1, 1]} : vector<200x32xf32> to vector<2x32xf32>
    %135 = vector.extract_strided_slice %61 {offsets = [130, 0], sizes = [2, 32], strides = [1, 1]} : vector<200x32xf32> to vector<2x32xf32>
    %136 = vector.extract_strided_slice %61 {offsets = [134, 0], sizes = [2, 32], strides = [1, 1]} : vector<200x32xf32> to vector<2x32xf32>
    %137 = vector.extract_strided_slice %61 {offsets = [138, 0], sizes = [2, 32], strides = [1, 1]} : vector<200x32xf32> to vector<2x32xf32>
    %138 = tpu.concatenate %122, %123, %124, %125, %126, %127, %128, %129, %130, %131, %132, %133, %134, %135, %136, %137 in 0 : vector<2x32xf32>, vector<2x32xf32>, vector<2x32xf32>, vector<2x32xf32>, vector<2x32xf32>, vector<2x32xf32>, vector<2x32xf32>, vector<2x32xf32>, vector<2x32xf32>, vector<2x32xf32>, vector<2x32xf32>, vector<2x32xf32>, vector<2x32xf32>, vector<2x32xf32>, vector<2x32xf32>, vector<2x32xf32> -> vector<32x32xf32>
    %139 = vector.extract_strided_slice %62 {offsets = [96, 0], sizes = [32, 64], strides = [1, 1]} : vector<512x64xf32> to vector<32x64xf32>
    %cst_14 = arith.constant dense<0.000000e+00> : vector<32x64xf32>
    %140 = tpu.matmul %138, %139, %cst_14 {dimension_numbers = #tpu.dot_dimension_numbers<[1], [0], [0], [1], [0, 0, 1, 1], [], []>} : vector<32x32xf32>, vector<32x64xf32>, vector<32x64xf32> -> vector<32x64xf32>
    %141 = arith.addf %121, %140 : vector<32x64xf32>
    %142 = vector.extract_strided_slice %61 {offsets = [20, 0], sizes = [2, 32], strides = [1, 1]} : vector<200x32xf32> to vector<2x32xf32>
    %143 = vector.extract_strided_slice %61 {offsets = [24, 0], sizes = [2, 32], strides = [1, 1]} : vector<200x32xf32> to vector<2x32xf32>
    %144 = vector.extract_strided_slice %61 {offsets = [28, 0], sizes = [2, 32], strides = [1, 1]} : vector<200x32xf32> to vector<2x32xf32>
    %145 = vector.extract_strided_slice %61 {offsets = [32, 0], sizes = [2, 32], strides = [1, 1]} : vector<200x32xf32> to vector<2x32xf32>
    %146 = vector.extract_strided_slice %61 {offsets = [60, 0], sizes = [2, 32], strides = [1, 1]} : vector<200x32xf32> to vector<2x32xf32>
    %147 = vector.extract_strided_slice %61 {offsets = [64, 0], sizes = [2, 32], strides = [1, 1]} : vector<200x32xf32> to vector<2x32xf32>
    %148 = vector.extract_strided_slice %61 {offsets = [68, 0], sizes = [2, 32], strides = [1, 1]} : vector<200x32xf32> to vector<2x32xf32>
    %149 = vector.extract_strided_slice %61 {offsets = [72, 0], sizes = [2, 32], strides = [1, 1]} : vector<200x32xf32> to vector<2x32xf32>
    %150 = vector.extract_strided_slice %61 {offsets = [100, 0], sizes = [2, 32], strides = [1, 1]} : vector<200x32xf32> to vector<2x32xf32>
    %151 = vector.extract_strided_slice %61 {offsets = [104, 0], sizes = [2, 32], strides = [1, 1]} : vector<200x32xf32> to vector<2x32xf32>
    %152 = vector.extract_strided_slice %61 {offsets = [108, 0], sizes = [2, 32], strides = [1, 1]} : vector<200x32xf32> to vector<2x32xf32>
    %153 = vector.extract_strided_slice %61 {offsets = [112, 0], sizes = [2, 32], strides = [1, 1]} : vector<200x32xf32> to vector<2x32xf32>
    %154 = vector.extract_strided_slice %61 {offsets = [140, 0], sizes = [2, 32], strides = [1, 1]} : vector<200x32xf32> to vector<2x32xf32>
    %155 = vector.extract_strided_slice %61 {offsets = [144, 0], sizes = [2, 32], strides = [1, 1]} : vector<200x32xf32> to vector<2x32xf32>
    %156 = vector.extract_strided_slice %61 {offsets = [148, 0], sizes = [2, 32], strides = [1, 1]} : vector<200x32xf32> to vector<2x32xf32>
    %157 = vector.extract_strided_slice %61 {offsets = [152, 0], sizes = [2, 32], strides = [1, 1]} : vector<200x32xf32> to vector<2x32xf32>
    %158 = tpu.concatenate %142, %143, %144, %145, %146, %147, %148, %149, %150, %151, %152, %153, %154, %155, %156, %157 in 0 : vector<2x32xf32>, vector<2x32xf32>, vector<2x32xf32>, vector<2x32xf32>, vector<2x32xf32>, vector<2x32xf32>, vector<2x32xf32>, vector<2x32xf32>, vector<2x32xf32>, vector<2x32xf32>, vector<2x32xf32>, vector<2x32xf32>, vector<2x32xf32>, vector<2x32xf32>, vector<2x32xf32>, vector<2x32xf32> -> vector<32x32xf32>
    %159 = vector.extract_strided_slice %62 {offsets = [128, 0], sizes = [32, 64], strides = [1, 1]} : vector<512x64xf32> to vector<32x64xf32>
    %cst_15 = arith.constant dense<0.000000e+00> : vector<32x64xf32>
    %160 = tpu.matmul %158, %159, %cst_15 {dimension_numbers = #tpu.dot_dimension_numbers<[1], [0], [0], [1], [0, 0, 1, 1], [], []>} : vector<32x32xf32>, vector<32x64xf32>, vector<32x64xf32> -> vector<32x64xf32>
    %161 = arith.addf %141, %160 : vector<32x64xf32>
    %162 = vector.extract_strided_slice %61 {offsets = [22, 0], sizes = [2, 32], strides = [1, 1]} : vector<200x32xf32> to vector<2x32xf32>
    %163 = vector.extract_strided_slice %61 {offsets = [26, 0], sizes = [2, 32], strides = [1, 1]} : vector<200x32xf32> to vector<2x32xf32>
    %164 = vector.extract_strided_slice %61 {offsets = [30, 0], sizes = [2, 32], strides = [1, 1]} : vector<200x32xf32> to vector<2x32xf32>
    %165 = vector.extract_strided_slice %61 {offsets = [34, 0], sizes = [2, 32], strides = [1, 1]} : vector<200x32xf32> to vector<2x32xf32>
    %166 = vector.extract_strided_slice %61 {offsets = [62, 0], sizes = [2, 32], strides = [1, 1]} : vector<200x32xf32> to vector<2x32xf32>
    %167 = vector.extract_strided_slice %61 {offsets = [66, 0], sizes = [2, 32], strides = [1, 1]} : vector<200x32xf32> to vector<2x32xf32>
    %168 = vector.extract_strided_slice %61 {offsets = [70, 0], sizes = [2, 32], strides = [1, 1]} : vector<200x32xf32> to vector<2x32xf32>
    %169 = vector.extract_strided_slice %61 {offsets = [74, 0], sizes = [2, 32], strides = [1, 1]} : vector<200x32xf32> to vector<2x32xf32>
    %170 = vector.extract_strided_slice %61 {offsets = [102, 0], sizes = [2, 32], strides = [1, 1]} : vector<200x32xf32> to vector<2x32xf32>
    %171 = vector.extract_strided_slice %61 {offsets = [106, 0], sizes = [2, 32], strides = [1, 1]} : vector<200x32xf32> to vector<2x32xf32>
    %172 = vector.extract_strided_slice %61 {offsets = [110, 0], sizes = [2, 32], strides = [1, 1]} : vector<200x32xf32> to vector<2x32xf32>
    %173 = vector.extract_strided_slice %61 {offsets = [114, 0], sizes = [2, 32], strides = [1, 1]} : vector<200x32xf32> to vector<2x32xf32>
    %174 = vector.extract_strided_slice %61 {offsets = [142, 0], sizes = [2, 32], strides = [1, 1]} : vector<200x32xf32> to vector<2x32xf32>
    %175 = vector.extract_strided_slice %61 {offsets = [146, 0], sizes = [2, 32], strides = [1, 1]} : vector<200x32xf32> to vector<2x32xf32>
    %176 = vector.extract_strided_slice %61 {offsets = [150, 0], sizes = [2, 32], strides = [1, 1]} : vector<200x32xf32> to vector<2x32xf32>
    %177 = vector.extract_strided_slice %61 {offsets = [154, 0], sizes = [2, 32], strides = [1, 1]} : vector<200x32xf32> to vector<2x32xf32>
    %178 = tpu.concatenate %162, %163, %164, %165, %166, %167, %168, %169, %170, %171, %172, %173, %174, %175, %176, %177 in 0 : vector<2x32xf32>, vector<2x32xf32>, vector<2x32xf32>, vector<2x32xf32>, vector<2x32xf32>, vector<2x32xf32>, vector<2x32xf32>, vector<2x32xf32>, vector<2x32xf32>, vector<2x32xf32>, vector<2x32xf32>, vector<2x32xf32>, vector<2x32xf32>, vector<2x32xf32>, vector<2x32xf32>, vector<2x32xf32> -> vector<32x32xf32>
    %179 = vector.extract_strided_slice %62 {offsets = [160, 0], sizes = [32, 64], strides = [1, 1]} : vector<512x64xf32> to vector<32x64xf32>
    %cst_16 = arith.constant dense<0.000000e+00> : vector<32x64xf32>
    %180 = tpu.matmul %178, %179, %cst_16 {dimension_numbers = #tpu.dot_dimension_numbers<[1], [0], [0], [1], [0, 0, 1, 1], [], []>} : vector<32x32xf32>, vector<32x64xf32>, vector<32x64xf32> -> vector<32x64xf32>
    %181 = arith.addf %161, %180 : vector<32x64xf32>
    %182 = vector.extract_strided_slice %61 {offsets = [24, 0], sizes = [2, 32], strides = [1, 1]} : vector<200x32xf32> to vector<2x32xf32>
    %183 = vector.extract_strided_slice %61 {offsets = [28, 0], sizes = [2, 32], strides = [1, 1]} : vector<200x32xf32> to vector<2x32xf32>
    %184 = vector.extract_strided_slice %61 {offsets = [32, 0], sizes = [2, 32], strides = [1, 1]} : vector<200x32xf32> to vector<2x32xf32>
    %185 = vector.extract_strided_slice %61 {offsets = [36, 0], sizes = [2, 32], strides = [1, 1]} : vector<200x32xf32> to vector<2x32xf32>
    %186 = vector.extract_strided_slice %61 {offsets = [64, 0], sizes = [2, 32], strides = [1, 1]} : vector<200x32xf32> to vector<2x32xf32>
    %187 = vector.extract_strided_slice %61 {offsets = [68, 0], sizes = [2, 32], strides = [1, 1]} : vector<200x32xf32> to vector<2x32xf32>
    %188 = vector.extract_strided_slice %61 {offsets = [72, 0], sizes = [2, 32], strides = [1, 1]} : vector<200x32xf32> to vector<2x32xf32>
    %189 = vector.extract_strided_slice %61 {offsets = [76, 0], sizes = [2, 32], strides = [1, 1]} : vector<200x32xf32> to vector<2x32xf32>
    %190 = vector.extract_strided_slice %61 {offsets = [104, 0], sizes = [2, 32], strides = [1, 1]} : vector<200x32xf32> to vector<2x32xf32>
    %191 = vector.extract_strided_slice %61 {offsets = [108, 0], sizes = [2, 32], strides = [1, 1]} : vector<200x32xf32> to vector<2x32xf32>
    %192 = vector.extract_strided_slice %61 {offsets = [112, 0], sizes = [2, 32], strides = [1, 1]} : vector<200x32xf32> to vector<2x32xf32>
    %193 = vector.extract_strided_slice %61 {offsets = [116, 0], sizes = [2, 32], strides = [1, 1]} : vector<200x32xf32> to vector<2x32xf32>
    %194 = vector.extract_strided_slice %61 {offsets = [144, 0], sizes = [2, 32], strides = [1, 1]} : vector<200x32xf32> to vector<2x32xf32>
    %195 = vector.extract_strided_slice %61 {offsets = [148, 0], sizes = [2, 32], strides = [1, 1]} : vector<200x32xf32> to vector<2x32xf32>
    %196 = vector.extract_strided_slice %61 {offsets = [152, 0], sizes = [2, 32], strides = [1, 1]} : vector<200x32xf32> to vector<2x32xf32>
    %197 = vector.extract_strided_slice %61 {offsets = [156, 0], sizes = [2, 32], strides = [1, 1]} : vector<200x32xf32> to vector<2x32xf32>
    %198 = tpu.concatenate %182, %183, %184, %185, %186, %187, %188, %189, %190, %191, %192, %193, %194, %195, %196, %197 in 0 : vector<2x32xf32>, vector<2x32xf32>, vector<2x32xf32>, vector<2x32xf32>, vector<2x32xf32>, vector<2x32xf32>, vector<2x32xf32>, vector<2x32xf32>, vector<2x32xf32>, vector<2x32xf32>, vector<2x32xf32>, vector<2x32xf32>, vector<2x32xf32>, vector<2x32xf32>, vector<2x32xf32>, vector<2x32xf32> -> vector<32x32xf32>
    %199 = vector.extract_strided_slice %62 {offsets = [192, 0], sizes = [32, 64], strides = [1, 1]} : vector<512x64xf32> to vector<32x64xf32>
    %cst_17 = arith.constant dense<0.000000e+00> : vector<32x64xf32>
    %200 = tpu.matmul %198, %199, %cst_17 {dimension_numbers = #tpu.dot_dimension_numbers<[1], [0], [0], [1], [0, 0, 1, 1], [], []>} : vector<32x32xf32>, vector<32x64xf32>, vector<32x64xf32> -> vector<32x64xf32>
    %201 = arith.addf %181, %200 : vector<32x64xf32>
    %202 = vector.extract_strided_slice %61 {offsets = [26, 0], sizes = [2, 32], strides = [1, 1]} : vector<200x32xf32> to vector<2x32xf32>
    %203 = vector.extract_strided_slice %61 {offsets = [30, 0], sizes = [2, 32], strides = [1, 1]} : vector<200x32xf32> to vector<2x32xf32>
    %204 = vector.extract_strided_slice %61 {offsets = [34, 0], sizes = [2, 32], strides = [1, 1]} : vector<200x32xf32> to vector<2x32xf32>
    %205 = vector.extract_strided_slice %61 {offsets = [38, 0], sizes = [2, 32], strides = [1, 1]} : vector<200x32xf32> to vector<2x32xf32>
    %206 = vector.extract_strided_slice %61 {offsets = [66, 0], sizes = [2, 32], strides = [1, 1]} : vector<200x32xf32> to vector<2x32xf32>
    %207 = vector.extract_strided_slice %61 {offsets = [70, 0], sizes = [2, 32], strides = [1, 1]} : vector<200x32xf32> to vector<2x32xf32>
    %208 = vector.extract_strided_slice %61 {offsets = [74, 0], sizes = [2, 32], strides = [1, 1]} : vector<200x32xf32> to vector<2x32xf32>
    %209 = vector.extract_strided_slice %61 {offsets = [78, 0], sizes = [2, 32], strides = [1, 1]} : vector<200x32xf32> to vector<2x32xf32>
    %210 = vector.extract_strided_slice %61 {offsets = [106, 0], sizes = [2, 32], strides = [1, 1]} : vector<200x32xf32> to vector<2x32xf32>
    %211 = vector.extract_strided_slice %61 {offsets = [110, 0], sizes = [2, 32], strides = [1, 1]} : vector<200x32xf32> to vector<2x32xf32>
    %212 = vector.extract_strided_slice %61 {offsets = [114, 0], sizes = [2, 32], strides = [1, 1]} : vector<200x32xf32> to vector<2x32xf32>
    %213 = vector.extract_strided_slice %61 {offsets = [118, 0], sizes = [2, 32], strides = [1, 1]} : vector<200x32xf32> to vector<2x32xf32>
    %214 = vector.extract_strided_slice %61 {offsets = [146, 0], sizes = [2, 32], strides = [1, 1]} : vector<200x32xf32> to vector<2x32xf32>
    %215 = vector.extract_strided_slice %61 {offsets = [150, 0], sizes = [2, 32], strides = [1, 1]} : vector<200x32xf32> to vector<2x32xf32>
    %216 = vector.extract_strided_slice %61 {offsets = [154, 0], sizes = [2, 32], strides = [1, 1]} : vector<200x32xf32> to vector<2x32xf32>
    %217 = vector.extract_strided_slice %61 {offsets = [158, 0], sizes = [2, 32], strides = [1, 1]} : vector<200x32xf32> to vector<2x32xf32>
    %218 = tpu.concatenate %202, %203, %204, %205, %206, %207, %208, %209, %210, %211, %212, %213, %214, %215, %216, %217 in 0 : vector<2x32xf32>, vector<2x32xf32>, vector<2x32xf32>, vector<2x32xf32>, vector<2x32xf32>, vector<2x32xf32>, vector<2x32xf32>, vector<2x32xf32>, vector<2x32xf32>, vector<2x32xf32>, vector<2x32xf32>, vector<2x32xf32>, vector<2x32xf32>, vector<2x32xf32>, vector<2x32xf32>, vector<2x32xf32> -> vector<32x32xf32>
    %219 = vector.extract_strided_slice %62 {offsets = [224, 0], sizes = [32, 64], strides = [1, 1]} : vector<512x64xf32> to vector<32x64xf32>
    %cst_18 = arith.constant dense<0.000000e+00> : vector<32x64xf32>
    %220 = tpu.matmul %218, %219, %cst_18 {dimension_numbers = #tpu.dot_dimension_numbers<[1], [0], [0], [1], [0, 0, 1, 1], [], []>} : vector<32x32xf32>, vector<32x64xf32>, vector<32x64xf32> -> vector<32x64xf32>
    %221 = arith.addf %201, %220 : vector<32x64xf32>
    %222 = vector.extract_strided_slice %61 {offsets = [40, 0], sizes = [2, 32], strides = [1, 1]} : vector<200x32xf32> to vector<2x32xf32>
    %223 = vector.extract_strided_slice %61 {offsets = [44, 0], sizes = [2, 32], strides = [1, 1]} : vector<200x32xf32> to vector<2x32xf32>
    %224 = vector.extract_strided_slice %61 {offsets = [48, 0], sizes = [2, 32], strides = [1, 1]} : vector<200x32xf32> to vector<2x32xf32>
    %225 = vector.extract_strided_slice %61 {offsets = [52, 0], sizes = [2, 32], strides = [1, 1]} : vector<200x32xf32> to vector<2x32xf32>
    %226 = vector.extract_strided_slice %61 {offsets = [80, 0], sizes = [2, 32], strides = [1, 1]} : vector<200x32xf32> to vector<2x32xf32>
    %227 = vector.extract_strided_slice %61 {offsets = [84, 0], sizes = [2, 32], strides = [1, 1]} : vector<200x32xf32> to vector<2x32xf32>
    %228 = vector.extract_strided_slice %61 {offsets = [88, 0], sizes = [2, 32], strides = [1, 1]} : vector<200x32xf32> to vector<2x32xf32>
    %229 = vector.extract_strided_slice %61 {offsets = [92, 0], sizes = [2, 32], strides = [1, 1]} : vector<200x32xf32> to vector<2x32xf32>
    %230 = vector.extract_strided_slice %61 {offsets = [120, 0], sizes = [2, 32], strides = [1, 1]} : vector<200x32xf32> to vector<2x32xf32>
    %231 = vector.extract_strided_slice %61 {offsets = [124, 0], sizes = [2, 32], strides = [1, 1]} : vector<200x32xf32> to vector<2x32xf32>
    %232 = vector.extract_strided_slice %61 {offsets = [128, 0], sizes = [2, 32], strides = [1, 1]} : vector<200x32xf32> to vector<2x32xf32>
    %233 = vector.extract_strided_slice %61 {offsets = [132, 0], sizes = [2, 32], strides = [1, 1]} : vector<200x32xf32> to vector<2x32xf32>
    %234 = vector.extract_strided_slice %61 {offsets = [160, 0], sizes = [2, 32], strides = [1, 1]} : vector<200x32xf32> to vector<2x32xf32>
    %235 = vector.extract_strided_slice %61 {offsets = [164, 0], sizes = [2, 32], strides = [1, 1]} : vector<200x32xf32> to vector<2x32xf32>
    %236 = vector.extract_strided_slice %61 {offsets = [168, 0], sizes = [2, 32], strides = [1, 1]} : vector<200x32xf32> to vector<2x32xf32>
    %237 = vector.extract_strided_slice %61 {offsets = [172, 0], sizes = [2, 32], strides = [1, 1]} : vector<200x32xf32> to vector<2x32xf32>
    %238 = tpu.concatenate %222, %223, %224, %225, %226, %227, %228, %229, %230, %231, %232, %233, %234, %235, %236, %237 in 0 : vector<2x32xf32>, vector<2x32xf32>, vector<2x32xf32>, vector<2x32xf32>, vector<2x32xf32>, vector<2x32xf32>, vector<2x32xf32>, vector<2x32xf32>, vector<2x32xf32>, vector<2x32xf32>, vector<2x32xf32>, vector<2x32xf32>, vector<2x32xf32>, vector<2x32xf32>, vector<2x32xf32>, vector<2x32xf32> -> vector<32x32xf32>
    %239 = vector.extract_strided_slice %62 {offsets = [256, 0], sizes = [32, 64], strides = [1, 1]} : vector<512x64xf32> to vector<32x64xf32>
    %cst_19 = arith.constant dense<0.000000e+00> : vector<32x64xf32>
    %240 = tpu.matmul %238, %239, %cst_19 {dimension_numbers = #tpu.dot_dimension_numbers<[1], [0], [0], [1], [0, 0, 1, 1], [], []>} : vector<32x32xf32>, vector<32x64xf32>, vector<32x64xf32> -> vector<32x64xf32>
    %241 = arith.addf %221, %240 : vector<32x64xf32>
    %242 = vector.extract_strided_slice %61 {offsets = [42, 0], sizes = [2, 32], strides = [1, 1]} : vector<200x32xf32> to vector<2x32xf32>
    %243 = vector.extract_strided_slice %61 {offsets = [46, 0], sizes = [2, 32], strides = [1, 1]} : vector<200x32xf32> to vector<2x32xf32>
    %244 = vector.extract_strided_slice %61 {offsets = [50, 0], sizes = [2, 32], strides = [1, 1]} : vector<200x32xf32> to vector<2x32xf32>
    %245 = vector.extract_strided_slice %61 {offsets = [54, 0], sizes = [2, 32], strides = [1, 1]} : vector<200x32xf32> to vector<2x32xf32>
    %246 = vector.extract_strided_slice %61 {offsets = [82, 0], sizes = [2, 32], strides = [1, 1]} : vector<200x32xf32> to vector<2x32xf32>
    %247 = vector.extract_strided_slice %61 {offsets = [86, 0], sizes = [2, 32], strides = [1, 1]} : vector<200x32xf32> to vector<2x32xf32>
    %248 = vector.extract_strided_slice %61 {offsets = [90, 0], sizes = [2, 32], strides = [1, 1]} : vector<200x32xf32> to vector<2x32xf32>
    %249 = vector.extract_strided_slice %61 {offsets = [94, 0], sizes = [2, 32], strides = [1, 1]} : vector<200x32xf32> to vector<2x32xf32>
    %250 = vector.extract_strided_slice %61 {offsets = [122, 0], sizes = [2, 32], strides = [1, 1]} : vector<200x32xf32> to vector<2x32xf32>
    %251 = vector.extract_strided_slice %61 {offsets = [126, 0], sizes = [2, 32], strides = [1, 1]} : vector<200x32xf32> to vector<2x32xf32>
    %252 = vector.extract_strided_slice %61 {offsets = [130, 0], sizes = [2, 32], strides = [1, 1]} : vector<200x32xf32> to vector<2x32xf32>
    %253 = vector.extract_strided_slice %61 {offsets = [134, 0], sizes = [2, 32], strides = [1, 1]} : vector<200x32xf32> to vector<2x32xf32>
    %254 = vector.extract_strided_slice %61 {offsets = [162, 0], sizes = [2, 32], strides = [1, 1]} : vector<200x32xf32> to vector<2x32xf32>
    %255 = vector.extract_strided_slice %61 {offsets = [166, 0], sizes = [2, 32], strides = [1, 1]} : vector<200x32xf32> to vector<2x32xf32>
    %256 = vector.extract_strided_slice %61 {offsets = [170, 0], sizes = [2, 32], strides = [1, 1]} : vector<200x32xf32> to vector<2x32xf32>
    %257 = vector.extract_strided_slice %61 {offsets = [174, 0], sizes = [2, 32], strides = [1, 1]} : vector<200x32xf32> to vector<2x32xf32>
    %258 = tpu.concatenate %242, %243, %244, %245, %246, %247, %248, %249, %250, %251, %252, %253, %254, %255, %256, %257 in 0 : vector<2x32xf32>, vector<2x32xf32>, vector<2x32xf32>, vector<2x32xf32>, vector<2x32xf32>, vector<2x32xf32>, vector<2x32xf32>, vector<2x32xf32>, vector<2x32xf32>, vector<2x32xf32>, vector<2x32xf32>, vector<2x32xf32>, vector<2x32xf32>, vector<2x32xf32>, vector<2x32xf32>, vector<2x32xf32> -> vector<32x32xf32>
    %259 = vector.extract_strided_slice %62 {offsets = [288, 0], sizes = [32, 64], strides = [1, 1]} : vector<512x64xf32> to vector<32x64xf32>
    %cst_20 = arith.constant dense<0.000000e+00> : vector<32x64xf32>
    %260 = tpu.matmul %258, %259, %cst_20 {dimension_numbers = #tpu.dot_dimension_numbers<[1], [0], [0], [1], [0, 0, 1, 1], [], []>} : vector<32x32xf32>, vector<32x64xf32>, vector<32x64xf32> -> vector<32x64xf32>
    %261 = arith.addf %241, %260 : vector<32x64xf32>
    %262 = vector.extract_strided_slice %61 {offsets = [44, 0], sizes = [2, 32], strides = [1, 1]} : vector<200x32xf32> to vector<2x32xf32>
    %263 = vector.extract_strided_slice %61 {offsets = [48, 0], sizes = [2, 32], strides = [1, 1]} : vector<200x32xf32> to vector<2x32xf32>
    %264 = vector.extract_strided_slice %61 {offsets = [52, 0], sizes = [2, 32], strides = [1, 1]} : vector<200x32xf32> to vector<2x32xf32>
    %265 = vector.extract_strided_slice %61 {offsets = [56, 0], sizes = [2, 32], strides = [1, 1]} : vector<200x32xf32> to vector<2x32xf32>
    %266 = vector.extract_strided_slice %61 {offsets = [84, 0], sizes = [2, 32], strides = [1, 1]} : vector<200x32xf32> to vector<2x32xf32>
    %267 = vector.extract_strided_slice %61 {offsets = [88, 0], sizes = [2, 32], strides = [1, 1]} : vector<200x32xf32> to vector<2x32xf32>
    %268 = vector.extract_strided_slice %61 {offsets = [92, 0], sizes = [2, 32], strides = [1, 1]} : vector<200x32xf32> to vector<2x32xf32>
    %269 = vector.extract_strided_slice %61 {offsets = [96, 0], sizes = [2, 32], strides = [1, 1]} : vector<200x32xf32> to vector<2x32xf32>
    %270 = vector.extract_strided_slice %61 {offsets = [124, 0], sizes = [2, 32], strides = [1, 1]} : vector<200x32xf32> to vector<2x32xf32>
    %271 = vector.extract_strided_slice %61 {offsets = [128, 0], sizes = [2, 32], strides = [1, 1]} : vector<200x32xf32> to vector<2x32xf32>
    %272 = vector.extract_strided_slice %61 {offsets = [132, 0], sizes = [2, 32], strides = [1, 1]} : vector<200x32xf32> to vector<2x32xf32>
    %273 = vector.extract_strided_slice %61 {offsets = [136, 0], sizes = [2, 32], strides = [1, 1]} : vector<200x32xf32> to vector<2x32xf32>
    %274 = vector.extract_strided_slice %61 {offsets = [164, 0], sizes = [2, 32], strides = [1, 1]} : vector<200x32xf32> to vector<2x32xf32>
    %275 = vector.extract_strided_slice %61 {offsets = [168, 0], sizes = [2, 32], strides = [1, 1]} : vector<200x32xf32> to vector<2x32xf32>
    %276 = vector.extract_strided_slice %61 {offsets = [172, 0], sizes = [2, 32], strides = [1, 1]} : vector<200x32xf32> to vector<2x32xf32>
    %277 = vector.extract_strided_slice %61 {offsets = [176, 0], sizes = [2, 32], strides = [1, 1]} : vector<200x32xf32> to vector<2x32xf32>
    %278 = tpu.concatenate %262, %263, %264, %265, %266, %267, %268, %269, %270, %271, %272, %273, %274, %275, %276, %277 in 0 : vector<2x32xf32>, vector<2x32xf32>, vector<2x32xf32>, vector<2x32xf32>, vector<2x32xf32>, vector<2x32xf32>, vector<2x32xf32>, vector<2x32xf32>, vector<2x32xf32>, vector<2x32xf32>, vector<2x32xf32>, vector<2x32xf32>, vector<2x32xf32>, vector<2x32xf32>, vector<2x32xf32>, vector<2x32xf32> -> vector<32x32xf32>
    %279 = vector.extract_strided_slice %62 {offsets = [320, 0], sizes = [32, 64], strides = [1, 1]} : vector<512x64xf32> to vector<32x64xf32>
    %cst_21 = arith.constant dense<0.000000e+00> : vector<32x64xf32>
    %280 = tpu.matmul %278, %279, %cst_21 {dimension_numbers = #tpu.dot_dimension_numbers<[1], [0], [0], [1], [0, 0, 1, 1], [], []>} : vector<32x32xf32>, vector<32x64xf32>, vector<32x64xf32> -> vector<32x64xf32>
    %281 = arith.addf %261, %280 : vector<32x64xf32>
    %282 = vector.extract_strided_slice %61 {offsets = [46, 0], sizes = [2, 32], strides = [1, 1]} : vector<200x32xf32> to vector<2x32xf32>
    %283 = vector.extract_strided_slice %61 {offsets = [50, 0], sizes = [2, 32], strides = [1, 1]} : vector<200x32xf32> to vector<2x32xf32>
    %284 = vector.extract_strided_slice %61 {offsets = [54, 0], sizes = [2, 32], strides = [1, 1]} : vector<200x32xf32> to vector<2x32xf32>
    %285 = vector.extract_strided_slice %61 {offsets = [58, 0], sizes = [2, 32], strides = [1, 1]} : vector<200x32xf32> to vector<2x32xf32>
    %286 = vector.extract_strided_slice %61 {offsets = [86, 0], sizes = [2, 32], strides = [1, 1]} : vector<200x32xf32> to vector<2x32xf32>
    %287 = vector.extract_strided_slice %61 {offsets = [90, 0], sizes = [2, 32], strides = [1, 1]} : vector<200x32xf32> to vector<2x32xf32>
    %288 = vector.extract_strided_slice %61 {offsets = [94, 0], sizes = [2, 32], strides = [1, 1]} : vector<200x32xf32> to vector<2x32xf32>
    %289 = vector.extract_strided_slice %61 {offsets = [98, 0], sizes = [2, 32], strides = [1, 1]} : vector<200x32xf32> to vector<2x32xf32>
    %290 = vector.extract_strided_slice %61 {offsets = [126, 0], sizes = [2, 32], strides = [1, 1]} : vector<200x32xf32> to vector<2x32xf32>
    %291 = vector.extract_strided_slice %61 {offsets = [130, 0], sizes = [2, 32], strides = [1, 1]} : vector<200x32xf32> to vector<2x32xf32>
    %292 = vector.extract_strided_slice %61 {offsets = [134, 0], sizes = [2, 32], strides = [1, 1]} : vector<200x32xf32> to vector<2x32xf32>
    %293 = vector.extract_strided_slice %61 {offsets = [138, 0], sizes = [2, 32], strides = [1, 1]} : vector<200x32xf32> to vector<2x32xf32>
    %294 = vector.extract_strided_slice %61 {offsets = [166, 0], sizes = [2, 32], strides = [1, 1]} : vector<200x32xf32> to vector<2x32xf32>
    %295 = vector.extract_strided_slice %61 {offsets = [170, 0], sizes = [2, 32], strides = [1, 1]} : vector<200x32xf32> to vector<2x32xf32>
    %296 = vector.extract_strided_slice %61 {offsets = [174, 0], sizes = [2, 32], strides = [1, 1]} : vector<200x32xf32> to vector<2x32xf32>
    %297 = vector.extract_strided_slice %61 {offsets = [178, 0], sizes = [2, 32], strides = [1, 1]} : vector<200x32xf32> to vector<2x32xf32>
    %298 = tpu.concatenate %282, %283, %284, %285, %286, %287, %288, %289, %290, %291, %292, %293, %294, %295, %296, %297 in 0 : vector<2x32xf32>, vector<2x32xf32>, vector<2x32xf32>, vector<2x32xf32>, vector<2x32xf32>, vector<2x32xf32>, vector<2x32xf32>, vector<2x32xf32>, vector<2x32xf32>, vector<2x32xf32>, vector<2x32xf32>, vector<2x32xf32>, vector<2x32xf32>, vector<2x32xf32>, vector<2x32xf32>, vector<2x32xf32> -> vector<32x32xf32>
    %299 = vector.extract_strided_slice %62 {offsets = [352, 0], sizes = [32, 64], strides = [1, 1]} : vector<512x64xf32> to vector<32x64xf32>
    %cst_22 = arith.constant dense<0.000000e+00> : vector<32x64xf32>
    %300 = tpu.matmul %298, %299, %cst_22 {dimension_numbers = #tpu.dot_dimension_numbers<[1], [0], [0], [1], [0, 0, 1, 1], [], []>} : vector<32x32xf32>, vector<32x64xf32>, vector<32x64xf32> -> vector<32x64xf32>
    %301 = arith.addf %281, %300 : vector<32x64xf32>
    %302 = vector.extract_strided_slice %61 {offsets = [60, 0], sizes = [2, 32], strides = [1, 1]} : vector<200x32xf32> to vector<2x32xf32>
    %303 = vector.extract_strided_slice %61 {offsets = [64, 0], sizes = [2, 32], strides = [1, 1]} : vector<200x32xf32> to vector<2x32xf32>
    %304 = vector.extract_strided_slice %61 {offsets = [68, 0], sizes = [2, 32], strides = [1, 1]} : vector<200x32xf32> to vector<2x32xf32>
    %305 = vector.extract_strided_slice %61 {offsets = [72, 0], sizes = [2, 32], strides = [1, 1]} : vector<200x32xf32> to vector<2x32xf32>
    %306 = vector.extract_strided_slice %61 {offsets = [100, 0], sizes = [2, 32], strides = [1, 1]} : vector<200x32xf32> to vector<2x32xf32>
    %307 = vector.extract_strided_slice %61 {offsets = [104, 0], sizes = [2, 32], strides = [1, 1]} : vector<200x32xf32> to vector<2x32xf32>
    %308 = vector.extract_strided_slice %61 {offsets = [108, 0], sizes = [2, 32], strides = [1, 1]} : vector<200x32xf32> to vector<2x32xf32>
    %309 = vector.extract_strided_slice %61 {offsets = [112, 0], sizes = [2, 32], strides = [1, 1]} : vector<200x32xf32> to vector<2x32xf32>
    %310 = vector.extract_strided_slice %61 {offsets = [140, 0], sizes = [2, 32], strides = [1, 1]} : vector<200x32xf32> to vector<2x32xf32>
    %311 = vector.extract_strided_slice %61 {offsets = [144, 0], sizes = [2, 32], strides = [1, 1]} : vector<200x32xf32> to vector<2x32xf32>
    %312 = vector.extract_strided_slice %61 {offsets = [148, 0], sizes = [2, 32], strides = [1, 1]} : vector<200x32xf32> to vector<2x32xf32>
    %313 = vector.extract_strided_slice %61 {offsets = [152, 0], sizes = [2, 32], strides = [1, 1]} : vector<200x32xf32> to vector<2x32xf32>
    %314 = vector.extract_strided_slice %61 {offsets = [180, 0], sizes = [2, 32], strides = [1, 1]} : vector<200x32xf32> to vector<2x32xf32>
    %315 = vector.extract_strided_slice %61 {offsets = [184, 0], sizes = [2, 32], strides = [1, 1]} : vector<200x32xf32> to vector<2x32xf32>
    %316 = vector.extract_strided_slice %61 {offsets = [188, 0], sizes = [2, 32], strides = [1, 1]} : vector<200x32xf32> to vector<2x32xf32>
    %317 = vector.extract_strided_slice %61 {offsets = [192, 0], sizes = [2, 32], strides = [1, 1]} : vector<200x32xf32> to vector<2x32xf32>
    %318 = tpu.concatenate %302, %303, %304, %305, %306, %307, %308, %309, %310, %311, %312, %313, %314, %315, %316, %317 in 0 : vector<2x32xf32>, vector<2x32xf32>, vector<2x32xf32>, vector<2x32xf32>, vector<2x32xf32>, vector<2x32xf32>, vector<2x32xf32>, vector<2x32xf32>, vector<2x32xf32>, vector<2x32xf32>, vector<2x32xf32>, vector<2x32xf32>, vector<2x32xf32>, vector<2x32xf32>, vector<2x32xf32>, vector<2x32xf32> -> vector<32x32xf32>
    %319 = vector.extract_strided_slice %62 {offsets = [384, 0], sizes = [32, 64], strides = [1, 1]} : vector<512x64xf32> to vector<32x64xf32>
    %cst_23 = arith.constant dense<0.000000e+00> : vector<32x64xf32>
    %320 = tpu.matmul %318, %319, %cst_23 {dimension_numbers = #tpu.dot_dimension_numbers<[1], [0], [0], [1], [0, 0, 1, 1], [], []>} : vector<32x32xf32>, vector<32x64xf32>, vector<32x64xf32> -> vector<32x64xf32>
    %321 = arith.addf %301, %320 : vector<32x64xf32>
    %322 = vector.extract_strided_slice %61 {offsets = [62, 0], sizes = [2, 32], strides = [1, 1]} : vector<200x32xf32> to vector<2x32xf32>
    %323 = vector.extract_strided_slice %61 {offsets = [66, 0], sizes = [2, 32], strides = [1, 1]} : vector<200x32xf32> to vector<2x32xf32>
    %324 = vector.extract_strided_slice %61 {offsets = [70, 0], sizes = [2, 32], strides = [1, 1]} : vector<200x32xf32> to vector<2x32xf32>
    %325 = vector.extract_strided_slice %61 {offsets = [74, 0], sizes = [2, 32], strides = [1, 1]} : vector<200x32xf32> to vector<2x32xf32>
    %326 = vector.extract_strided_slice %61 {offsets = [102, 0], sizes = [2, 32], strides = [1, 1]} : vector<200x32xf32> to vector<2x32xf32>
    %327 = vector.extract_strided_slice %61 {offsets = [106, 0], sizes = [2, 32], strides = [1, 1]} : vector<200x32xf32> to vector<2x32xf32>
    %328 = vector.extract_strided_slice %61 {offsets = [110, 0], sizes = [2, 32], strides = [1, 1]} : vector<200x32xf32> to vector<2x32xf32>
    %329 = vector.extract_strided_slice %61 {offsets = [114, 0], sizes = [2, 32], strides = [1, 1]} : vector<200x32xf32> to vector<2x32xf32>
    %330 = vector.extract_strided_slice %61 {offsets = [142, 0], sizes = [2, 32], strides = [1, 1]} : vector<200x32xf32> to vector<2x32xf32>
    %331 = vector.extract_strided_slice %61 {offsets = [146, 0], sizes = [2, 32], strides = [1, 1]} : vector<200x32xf32> to vector<2x32xf32>
    %332 = vector.extract_strided_slice %61 {offsets = [150, 0], sizes = [2, 32], strides = [1, 1]} : vector<200x32xf32> to vector<2x32xf32>
    %333 = vector.extract_strided_slice %61 {offsets = [154, 0], sizes = [2, 32], strides = [1, 1]} : vector<200x32xf32> to vector<2x32xf32>
    %334 = vector.extract_strided_slice %61 {offsets = [182, 0], sizes = [2, 32], strides = [1, 1]} : vector<200x32xf32> to vector<2x32xf32>
    %335 = vector.extract_strided_slice %61 {offsets = [186, 0], sizes = [2, 32], strides = [1, 1]} : vector<200x32xf32> to vector<2x32xf32>
    %336 = vector.extract_strided_slice %61 {offsets = [190, 0], sizes = [2, 32], strides = [1, 1]} : vector<200x32xf32> to vector<2x32xf32>
    %337 = vector.extract_strided_slice %61 {offsets = [194, 0], sizes = [2, 32], strides = [1, 1]} : vector<200x32xf32> to vector<2x32xf32>
    %338 = tpu.concatenate %322, %323, %324, %325, %326, %327, %328, %329, %330, %331, %332, %333, %334, %335, %336, %337 in 0 : vector<2x32xf32>, vector<2x32xf32>, vector<2x32xf32>, vector<2x32xf32>, vector<2x32xf32>, vector<2x32xf32>, vector<2x32xf32>, vector<2x32xf32>, vector<2x32xf32>, vector<2x32xf32>, vector<2x32xf32>, vector<2x32xf32>, vector<2x32xf32>, vector<2x32xf32>, vector<2x32xf32>, vector<2x32xf32> -> vector<32x32xf32>
    %339 = vector.extract_strided_slice %62 {offsets = [416, 0], sizes = [32, 64], strides = [1, 1]} : vector<512x64xf32> to vector<32x64xf32>
    %cst_24 = arith.constant dense<0.000000e+00> : vector<32x64xf32>
    %340 = tpu.matmul %338, %339, %cst_24 {dimension_numbers = #tpu.dot_dimension_numbers<[1], [0], [0], [1], [0, 0, 1, 1], [], []>} : vector<32x32xf32>, vector<32x64xf32>, vector<32x64xf32> -> vector<32x64xf32>
    %341 = arith.addf %321, %340 : vector<32x64xf32>
    %342 = vector.extract_strided_slice %61 {offsets = [64, 0], sizes = [2, 32], strides = [1, 1]} : vector<200x32xf32> to vector<2x32xf32>
    %343 = vector.extract_strided_slice %61 {offsets = [68, 0], sizes = [2, 32], strides = [1, 1]} : vector<200x32xf32> to vector<2x32xf32>
    %344 = vector.extract_strided_slice %61 {offsets = [72, 0], sizes = [2, 32], strides = [1, 1]} : vector<200x32xf32> to vector<2x32xf32>
    %345 = vector.extract_strided_slice %61 {offsets = [76, 0], sizes = [2, 32], strides = [1, 1]} : vector<200x32xf32> to vector<2x32xf32>
    %346 = vector.extract_strided_slice %61 {offsets = [104, 0], sizes = [2, 32], strides = [1, 1]} : vector<200x32xf32> to vector<2x32xf32>
    %347 = vector.extract_strided_slice %61 {offsets = [108, 0], sizes = [2, 32], strides = [1, 1]} : vector<200x32xf32> to vector<2x32xf32>
    %348 = vector.extract_strided_slice %61 {offsets = [112, 0], sizes = [2, 32], strides = [1, 1]} : vector<200x32xf32> to vector<2x32xf32>
    %349 = vector.extract_strided_slice %61 {offsets = [116, 0], sizes = [2, 32], strides = [1, 1]} : vector<200x32xf32> to vector<2x32xf32>
    %350 = vector.extract_strided_slice %61 {offsets = [144, 0], sizes = [2, 32], strides = [1, 1]} : vector<200x32xf32> to vector<2x32xf32>
    %351 = vector.extract_strided_slice %61 {offsets = [148, 0], sizes = [2, 32], strides = [1, 1]} : vector<200x32xf32> to vector<2x32xf32>
    %352 = vector.extract_strided_slice %61 {offsets = [152, 0], sizes = [2, 32], strides = [1, 1]} : vector<200x32xf32> to vector<2x32xf32>
    %353 = vector.extract_strided_slice %61 {offsets = [156, 0], sizes = [2, 32], strides = [1, 1]} : vector<200x32xf32> to vector<2x32xf32>
    %354 = vector.extract_strided_slice %61 {offsets = [184, 0], sizes = [2, 32], strides = [1, 1]} : vector<200x32xf32> to vector<2x32xf32>
    %355 = vector.extract_strided_slice %61 {offsets = [188, 0], sizes = [2, 32], strides = [1, 1]} : vector<200x32xf32> to vector<2x32xf32>
    %356 = vector.extract_strided_slice %61 {offsets = [192, 0], sizes = [2, 32], strides = [1, 1]} : vector<200x32xf32> to vector<2x32xf32>
    %357 = vector.extract_strided_slice %61 {offsets = [196, 0], sizes = [2, 32], strides = [1, 1]} : vector<200x32xf32> to vector<2x32xf32>
    %358 = tpu.concatenate %342, %343, %344, %345, %346, %347, %348, %349, %350, %351, %352, %353, %354, %355, %356, %357 in 0 : vector<2x32xf32>, vector<2x32xf32>, vector<2x32xf32>, vector<2x32xf32>, vector<2x32xf32>, vector<2x32xf32>, vector<2x32xf32>, vector<2x32xf32>, vector<2x32xf32>, vector<2x32xf32>, vector<2x32xf32>, vector<2x32xf32>, vector<2x32xf32>, vector<2x32xf32>, vector<2x32xf32>, vector<2x32xf32> -> vector<32x32xf32>
    %359 = vector.extract_strided_slice %62 {offsets = [448, 0], sizes = [32, 64], strides = [1, 1]} : vector<512x64xf32> to vector<32x64xf32>
    %cst_25 = arith.constant dense<0.000000e+00> : vector<32x64xf32>
    %360 = tpu.matmul %358, %359, %cst_25 {dimension_numbers = #tpu.dot_dimension_numbers<[1], [0], [0], [1], [0, 0, 1, 1], [], []>} : vector<32x32xf32>, vector<32x64xf32>, vector<32x64xf32> -> vector<32x64xf32>
    %361 = arith.addf %341, %360 : vector<32x64xf32>
    %362 = vector.extract_strided_slice %61 {offsets = [66, 0], sizes = [2, 32], strides = [1, 1]} : vector<200x32xf32> to vector<2x32xf32>
    %363 = vector.extract_strided_slice %61 {offsets = [70, 0], sizes = [2, 32], strides = [1, 1]} : vector<200x32xf32> to vector<2x32xf32>
    %364 = vector.extract_strided_slice %61 {offsets = [74, 0], sizes = [2, 32], strides = [1, 1]} : vector<200x32xf32> to vector<2x32xf32>
    %365 = vector.extract_strided_slice %61 {offsets = [78, 0], sizes = [2, 32], strides = [1, 1]} : vector<200x32xf32> to vector<2x32xf32>
    %366 = vector.extract_strided_slice %61 {offsets = [106, 0], sizes = [2, 32], strides = [1, 1]} : vector<200x32xf32> to vector<2x32xf32>
    %367 = vector.extract_strided_slice %61 {offsets = [110, 0], sizes = [2, 32], strides = [1, 1]} : vector<200x32xf32> to vector<2x32xf32>
    %368 = vector.extract_strided_slice %61 {offsets = [114, 0], sizes = [2, 32], strides = [1, 1]} : vector<200x32xf32> to vector<2x32xf32>
    %369 = vector.extract_strided_slice %61 {offsets = [118, 0], sizes = [2, 32], strides = [1, 1]} : vector<200x32xf32> to vector<2x32xf32>
    %370 = vector.extract_strided_slice %61 {offsets = [146, 0], sizes = [2, 32], strides = [1, 1]} : vector<200x32xf32> to vector<2x32xf32>
    %371 = vector.extract_strided_slice %61 {offsets = [150, 0], sizes = [2, 32], strides = [1, 1]} : vector<200x32xf32> to vector<2x32xf32>
    %372 = vector.extract_strided_slice %61 {offsets = [154, 0], sizes = [2, 32], strides = [1, 1]} : vector<200x32xf32> to vector<2x32xf32>
    %373 = vector.extract_strided_slice %61 {offsets = [158, 0], sizes = [2, 32], strides = [1, 1]} : vector<200x32xf32> to vector<2x32xf32>
    %374 = vector.extract_strided_slice %61 {offsets = [186, 0], sizes = [2, 32], strides = [1, 1]} : vector<200x32xf32> to vector<2x32xf32>
    %375 = vector.extract_strided_slice %61 {offsets = [190, 0], sizes = [2, 32], strides = [1, 1]} : vector<200x32xf32> to vector<2x32xf32>
    %376 = vector.extract_strided_slice %61 {offsets = [194, 0], sizes = [2, 32], strides = [1, 1]} : vector<200x32xf32> to vector<2x32xf32>
    %377 = vector.extract_strided_slice %61 {offsets = [198, 0], sizes = [2, 32], strides = [1, 1]} : vector<200x32xf32> to vector<2x32xf32>
    %378 = tpu.concatenate %362, %363, %364, %365, %366, %367, %368, %369, %370, %371, %372, %373, %374, %375, %376, %377 in 0 : vector<2x32xf32>, vector<2x32xf32>, vector<2x32xf32>, vector<2x32xf32>, vector<2x32xf32>, vector<2x32xf32>, vector<2x32xf32>, vector<2x32xf32>, vector<2x32xf32>, vector<2x32xf32>, vector<2x32xf32>, vector<2x32xf32>, vector<2x32xf32>, vector<2x32xf32>, vector<2x32xf32>, vector<2x32xf32> -> vector<32x32xf32>
    %379 = vector.extract_strided_slice %62 {offsets = [480, 0], sizes = [32, 64], strides = [1, 1]} : vector<512x64xf32> to vector<32x64xf32>
    %cst_26 = arith.constant dense<0.000000e+00> : vector<32x64xf32>
    %380 = tpu.matmul %378, %379, %cst_26 {dimension_numbers = #tpu.dot_dimension_numbers<[1], [0], [0], [1], [0, 0, 1, 1], [], []>} : vector<32x32xf32>, vector<32x64xf32>, vector<32x64xf32> -> vector<32x64xf32>
    %381 = arith.addf %361, %380 : vector<32x64xf32>
    %c0_27 = arith.constant 0 : index
    %c0_28 = arith.constant 0 : index
    %382 = vector.load %arg4[%c0_27, %c0_28] : memref<1x64xf32, #tpu.memory_space<vmem>>, vector<1x64xf32>
    %383 = vector.broadcast %382 : vector<1x64xf32> to vector<32x64xf32>
    %384 = arith.addf %381, %383 : vector<32x64xf32>
    %cst_29 = arith.constant 0.000000e+00 : f32
    %385 = vector.broadcast %cst_29 : f32 to vector<32x64xf32>
    %386 = arith.maximumf %384, %385 : vector<32x64xf32>
    %c0_30 = arith.constant 0 : index
    %c0_31 = arith.constant 0 : index
    %387 = vector.load %arg5[%c0_30, %c0_31] : memref<576x64xf32, #tpu.memory_space<vmem>>, vector<576x64xf32>
    %388 = vector.extract_strided_slice %386 {offsets = [0, 0], sizes = [4, 64], strides = [1, 1]} : vector<32x64xf32> to vector<4x64xf32>
    %389 = vector.extract_strided_slice %386 {offsets = [8, 0], sizes = [4, 64], strides = [1, 1]} : vector<32x64xf32> to vector<4x64xf32>
    %390 = tpu.concatenate %388, %389 in 0 : vector<4x64xf32>, vector<4x64xf32> -> vector<8x64xf32>
    %391 = vector.extract_strided_slice %387 {offsets = [0, 0], sizes = [64, 64], strides = [1, 1]} : vector<576x64xf32> to vector<64x64xf32>
    %cst_32 = arith.constant dense<0.000000e+00> : vector<8x64xf32>
    %392 = tpu.matmul %390, %391, %cst_32 {dimension_numbers = #tpu.dot_dimension_numbers<[1], [0], [0], [1], [0, 0, 1, 1], [], []>} : vector<8x64xf32>, vector<64x64xf32>, vector<8x64xf32> -> vector<8x64xf32>
    %393 = vector.extract_strided_slice %386 {offsets = [2, 0], sizes = [4, 64], strides = [1, 1]} : vector<32x64xf32> to vector<4x64xf32>
    %394 = vector.extract_strided_slice %386 {offsets = [10, 0], sizes = [4, 64], strides = [1, 1]} : vector<32x64xf32> to vector<4x64xf32>
    %395 = tpu.concatenate %393, %394 in 0 : vector<4x64xf32>, vector<4x64xf32> -> vector<8x64xf32>
    %396 = vector.extract_strided_slice %387 {offsets = [64, 0], sizes = [64, 64], strides = [1, 1]} : vector<576x64xf32> to vector<64x64xf32>
    %cst_33 = arith.constant dense<0.000000e+00> : vector<8x64xf32>
    %397 = tpu.matmul %395, %396, %cst_33 {dimension_numbers = #tpu.dot_dimension_numbers<[1], [0], [0], [1], [0, 0, 1, 1], [], []>} : vector<8x64xf32>, vector<64x64xf32>, vector<8x64xf32> -> vector<8x64xf32>
    %398 = arith.addf %392, %397 : vector<8x64xf32>
    %399 = vector.extract_strided_slice %386 {offsets = [4, 0], sizes = [4, 64], strides = [1, 1]} : vector<32x64xf32> to vector<4x64xf32>
    %400 = vector.extract_strided_slice %386 {offsets = [12, 0], sizes = [4, 64], strides = [1, 1]} : vector<32x64xf32> to vector<4x64xf32>
    %401 = tpu.concatenate %399, %400 in 0 : vector<4x64xf32>, vector<4x64xf32> -> vector<8x64xf32>
    %402 = vector.extract_strided_slice %387 {offsets = [128, 0], sizes = [64, 64], strides = [1, 1]} : vector<576x64xf32> to vector<64x64xf32>
    %cst_34 = arith.constant dense<0.000000e+00> : vector<8x64xf32>
    %403 = tpu.matmul %401, %402, %cst_34 {dimension_numbers = #tpu.dot_dimension_numbers<[1], [0], [0], [1], [0, 0, 1, 1], [], []>} : vector<8x64xf32>, vector<64x64xf32>, vector<8x64xf32> -> vector<8x64xf32>
    %404 = arith.addf %398, %403 : vector<8x64xf32>
    %405 = vector.extract_strided_slice %386 {offsets = [8, 0], sizes = [4, 64], strides = [1, 1]} : vector<32x64xf32> to vector<4x64xf32>
    %406 = vector.extract_strided_slice %386 {offsets = [16, 0], sizes = [4, 64], strides = [1, 1]} : vector<32x64xf32> to vector<4x64xf32>
    %407 = tpu.concatenate %405, %406 in 0 : vector<4x64xf32>, vector<4x64xf32> -> vector<8x64xf32>
    %408 = vector.extract_strided_slice %387 {offsets = [192, 0], sizes = [64, 64], strides = [1, 1]} : vector<576x64xf32> to vector<64x64xf32>
    %cst_35 = arith.constant dense<0.000000e+00> : vector<8x64xf32>
    %409 = tpu.matmul %407, %408, %cst_35 {dimension_numbers = #tpu.dot_dimension_numbers<[1], [0], [0], [1], [0, 0, 1, 1], [], []>} : vector<8x64xf32>, vector<64x64xf32>, vector<8x64xf32> -> vector<8x64xf32>
    %410 = arith.addf %404, %409 : vector<8x64xf32>
    %411 = vector.extract_strided_slice %386 {offsets = [10, 0], sizes = [4, 64], strides = [1, 1]} : vector<32x64xf32> to vector<4x64xf32>
    %412 = vector.extract_strided_slice %386 {offsets = [18, 0], sizes = [4, 64], strides = [1, 1]} : vector<32x64xf32> to vector<4x64xf32>
    %413 = tpu.concatenate %411, %412 in 0 : vector<4x64xf32>, vector<4x64xf32> -> vector<8x64xf32>
    %414 = vector.extract_strided_slice %387 {offsets = [256, 0], sizes = [64, 64], strides = [1, 1]} : vector<576x64xf32> to vector<64x64xf32>
    %cst_36 = arith.constant dense<0.000000e+00> : vector<8x64xf32>
    %415 = tpu.matmul %413, %414, %cst_36 {dimension_numbers = #tpu.dot_dimension_numbers<[1], [0], [0], [1], [0, 0, 1, 1], [], []>} : vector<8x64xf32>, vector<64x64xf32>, vector<8x64xf32> -> vector<8x64xf32>
    %416 = arith.addf %410, %415 : vector<8x64xf32>
    %417 = vector.extract_strided_slice %386 {offsets = [12, 0], sizes = [4, 64], strides = [1, 1]} : vector<32x64xf32> to vector<4x64xf32>
    %418 = vector.extract_strided_slice %386 {offsets = [20, 0], sizes = [4, 64], strides = [1, 1]} : vector<32x64xf32> to vector<4x64xf32>
    %419 = tpu.concatenate %417, %418 in 0 : vector<4x64xf32>, vector<4x64xf32> -> vector<8x64xf32>
    %420 = vector.extract_strided_slice %387 {offsets = [320, 0], sizes = [64, 64], strides = [1, 1]} : vector<576x64xf32> to vector<64x64xf32>
    %cst_37 = arith.constant dense<0.000000e+00> : vector<8x64xf32>
    %421 = tpu.matmul %419, %420, %cst_37 {dimension_numbers = #tpu.dot_dimension_numbers<[1], [0], [0], [1], [0, 0, 1, 1], [], []>} : vector<8x64xf32>, vector<64x64xf32>, vector<8x64xf32> -> vector<8x64xf32>
    %422 = arith.addf %416, %421 : vector<8x64xf32>
    %423 = vector.extract_strided_slice %386 {offsets = [16, 0], sizes = [4, 64], strides = [1, 1]} : vector<32x64xf32> to vector<4x64xf32>
    %424 = vector.extract_strided_slice %386 {offsets = [24, 0], sizes = [4, 64], strides = [1, 1]} : vector<32x64xf32> to vector<4x64xf32>
    %425 = tpu.concatenate %423, %424 in 0 : vector<4x64xf32>, vector<4x64xf32> -> vector<8x64xf32>
    %426 = vector.extract_strided_slice %387 {offsets = [384, 0], sizes = [64, 64], strides = [1, 1]} : vector<576x64xf32> to vector<64x64xf32>
    %cst_38 = arith.constant dense<0.000000e+00> : vector<8x64xf32>
    %427 = tpu.matmul %425, %426, %cst_38 {dimension_numbers = #tpu.dot_dimension_numbers<[1], [0], [0], [1], [0, 0, 1, 1], [], []>} : vector<8x64xf32>, vector<64x64xf32>, vector<8x64xf32> -> vector<8x64xf32>
    %428 = arith.addf %422, %427 : vector<8x64xf32>
    %429 = vector.extract_strided_slice %386 {offsets = [18, 0], sizes = [4, 64], strides = [1, 1]} : vector<32x64xf32> to vector<4x64xf32>
    %430 = vector.extract_strided_slice %386 {offsets = [26, 0], sizes = [4, 64], strides = [1, 1]} : vector<32x64xf32> to vector<4x64xf32>
    %431 = tpu.concatenate %429, %430 in 0 : vector<4x64xf32>, vector<4x64xf32> -> vector<8x64xf32>
    %432 = vector.extract_strided_slice %387 {offsets = [448, 0], sizes = [64, 64], strides = [1, 1]} : vector<576x64xf32> to vector<64x64xf32>
    %cst_39 = arith.constant dense<0.000000e+00> : vector<8x64xf32>
    %433 = tpu.matmul %431, %432, %cst_39 {dimension_numbers = #tpu.dot_dimension_numbers<[1], [0], [0], [1], [0, 0, 1, 1], [], []>} : vector<8x64xf32>, vector<64x64xf32>, vector<8x64xf32> -> vector<8x64xf32>
    %434 = arith.addf %428, %433 : vector<8x64xf32>
    %435 = vector.extract_strided_slice %386 {offsets = [20, 0], sizes = [4, 64], strides = [1, 1]} : vector<32x64xf32> to vector<4x64xf32>
    %436 = vector.extract_strided_slice %386 {offsets = [28, 0], sizes = [4, 64], strides = [1, 1]} : vector<32x64xf32> to vector<4x64xf32>
    %437 = tpu.concatenate %435, %436 in 0 : vector<4x64xf32>, vector<4x64xf32> -> vector<8x64xf32>
    %438 = vector.extract_strided_slice %387 {offsets = [512, 0], sizes = [64, 64], strides = [1, 1]} : vector<576x64xf32> to vector<64x64xf32>
    %cst_40 = arith.constant dense<0.000000e+00> : vector<8x64xf32>
    %439 = tpu.matmul %437, %438, %cst_40 {dimension_numbers = #tpu.dot_dimension_numbers<[1], [0], [0], [1], [0, 0, 1, 1], [], []>} : vector<8x64xf32>, vector<64x64xf32>, vector<8x64xf32> -> vector<8x64xf32>
    %440 = arith.addf %434, %439 : vector<8x64xf32>
    %c0_41 = arith.constant 0 : index
    %c0_42 = arith.constant 0 : index
    %441 = vector.load %arg6[%c0_41, %c0_42] : memref<1x64xf32, #tpu.memory_space<vmem>>, vector<1x64xf32>
    %442 = vector.broadcast %441 : vector<1x64xf32> to vector<8x64xf32>
    %443 = arith.addf %440, %442 : vector<8x64xf32>
    %cst_43 = arith.constant 0.000000e+00 : f32
    %444 = vector.broadcast %cst_43 : f32 to vector<8x64xf32>
    %445 = arith.maximumf %443, %444 : vector<8x64xf32>
    %446 = vector.extract_strided_slice %445 {offsets = [0, 0], sizes = [2, 64], strides = [1, 1]} : vector<8x64xf32> to vector<2x64xf32>
    %447 = vector.extract_strided_slice %445 {offsets = [2, 0], sizes = [2, 64], strides = [1, 1]} : vector<8x64xf32> to vector<2x64xf32>
    %448 = vector.extract_strided_slice %445 {offsets = [4, 0], sizes = [2, 64], strides = [1, 1]} : vector<8x64xf32> to vector<2x64xf32>
    %449 = vector.extract_strided_slice %445 {offsets = [6, 0], sizes = [2, 64], strides = [1, 1]} : vector<8x64xf32> to vector<2x64xf32>
    %c0_44 = arith.constant 0 : index
    %c0_45 = arith.constant 0 : index
    %450 = vector.load %arg11[%c0_44, %c0_45] : memref<256x256xf32, #tpu.memory_space<vmem>>, vector<256x256xf32>
    %c0_46 = arith.constant 0 : index
    %c0_47 = arith.constant 0 : index
    %451 = vector.load %arg7[%c0_46, %c0_47] : memref<256x256xf32, #tpu.memory_space<vmem>>, vector<256x256xf32>
    %452 = vector.extract_strided_slice %450 {offsets = [0, 0], sizes = [64, 256], strides = [1, 1]} : vector<256x256xf32> to vector<64x256xf32>
    %cst_48 = arith.constant dense<0.000000e+00> : vector<2x256xf32>
    %453 = tpu.matmul %446, %452, %cst_48 {dimension_numbers = #tpu.dot_dimension_numbers<[1], [0], [0], [1], [0, 0, 1, 1], [], []>} : vector<2x64xf32>, vector<64x256xf32>, vector<2x256xf32> -> vector<2x256xf32>
    %cst_49 = arith.constant 0.000000e+00 : f32
    %454 = vector.broadcast %cst_49 : f32 to vector<2x256xf32>
    %455 = arith.addf %454, %453 : vector<2x256xf32>
    %456 = vector.extract_strided_slice %450 {offsets = [64, 0], sizes = [64, 256], strides = [1, 1]} : vector<256x256xf32> to vector<64x256xf32>
    %cst_50 = arith.constant dense<0.000000e+00> : vector<2x256xf32>
    %457 = tpu.matmul %447, %456, %cst_50 {dimension_numbers = #tpu.dot_dimension_numbers<[1], [0], [0], [1], [0, 0, 1, 1], [], []>} : vector<2x64xf32>, vector<64x256xf32>, vector<2x256xf32> -> vector<2x256xf32>
    %458 = arith.addf %455, %457 : vector<2x256xf32>
    %459 = vector.extract_strided_slice %450 {offsets = [128, 0], sizes = [64, 256], strides = [1, 1]} : vector<256x256xf32> to vector<64x256xf32>
    %cst_51 = arith.constant dense<0.000000e+00> : vector<2x256xf32>
    %460 = tpu.matmul %448, %459, %cst_51 {dimension_numbers = #tpu.dot_dimension_numbers<[1], [0], [0], [1], [0, 0, 1, 1], [], []>} : vector<2x64xf32>, vector<64x256xf32>, vector<2x256xf32> -> vector<2x256xf32>
    %461 = arith.addf %458, %460 : vector<2x256xf32>
    %462 = vector.extract_strided_slice %450 {offsets = [192, 0], sizes = [64, 256], strides = [1, 1]} : vector<256x256xf32> to vector<64x256xf32>
    %cst_52 = arith.constant dense<0.000000e+00> : vector<2x256xf32>
    %463 = tpu.matmul %449, %462, %cst_52 {dimension_numbers = #tpu.dot_dimension_numbers<[1], [0], [0], [1], [0, 0, 1, 1], [], []>} : vector<2x64xf32>, vector<64x256xf32>, vector<2x256xf32> -> vector<2x256xf32>
    %464 = arith.addf %461, %463 : vector<2x256xf32>
    %c0_53 = arith.constant 0 : index
    %c0_54 = arith.constant 0 : index
    %465 = vector.load %arg13[%c0_53, %c0_54] : memref<2x256xf32, #tpu.memory_space<vmem>>, vector<2x256xf32>
    tpu.vector_store %arg13[%c0_53, %c0_54], %464 {strides = array<i32>} : memref<2x256xf32, #tpu.memory_space<vmem>>, vector<2x256xf32>,
    %466 = vector.extract_strided_slice %451 {offsets = [0, 0], sizes = [64, 256], strides = [1, 1]} : vector<256x256xf32> to vector<64x256xf32>
    %cst_55 = arith.constant dense<0.000000e+00> : vector<2x256xf32>
    %467 = tpu.matmul %446, %466, %cst_55 {dimension_numbers = #tpu.dot_dimension_numbers<[1], [0], [0], [1], [0, 0, 1, 1], [], []>} : vector<2x64xf32>, vector<64x256xf32>, vector<2x256xf32> -> vector<2x256xf32>
    %cst_56 = arith.constant 0.000000e+00 : f32
    %468 = vector.broadcast %cst_56 : f32 to vector<2x256xf32>
    %469 = arith.addf %468, %467 : vector<2x256xf32>
    %470 = vector.extract_strided_slice %451 {offsets = [64, 0], sizes = [64, 256], strides = [1, 1]} : vector<256x256xf32> to vector<64x256xf32>
    %cst_57 = arith.constant dense<0.000000e+00> : vector<2x256xf32>
    %471 = tpu.matmul %447, %470, %cst_57 {dimension_numbers = #tpu.dot_dimension_numbers<[1], [0], [0], [1], [0, 0, 1, 1], [], []>} : vector<2x64xf32>, vector<64x256xf32>, vector<2x256xf32> -> vector<2x256xf32>
    %472 = arith.addf %469, %471 : vector<2x256xf32>
    %473 = vector.extract_strided_slice %451 {offsets = [128, 0], sizes = [64, 256], strides = [1, 1]} : vector<256x256xf32> to vector<64x256xf32>
    %cst_58 = arith.constant dense<0.000000e+00> : vector<2x256xf32>
    %474 = tpu.matmul %448, %473, %cst_58 {dimension_numbers = #tpu.dot_dimension_numbers<[1], [0], [0], [1], [0, 0, 1, 1], [], []>} : vector<2x64xf32>, vector<64x256xf32>, vector<2x256xf32> -> vector<2x256xf32>
    %475 = arith.addf %472, %474 : vector<2x256xf32>
    %476 = vector.extract_strided_slice %451 {offsets = [192, 0], sizes = [64, 256], strides = [1, 1]} : vector<256x256xf32> to vector<64x256xf32>
    %cst_59 = arith.constant dense<0.000000e+00> : vector<2x256xf32>
    %477 = tpu.matmul %449, %476, %cst_59 {dimension_numbers = #tpu.dot_dimension_numbers<[1], [0], [0], [1], [0, 0, 1, 1], [], []>} : vector<2x64xf32>, vector<64x256xf32>, vector<2x256xf32> -> vector<2x256xf32>
    %478 = arith.addf %475, %477 : vector<2x256xf32>
    %c0_60 = arith.constant 0 : index
    %c0_61 = arith.constant 0 : index
    %479 = vector.load %arg8[%c0_60, %c0_61] : memref<1x256xf32, #tpu.memory_space<vmem>>, vector<1x256xf32>
    %480 = vector.broadcast %479 : vector<1x256xf32> to vector<2x256xf32>
    %481 = arith.addf %478, %480 : vector<2x256xf32>
    %cst_62 = arith.constant 0.000000e+00 : f32
    %482 = vector.broadcast %cst_62 : f32 to vector<2x256xf32>
    %483 = arith.cmpf ogt, %481, %482 : vector<2x256xf32>
    %cst_63 = arith.constant 0.00999999977 : f32
    %484 = vector.broadcast %cst_63 : f32 to vector<2x256xf32>
    %485 = arith.mulf %484, %481 : vector<2x256xf32>
    %486 = arith.select %483, %481, %485 : vector<2x256xi1>, vector<2x256xf32>
    %c0_64 = arith.constant 0 : index
    %c0_65 = arith.constant 0 : index
    %487 = vector.load %arg9[%c0_64, %c0_65] : memref<256x7xf32, #tpu.memory_space<vmem>>, vector<256x7xf32>
    %cst_66 = arith.constant dense<0.000000e+00> : vector<2x7xf32>
    %488 = tpu.matmul %486, %487, %cst_66 {dimension_numbers = #tpu.dot_dimension_numbers<[1], [0], [0], [1], [0, 0, 1, 1], [], []>} : vector<2x256xf32>, vector<256x7xf32>, vector<2x7xf32> -> vector<2x7xf32>
    %c0_67 = arith.constant 0 : index
    %c0_68 = arith.constant 0 : index
    %489 = vector.load %arg10[%c0_67, %c0_68] : memref<1x7xf32, #tpu.memory_space<vmem>>, vector<1x7xf32>
    %490 = vector.broadcast %489 : vector<1x7xf32> to vector<2x7xf32>
    %491 = arith.addf %488, %490 : vector<2x7xf32>
    %492 = vector.extract_strided_slice %491 {offsets = [0, 0], sizes = [2, 6], strides = [1, 1]} : vector<2x7xf32> to vector<2x6xf32>
    %493 = vector.extract_strided_slice %491 {offsets = [0, 6], sizes = [2, 1], strides = [1, 1]} : vector<2x7xf32> to vector<2x1xf32>
    %494 = vector.shape_cast %492 : vector<2x6xf32> to vector<1x2x6xf32>
    %cst_69 = arith.constant dense<0.000000e+00> : vector<1xf32>
    %495 = vector.multi_reduction <add>, %494, %cst_69 [1, 2] : vector<1x2x6xf32> to vector<1xf32>
    %496 = vector.shape_cast %495 : vector<1xf32> to vector<1x1x1xf32>
    %497 = vector.extract %496[0, 0, 0] : f32 from vector<1x1x1xf32>
    %cst_70 = arith.constant 1.200000e+01 : f32
    %498 = arith.divf %497, %cst_70 : f32
    %499 = vector.broadcast %498 : f32 to vector<2x6xf32>
    %500 = arith.subf %492, %499 : vector<2x6xf32>
    %501 = vector.broadcast %493 : vector<2x1xf32> to vector<2x6xf32>
    %502 = arith.addf %501, %500 : vector<2x6xf32>
    %c0_71 = arith.constant 0 : index
    %c0_72 = arith.constant 0 : index
    %503 = vector.load %arg12[%c0_71, %c0_72] : memref<2x6xf32, #tpu.memory_space<vmem>>, vector<2x6xf32>
    tpu.vector_store %arg12[%c0_71, %c0_72], %502 {strides = array<i32>} : memref<2x6xf32, #tpu.memory_space<vmem>>, vector<2x6xf32>,
    return
  }
}

</mosaic_0001>

<llo_original>
// kernel: duel_cnn_forward.1
$region0: #{duel_cnn_forward.1}
  #allocation0 [shape = 'u32[]', space=smem, size = 0x4, offset = 0x4, fixed_abs, tag = 'smem constant byte address 0x4 - core index']
  #allocation1 [shape = 'u32[72,128]{1,0:T(1,128)}', space=vmem, size = 0x9000, scoped, tag = 'internal scratch']
  %s0 = inlined_call_operand.vmem [shape: f32[242,64], index: 0, kind: input, shape index: {}]
  %s1 = inlined_call_operand.vmem [shape: f32[256,32], index: 1, kind: input, shape index: {}]
  %s2 = inlined_call_operand.vmem [shape: f32[1,32], index: 2, kind: input, shape index: {}]
  %s3 = inlined_call_operand.vmem [shape: f32[512,64], index: 3, kind: input, shape index: {}]
  %s4 = inlined_call_operand.vmem [shape: f32[1,64], index: 4, kind: input, shape index: {}]
  %s5 = inlined_call_operand.vmem [shape: f32[576,64], index: 5, kind: input, shape index: {}]
  %s6 = inlined_call_operand.vmem [shape: f32[1,64], index: 6, kind: input, shape index: {}]
  %s7 = inlined_call_operand.vmem [shape: f32[256,256], index: 7, kind: input, shape index: {}]
  %s8 = inlined_call_operand.vmem [shape: f32[1,256], index: 8, kind: input, shape index: {}]
  %s9 = inlined_call_operand.vmem [shape: f32[256,7], index: 9, kind: input, shape index: {}]
  %s10 = inlined_call_operand.vmem [shape: f32[1,7], index: 10, kind: input, shape index: {}]
  %s11 = inlined_call_operand.vmem [shape: f32[256,256], index: 11, kind: input, shape index: {}]
  %s12 = inlined_call_operand.hbm [shape: f32[2,6], index: 12, kind: output, shape index: {0}]
  %s13 = inlined_call_operand.hbm [shape: f32[2,256], index: 13, kind: output, shape index: {1}]
  %14 = xla_tuple %s12, %s13
  %s15 = sld [smem:[#allocation0]]
  $region66: #{duel_cnn_forward.1} parent=0
    _
  %s17 = ssub.s32 1, %s15
  %s18 = scalar_select 0, %s17, %s15
  $region1: #{duel_cnn_forward.1} parent=0
    #allocation2 [shape = 'u8[1024]{0}', space=vmem, size = 0x400, scoped, tag = 'output window, operand 0, single buffered']
    #allocation3 [shape = 's32[1]{0}', space=sflag, size = 0x4, scoped, tag = 'scoped memory for duel_cnn_forward.1']
    #allocation4 [shape = 'u8[2048]{0}', space=vmem, size = 0x800, scoped, tag = 'output window, operand 1, single buffered']
    #allocation5 [shape = 's32[1]{0}', space=sflag, size = 0x4, scoped, tag = 'scoped memory for duel_cnn_forward.1']
    %19 = vsyncpa [#allocation3], 0
    %20 = vsyncpa [#allocation5], 0
    // Predicated region
    $region2: #{duel_cnn_forward.1} parent=1 // pred_check
      _
    $region3: #{duel_cnn_forward.1} parent=1 // pred_check_branch
      %22 = sbr.rel (0) target = $region5
    $region4: #{duel_cnn_forward.1} parent=1 // pred_region
      _
    $region5: #{duel_cnn_forward.1} parent=1 // pred_fallthru
      _
    // Predicated region
    $region6: #{duel_cnn_forward.1} parent=1 // pred_check
      _
    $region7: #{duel_cnn_forward.1} parent=1 // pred_check_branch
      %24 = sbr.rel (0) target = $region9
    $region8: #{duel_cnn_forward.1} parent=1 // pred_region
      _
    $region9: #{duel_cnn_forward.1} parent=1 // pred_fallthru
      _
    // Predicated region
    $region10: #{duel_cnn_forward.1} parent=1 // pred_check
      _
    $region11: #{duel_cnn_forward.1} parent=1 // pred_check_branch
      %26 = sbr.rel (0) target = $region13
    $region12: #{duel_cnn_forward.1} parent=1 // pred_region
      _
    $region13: #{duel_cnn_forward.1} parent=1 // pred_fallthru
      _
    // Predicated region
    $region14: #{duel_cnn_forward.1} parent=1 // pred_check
      _
    $region15: #{duel_cnn_forward.1} parent=1 // pred_check_branch
      %28 = sbr.rel (0) target = $region17
    $region16: #{duel_cnn_forward.1} parent=1 // pred_region
      _
    $region17: #{duel_cnn_forward.1} parent=1 // pred_fallthru
      _
    // Predicated region
    $region18: #{duel_cnn_forward.1} parent=1 // pred_check
      _
    $region19: #{duel_cnn_forward.1} parent=1 // pred_check_branch
      %30 = sbr.rel (0) target = $region21
    $region20: #{duel_cnn_forward.1} parent=1 // pred_region
      _
    $region21: #{duel_cnn_forward.1} parent=1 // pred_fallthru
      _
    // Predicated region
    $region22: #{duel_cnn_forward.1} parent=1 // pred_check
      _
    $region23: #{duel_cnn_forward.1} parent=1 // pred_check_branch
      %32 = sbr.rel (0) target = $region25
    $region24: #{duel_cnn_forward.1} parent=1 // pred_region
      _
    $region25: #{duel_cnn_forward.1} parent=1 // pred_fallthru
      _
    // Predicated region
    $region26: #{duel_cnn_forward.1} parent=1 // pred_check
      _
    $region27: #{duel_cnn_forward.1} parent=1 // pred_check_branch
      %34 = sbr.rel (0) target = $region29
    $region28: #{duel_cnn_forward.1} parent=1 // pred_region
      _
    $region29: #{duel_cnn_forward.1} parent=1 // pred_fallthru
      _
    // Predicated region
    $region30: #{duel_cnn_forward.1} parent=1 // pred_check
      _
    $region31: #{duel_cnn_forward.1} parent=1 // pred_check_branch
      %36 = sbr.rel (0) target = $region33
    $region32: #{duel_cnn_forward.1} parent=1 // pred_region
      _
    $region33: #{duel_cnn_forward.1} parent=1 // pred_fallthru
      _
    // Predicated region
    $region34: #{duel_cnn_forward.1} parent=1 // pred_check
      _
    $region35: #{duel_cnn_forward.1} parent=1 // pred_check_branch
      %38 = sbr.rel (0) target = $region37
    $region36: #{duel_cnn_forward.1} parent=1 // pred_region
      _
    $region37: #{duel_cnn_forward.1} parent=1 // pred_fallthru
      _
    // Predicated region
    $region38: #{duel_cnn_forward.1} parent=1 // pred_check
      _
    $region39: #{duel_cnn_forward.1} parent=1 // pred_check_branch
      %40 = sbr.rel (0) target = $region41
    $region40: #{duel_cnn_forward.1} parent=1 // pred_region
      _
    $region41: #{duel_cnn_forward.1} parent=1 // pred_fallthru
      _
    // Predicated region
    $region42: #{duel_cnn_forward.1} parent=1 // pred_check
      _
    $region43: #{duel_cnn_forward.1} parent=1 // pred_check_branch
      %42 = sbr.rel (0) target = $region45
    $region44: #{duel_cnn_forward.1} parent=1 // pred_region
      _
    $region45: #{duel_cnn_forward.1} parent=1 // pred_fallthru
      _
    // Predicated region
    $region46: #{duel_cnn_forward.1} parent=1 // pred_check
      _
    $region47: #{duel_cnn_forward.1} parent=1 // pred_check_branch
      %44 = sbr.rel (0) target = $region49
    $region48: #{duel_cnn_forward.1} parent=1 // pred_region
      _
    $region49: #{duel_cnn_forward.1} parent=1 // pred_fallthru
      _
    %v45 = vld [vmem:[%s0] sm:$0xff]
    %v46 = vld [vmem:[%s0 + $0x8] sm:$0xff]
    %v47 = vld [vmem:[%s0 + $0x10] sm:$0xff]
    %v48 = vld [vmem:[%s0 + $0x18] sm:$0xff]
    %v49 = vld [vmem:[%s0 + $0x20] sm:$0xff]
    %v50 = vld [vmem:[%s0 + $0x28] sm:$0xff]
    %v51 = vld [vmem:[%s0 + $0x30] sm:$0xff]
    %v52 = vld [vmem:[%s0 + $0x38] sm:$0xff]
    %v53 = vld [vmem:[%s0 + $0x40] sm:$0xff]
    %v54 = vld [vmem:[%s0 + $0x48] sm:$0xff]
    %v55 = vld [vmem:[%s0 + $0x50] sm:$0xff]
    %v56 = vld [vmem:[%s0 + $0x58] sm:$0xff]
    %v57 = vld [vmem:[%s0 + $0x60] sm:$0xff]
    %v58 = vld [vmem:[%s0 + $0x68] sm:$0xff]
    %v59 = vld [vmem:[%s0 + $0x70] sm:$0xff]
    %v60 = vld [vmem:[%s0 + $0x78] sm:$0xff]
    %v61 = vld [vmem:[%s0 + $0x80] sm:$0xff]
    %v62 = vld [vmem:[%s0 + $0x88] sm:$0xff]
    %v63 = vld [vmem:[%s0 + $0x90] sm:$0xff]
    %v64 = vld [vmem:[%s0 + $0x98] sm:$0xff]
    %v65 = vld [vmem:[%s0 + $0xa0] sm:$0xff]
    %v66 = vld [vmem:[%s0 + $0xa8] sm:$0xff]
    %v67 = vld [vmem:[%s0 + $0xb0] sm:$0xff]
    %v68 = vld [vmem:[%s0 + $0xb8] sm:$0xff]
    %v69 = vld [vmem:[%s0 + $0xc0] sm:$0xff]
    %v70 = vld [vmem:[%s0 + $0xc8] sm:$0xff]
    %v71 = vld [vmem:[%s0 + $0xd0] sm:$0xff]
    %v72 = vld [vmem:[%s0 + $0xd8] sm:$0xff]
    %v73 = vld [vmem:[%s0 + $0xe0] sm:$0xff]
    %v74 = vld [vmem:[%s0 + $0xe8] sm:$0xff]
    %v75 = vld [vmem:[%s0 + $0xf0] sm:$0x3]
    %v76 = vld [vmem:[%s1] sm:$0xff]
    %v77 = vld [vmem:[%s1 + $0x8] sm:$0xff]
    %v78 = vld [vmem:[%s1 + $0x10] sm:$0xff]
    %v79 = vld [vmem:[%s1 + $0x18] sm:$0xff]
    %v80 = vld [vmem:[%s1 + $0x20] sm:$0xff]
    %v81 = vld [vmem:[%s1 + $0x28] sm:$0xff]
    %v82 = vld [vmem:[%s1 + $0x30] sm:$0xff]
    %v83 = vld [vmem:[%s1 + $0x38] sm:$0xff]
    %v84 = vld [vmem:[%s1 + $0x40] sm:$0xff]
    %v85 = vld [vmem:[%s1 + $0x48] sm:$0xff]
    %v86 = vld [vmem:[%s1 + $0x50] sm:$0xff]
    %v87 = vld [vmem:[%s1 + $0x58] sm:$0xff]
    %v88 = vld [vmem:[%s1 + $0x60] sm:$0xff]
    %v89 = vld [vmem:[%s1 + $0x68] sm:$0xff]
    %v90 = vld [vmem:[%s1 + $0x70] sm:$0xff]
    %v91 = vld [vmem:[%s1 + $0x78] sm:$0xff]
    %v92 = vld [vmem:[%s1 + $0x80] sm:$0xff]
    %v93 = vld [vmem:[%s1 + $0x88] sm:$0xff]
    %v94 = vld [vmem:[%s1 + $0x90] sm:$0xff]
    %v95 = vld [vmem:[%s1 + $0x98] sm:$0xff]
    %v96 = vld [vmem:[%s1 + $0xa0] sm:$0xff]
    %v97 = vld [vmem:[%s1 + $0xa8] sm:$0xff]
    %v98 = vld [vmem:[%s1 + $0xb0] sm:$0xff]
    %v99 = vld [vmem:[%s1 + $0xb8] sm:$0xff]
    %v100 = vld [vmem:[%s1 + $0xc0] sm:$0xff]
    %v101 = vld [vmem:[%s1 + $0xc8] sm:$0xff]
    %v102 = vld [vmem:[%s1 + $0xd0] sm:$0xff]
    %v103 = vld [vmem:[%s1 + $0xd8] sm:$0xff]
    %v104 = vld [vmem:[%s1 + $0xe0] sm:$0xff]
    %v105 = vld [vmem:[%s1 + $0xe8] sm:$0xff]
    %v106 = vld [vmem:[%s1 + $0xf0] sm:$0xff]
    %v107 = vld [vmem:[%s1 + $0xf8] sm:$0xff]
    %vm112 = vcmask 1045504
    %v113 = vrot.slane %v47, 2
    %v114 = vrot.slane %v48, 2
    %v115 = vsel %vm112, %v113, %v114
    %v116 = vrot.slane %v49, 2
    %v117 = vsel %vm112, %v114, %v116
    %v118 = vrot.slane %v50, 2
    %v119 = vsel %vm112, %v116, %v118
    %vm123 = vcmask 1043456
    %v124 = vrot.slane %v50, 4
    %v125 = vrot.slane %v51, 4
    %v126 = vsel %vm123, %v124, %v125
    %v127 = vrot.slane %v52, 4
    %v128 = vsel %vm123, %v125, %v127
    %vm133 = vcmask 1041408
    %v134 = vrot.slane %v53, 6
    %v135 = vrot.slane %v54, 6
    %v136 = vsel %vm133, %v134, %v135
    %v137 = vrot.slane %v55, 6
    %v138 = vsel %vm133, %v135, %v137
    %v144 = vrot.slane %v58, 2
    %v145 = vrot.slane %v59, 2
    %v146 = vsel %vm112, %v144, %v145
    %v147 = vrot.slane %v60, 2
    %v148 = vsel %vm112, %v145, %v147
    %v149 = vrot.slane %v61, 2
    %v150 = vsel %vm112, %v147, %v149
    %v154 = vrot.slane %v61, 4
    %v155 = vrot.slane %v62, 4
    %v156 = vsel %vm123, %v154, %v155
    %v157 = vrot.slane %v63, 4
    %v158 = vsel %vm123, %v155, %v157
    %v163 = vrot.slane %v64, 6
    %v164 = vrot.slane %v65, 6
    %v165 = vsel %vm133, %v163, %v164
    %v166 = vrot.slane %v66, 6
    %v167 = vsel %vm133, %v164, %v166
    %v173 = vrot.slane %v69, 2
    %v174 = vrot.slane %v70, 2
    %v175 = vsel %vm112, %v173, %v174
    %v176 = vrot.slane %v71, 2
    %v177 = vsel %vm112, %v174, %v176
    %v178 = vrot.slane %v72, 2
    %v179 = vsel %vm112, %v176, %v178
    %v181 = vsel %vm123, %v47, %v115
    %v182 = vsel %vm123, %v127, %v134
    %v183 = vsel %vm123, %v58, %v146
    %v184 = vsel %vm123, %v157, %v163
    %v185 = vsel %vm123, %v69, %v175
    %v188 = vrot.slane %v45, 2
    %v189 = vrot.slane %v46, 2
    %v190 = vsel %vm112, %v188, %v189
    %v191 = vsel %vm112, %v189, %v113
    %v193 = vrot.slane %v48, 4
    %v194 = vrot.slane %v49, 4
    %v195 = vsel %vm123, %v193, %v194
    %v196 = vsel %vm123, %v194, %v124
    %v198 = vrot.slane %v50, 6
    %v199 = vrot.slane %v51, 6
    %v200 = vsel %vm133, %v198, %v199
    %v201 = vrot.slane %v52, 6
    %v202 = vsel %vm133, %v199, %v201
    %v203 = vsel %vm133, %v201, %v134
    %v207 = vrot.slane %v56, 2
    %v208 = vrot.slane %v57, 2
    %v209 = vsel %vm112, %v207, %v208
    %v210 = vsel %vm112, %v208, %v144
    %v212 = vrot.slane %v59, 4
    %v213 = vrot.slane %v60, 4
    %v214 = vsel %vm123, %v212, %v213
    %v215 = vsel %vm123, %v213, %v154
    %v217 = vrot.slane %v61, 6
    %v218 = vrot.slane %v62, 6
    %v219 = vsel %vm133, %v217, %v218
    %v220 = vrot.slane %v63, 6
    %v221 = vsel %vm133, %v218, %v220
    %v222 = vsel %vm133, %v220, %v163
    %v226 = vrot.slane %v67, 2
    %v227 = vrot.slane %v68, 2
    %v228 = vsel %vm112, %v226, %v227
    %v229 = vsel %vm112, %v227, %v173
    %v231 = vrot.slane %v70, 4
    %v232 = vrot.slane %v71, 4
    %v233 = vsel %vm123, %v231, %v232
    %v234 = vrot.slane %v72, 4
    %v235 = vsel %vm123, %v232, %v234
    %v237 = vsel %vm123, %v113, %v193
    %v238 = vsel %vm123, %v203, %v53
    %v239 = vsel %vm123, %v144, %v212
    %v240 = vsel %vm123, %v222, %v64
    %v241 = vsel %vm123, %v173, %v231
    %vm242 = vcmask 523264
    %v243 = vsel %vm242, %v190, 0
    %v245 = vsel %vm242, %v191, 0
    %v248 = vsel %vm242, %v237, 0
    %v250 = vsel %vm242, %v195, 0
    %v252 = vsel %vm242, %v196, 0
    %v254 = vsel %vm242, %v200, 0
    %v256 = vsel %vm242, %v202, 0
    %v259 = vsel %vm242, %v238, 0
    %v261 = vsel %vm242, %v54, 0
    %v263 = vsel %vm242, %v55, 0
    %v265 = vsel %vm242, %v209, 0
    %v267 = vsel %vm242, %v210, 0
    %v270 = vsel %vm242, %v239, 0
    %v272 = vsel %vm242, %v214, 0
    %v274 = vsel %vm242, %v215, 0
    %v276 = vsel %vm242, %v219, 0
    %v278 = vsel %vm242, %v221, 0
    %v281 = vsel %vm242, %v240, 0
    %v283 = vsel %vm242, %v65, 0
    %v285 = vsel %vm242, %v66, 0
    %v287 = vsel %vm242, %v228, 0
    %v289 = vsel %vm242, %v229, 0
    %v292 = vsel %vm242, %v241, 0
    %v294 = vsel %vm242, %v233, 0
    %v296 = vsel %vm242, %v235, 0
    %298 = vmatpush.msra.mxu0 0.0
    %299 = vmatpush.msra.mxu0 0.0
    %300 = vmatpush.msra.mxu0 0.0
    %301 = vmatpush.msra.mxu0 0.0
    %302 = vmatpush.msra.mxu0 0.0
    %303 = vmatpush.msra.mxu0 0.0
    %304 = vmatpush.msra.mxu0 0.0
    %305 = vmatpush.msra.mxu0 0.0
    %306 = vmatpush.msra.mxu0 %v91
    %307 = vmatpush.msra.mxu0 %v90
    %308 = vmatpush.msra.mxu0 %v89
    %309 = vmatpush.msra.mxu0 %v88
    %310 = vmatpush.msra.mxu0 %v87
    %311 = vmatpush.msra.mxu0 %v86
    %312 = vmatpush.msra.mxu0 %v85
    %313 = vmatpush.msra.mxu0 %v84
    %314 = vmatmul.f32.gmra.mxu0 %v243
    %v315 = vpop.f32.mrf.mxu0
    %v316 = vadd.f32 0.0, %v315
    %317 = vmatmul.f32.gmra.mxu0 %v245
    %v318 = vpop.f32.mrf.mxu0
    %v319 = vadd.f32 0.0, %v318
    %320 = vmatmul.f32.gmra.mxu0 %v248
    %v321 = vpop.f32.mrf.mxu0
    %v322 = vadd.f32 0.0, %v321
    %323 = vmatmul.f32.gmra.mxu0 %v250
    %v324 = vpop.f32.mrf.mxu0
    %v325 = vadd.f32 0.0, %v324
    %326 = vmatmul.f32.gmra.mxu0 %v252
    %v327 = vpop.f32.mrf.mxu0
    %v328 = vadd.f32 0.0, %v327
    %329 = vmatmul.f32.gmra.mxu0 %v254
    %v330 = vpop.f32.mrf.mxu0
    %v331 = vadd.f32 0.0, %v330
    %332 = vmatmul.f32.gmra.mxu0 %v256
    %v333 = vpop.f32.mrf.mxu0
    %v334 = vadd.f32 0.0, %v333
    %335 = vmatmul.f32.gmra.mxu0 %v259
    %v336 = vpop.f32.mrf.mxu0
    %v337 = vadd.f32 0.0, %v336
    %338 = vmatmul.f32.gmra.mxu0 %v261
    %v339 = vpop.f32.mrf.mxu0
    %v340 = vadd.f32 0.0, %v339
    %341 = vmatmul.f32.gmra.mxu0 %v263
    %v342 = vpop.f32.mrf.mxu0
    %v343 = vadd.f32 0.0, %v342
    %344 = vmatmul.f32.gmra.mxu0 %v265
    %v345 = vpop.f32.mrf.mxu0
    %v346 = vadd.f32 0.0, %v345
    %347 = vmatmul.f32.gmra.mxu0 %v267
    %v348 = vpop.f32.mrf.mxu0
    %v349 = vadd.f32 0.0, %v348
    %350 = vmatmul.f32.gmra.mxu0 %v270
    %v351 = vpop.f32.mrf.mxu0
    %v352 = vadd.f32 0.0, %v351
    %353 = vmatmul.f32.gmra.mxu0 %v272
    %v354 = vpop.f32.mrf.mxu0
    %v355 = vadd.f32 0.0, %v354
    %356 = vmatmul.f32.gmra.mxu0 %v274
    %v357 = vpop.f32.mrf.mxu0
    %v358 = vadd.f32 0.0, %v357
    %359 = vmatmul.f32.gmra.mxu0 %v276
    %v360 = vpop.f32.mrf.mxu0
    %v361 = vadd.f32 0.0, %v360
    %362 = vmatmul.f32.gmra.mxu0 %v278
    %v363 = vpop.f32.mrf.mxu0
    %v364 = vadd.f32 0.0, %v363
    %365 = vmatmul.f32.gmra.mxu0 %v281
    %v366 = vpop.f32.mrf.mxu0
    %v367 = vadd.f32 0.0, %v366
    %368 = vmatmul.f32.gmra.mxu0 %v283
    %v369 = vpop.f32.mrf.mxu0
    %v370 = vadd.f32 0.0, %v369
    %371 = vmatmul.f32.gmra.mxu0 %v285
    %v372 = vpop.f32.mrf.mxu0
    %v373 = vadd.f32 0.0, %v372
    %374 = vmatmul.f32.gmra.mxu0 %v287
    %v375 = vpop.f32.mrf.mxu0
    %v376 = vadd.f32 0.0, %v375
    %377 = vmatmul.f32.gmra.mxu0 %v289
    %v378 = vpop.f32.mrf.mxu0
    %v379 = vadd.f32 0.0, %v378
    %380 = vmatmul.f32.gmra.mxu0 %v292
    %v381 = vpop.f32.mrf.mxu0
    %v382 = vadd.f32 0.0, %v381
    %383 = vmatmul.f32.gmra.mxu0 %v294
    %v384 = vpop.f32.mrf.mxu0
    %v385 = vadd.f32 0.0, %v384
    %386 = vmatmul.f32.gmra.mxu0 %v296
    %v387 = vpop.f32.mrf.mxu0
    %v388 = vadd.f32 0.0, %v387
    %389 = vdwg.mxu0
    %v390 = vsel %vm242, %v45, 0
    %v392 = vsel %vm242, %v46, 0
    %v395 = vsel %vm242, %v181, 0
    %v397 = vsel %vm242, %v117, 0
    %v399 = vsel %vm242, %v119, 0
    %v401 = vsel %vm242, %v126, 0
    %v403 = vsel %vm242, %v128, 0
    %v406 = vsel %vm242, %v182, 0
    %v408 = vsel %vm242, %v136, 0
    %v410 = vsel %vm242, %v138, 0
    %v412 = vsel %vm242, %v56, 0
    %v414 = vsel %vm242, %v57, 0
    %v417 = vsel %vm242, %v183, 0
    %v419 = vsel %vm242, %v148, 0
    %v421 = vsel %vm242, %v150, 0
    %v423 = vsel %vm242, %v156, 0
    %v425 = vsel %vm242, %v158, 0
    %v428 = vsel %vm242, %v184, 0
    %v430 = vsel %vm242, %v165, 0
    %v432 = vsel %vm242, %v167, 0
    %v434 = vsel %vm242, %v67, 0
    %v436 = vsel %vm242, %v68, 0
    %v439 = vsel %vm242, %v185, 0
    %v441 = vsel %vm242, %v177, 0
    %v443 = vsel %vm242, %v179, 0
    %445 = vmatpush.msra.mxu0 0.0
    %446 = vmatpush.msra.mxu0 0.0
    %447 = vmatpush.msra.mxu0 0.0
    %448 = vmatpush.msra.mxu0 0.0
    %449 = vmatpush.msra.mxu0 0.0
    %450 = vmatpush.msra.mxu0 0.0
    %451 = vmatpush.msra.mxu0 0.0
    %452 = vmatpush.msra.mxu0 0.0
    %453 = vmatpush.msra.mxu0 %v83
    %454 = vmatpush.msra.mxu0 %v82
    %455 = vmatpush.msra.mxu0 %v81
    %456 = vmatpush.msra.mxu0 %v80
    %457 = vmatpush.msra.mxu0 %v79
    %458 = vmatpush.msra.mxu0 %v78
    %459 = vmatpush.msra.mxu0 %v77
    %460 = vmatpush.msra.mxu0 %v76
    %461 = vmatmul.f32.gmra.mxu0 %v390
    %v462 = vpop.f32.mrf.mxu0
    %v463 = vadd.f32 %v316, %v462
    %464 = vmatmul.f32.gmra.mxu0 %v392
    %v465 = vpop.f32.mrf.mxu0
    %v466 = vadd.f32 %v319, %v465
    %467 = vmatmul.f32.gmra.mxu0 %v395
    %v468 = vpop.f32.mrf.mxu0
    %v469 = vadd.f32 %v322, %v468
    %470 = vmatmul.f32.gmra.mxu0 %v397
    %v471 = vpop.f32.mrf.mxu0
    %v472 = vadd.f32 %v325, %v471
    %473 = vmatmul.f32.gmra.mxu0 %v399
    %v474 = vpop.f32.mrf.mxu0
    %v475 = vadd.f32 %v328, %v474
    %476 = vmatmul.f32.gmra.mxu0 %v401
    %v477 = vpop.f32.mrf.mxu0
    %v478 = vadd.f32 %v331, %v477
    %479 = vmatmul.f32.gmra.mxu0 %v403
    %v480 = vpop.f32.mrf.mxu0
    %v481 = vadd.f32 %v334, %v480
    %482 = vmatmul.f32.gmra.mxu0 %v406
    %v483 = vpop.f32.mrf.mxu0
    %v484 = vadd.f32 %v337, %v483
    %485 = vmatmul.f32.gmra.mxu0 %v408
    %v486 = vpop.f32.mrf.mxu0
    %v487 = vadd.f32 %v340, %v486
    %488 = vmatmul.f32.gmra.mxu0 %v410
    %v489 = vpop.f32.mrf.mxu0
    %v490 = vadd.f32 %v343, %v489
    %491 = vmatmul.f32.gmra.mxu0 %v412
    %v492 = vpop.f32.mrf.mxu0
    %v493 = vadd.f32 %v346, %v492
    %494 = vmatmul.f32.gmra.mxu0 %v414
    %v495 = vpop.f32.mrf.mxu0
    %v496 = vadd.f32 %v349, %v495
    %497 = vmatmul.f32.gmra.mxu0 %v417
    %v498 = vpop.f32.mrf.mxu0
    %v499 = vadd.f32 %v352, %v498
    %500 = vmatmul.f32.gmra.mxu0 %v419
    %v501 = vpop.f32.mrf.mxu0
    %v502 = vadd.f32 %v355, %v501
    %503 = vmatmul.f32.gmra.mxu0 %v421
    %v504 = vpop.f32.mrf.mxu0
    %v505 = vadd.f32 %v358, %v504
    %506 = vmatmul.f32.gmra.mxu0 %v423
    %v507 = vpop.f32.mrf.mxu0
    %v508 = vadd.f32 %v361, %v507
    %509 = vmatmul.f32.gmra.mxu0 %v425
    %v510 = vpop.f32.mrf.mxu0
    %v511 = vadd.f32 %v364, %v510
    %512 = vmatmul.f32.gmra.mxu0 %v428
    %v513 = vpop.f32.mrf.mxu0
    %v514 = vadd.f32 %v367, %v513
    %515 = vmatmul.f32.gmra.mxu0 %v430
    %v516 = vpop.f32.mrf.mxu0
    %v517 = vadd.f32 %v370, %v516
    %518 = vmatmul.f32.gmra.mxu0 %v432
    %v519 = vpop.f32.mrf.mxu0
    %v520 = vadd.f32 %v373, %v519
    %521 = vmatmul.f32.gmra.mxu0 %v434
    %v522 = vpop.f32.mrf.mxu0
    %v523 = vadd.f32 %v376, %v522
    %524 = vmatmul.f32.gmra.mxu0 %v436
    %v525 = vpop.f32.mrf.mxu0
    %v526 = vadd.f32 %v379, %v525
    %527 = vmatmul.f32.gmra.mxu0 %v439
    %v528 = vpop.f32.mrf.mxu0
    %v529 = vadd.f32 %v382, %v528
    %530 = vmatmul.f32.gmra.mxu0 %v441
    %v531 = vpop.f32.mrf.mxu0
    %v532 = vadd.f32 %v385, %v531
    %533 = vmatmul.f32.gmra.mxu0 %v443
    %v534 = vpop.f32.mrf.mxu0
    %v535 = vadd.f32 %v388, %v534
    %536 = vdwg.mxu0
    %v537 = vrot.slane %v47, 6
    %v538 = vrot.slane %v48, 6
    %v539 = vsel %vm133, %v537, %v538
    %v540 = vrot.slane %v49, 6
    %v541 = vsel %vm133, %v538, %v540
    %v542 = vsel %vm133, %v540, %v198
    %v544 = vrot.slane %v53, 2
    %v545 = vrot.slane %v54, 2
    %v546 = vsel %vm112, %v544, %v545
    %v547 = vrot.slane %v55, 2
    %v548 = vsel %vm112, %v545, %v547
    %v550 = vrot.slane %v56, 4
    %v551 = vrot.slane %v57, 4
    %v552 = vsel %vm123, %v550, %v551
    %v553 = vrot.slane %v58, 4
    %v554 = vsel %vm123, %v551, %v553
    %v556 = vrot.slane %v58, 6
    %v557 = vrot.slane %v59, 6
    %v558 = vsel %vm133, %v556, %v557
    %v559 = vrot.slane %v60, 6
    %v560 = vsel %vm133, %v557, %v559
    %v561 = vsel %vm133, %v559, %v217
    %v563 = vrot.slane %v64, 2
    %v564 = vrot.slane %v65, 2
    %v565 = vsel %vm112, %v563, %v564
    %v566 = vrot.slane %v66, 2
    %v567 = vsel %vm112, %v564, %v566
    %v569 = vrot.slane %v67, 4
    %v570 = vrot.slane %v68, 4
    %v571 = vsel %vm123, %v569, %v570
    %v572 = vrot.slane %v69, 4
    %v573 = vsel %vm123, %v570, %v572
    %v575 = vrot.slane %v69, 6
    %v576 = vrot.slane %v70, 6
    %v577 = vsel %vm133, %v575, %v576
    %v578 = vrot.slane %v71, 6
    %v579 = vsel %vm133, %v576, %v578
    %v580 = vrot.slane %v72, 6
    %v581 = vsel %vm133, %v578, %v580
    %v583 = vsel %vm123, %v542, %v50
    %v584 = vsel %vm123, %v547, %v550
    %v585 = vsel %vm123, %v561, %v61
    %v586 = vsel %vm123, %v566, %v569
    %v587 = vsel %vm123, %v581, %v72
    %v588 = vsel %vm242, %v539, 0
    %v590 = vsel %vm242, %v541, 0
    %v593 = vsel %vm242, %v583, 0
    %v595 = vsel %vm242, %v51, 0
    %v597 = vsel %vm242, %v52, 0
    %v599 = vsel %vm242, %v546, 0
    %v601 = vsel %vm242, %v548, 0
    %v604 = vsel %vm242, %v584, 0
    %v606 = vsel %vm242, %v552, 0
    %v608 = vsel %vm242, %v554, 0
    %v610 = vsel %vm242, %v558, 0
    %v612 = vsel %vm242, %v560, 0
    %v615 = vsel %vm242, %v585, 0
    %v617 = vsel %vm242, %v62, 0
    %v619 = vsel %vm242, %v63, 0
    %v621 = vsel %vm242, %v565, 0
    %v623 = vsel %vm242, %v567, 0
    %v626 = vsel %vm242, %v586, 0
    %v628 = vsel %vm242, %v571, 0
    %v630 = vsel %vm242, %v573, 0
    %v632 = vsel %vm242, %v577, 0
    %v634 = vsel %vm242, %v579, 0
    %v637 = vsel %vm242, %v587, 0
    %v640 = vsel %vm242, %v73, 0
    %v643 = vsel %vm242, %v74, 0
    %645 = vmatpush.msra.mxu0 0.0
    %646 = vmatpush.msra.mxu0 0.0
    %647 = vmatpush.msra.mxu0 0.0
    %648 = vmatpush.msra.mxu0 0.0
    %649 = vmatpush.msra.mxu0 0.0
    %650 = vmatpush.msra.mxu0 0.0
    %651 = vmatpush.msra.mxu0 0.0
    %652 = vmatpush.msra.mxu0 0.0
    %653 = vmatpush.msra.mxu0 %v99
    %654 = vmatpush.msra.mxu0 %v98
    %655 = vmatpush.msra.mxu0 %v97
    %656 = vmatpush.msra.mxu0 %v96
    %657 = vmatpush.msra.mxu0 %v95
    %658 = vmatpush.msra.mxu0 %v94
    %659 = vmatpush.msra.mxu0 %v93
    %660 = vmatpush.msra.mxu0 %v92
    %661 = vmatmul.f32.gmra.mxu0 %v588
    %v662 = vpop.f32.mrf.mxu0
    %v663 = vadd.f32 0.0, %v662
    %664 = vmatmul.f32.gmra.mxu0 %v590
    %v665 = vpop.f32.mrf.mxu0
    %v666 = vadd.f32 0.0, %v665
    %667 = vmatmul.f32.gmra.mxu0 %v593
    %v668 = vpop.f32.mrf.mxu0
    %v669 = vadd.f32 0.0, %v668
    %670 = vmatmul.f32.gmra.mxu0 %v595
    %v671 = vpop.f32.mrf.mxu0
    %v672 = vadd.f32 0.0, %v671
    %673 = vmatmul.f32.gmra.mxu0 %v597
    %v674 = vpop.f32.mrf.mxu0
    %v675 = vadd.f32 0.0, %v674
    %676 = vmatmul.f32.gmra.mxu0 %v599
    %v677 = vpop.f32.mrf.mxu0
    %v678 = vadd.f32 0.0, %v677
    %679 = vmatmul.f32.gmra.mxu0 %v601
    %v680 = vpop.f32.mrf.mxu0
    %v681 = vadd.f32 0.0, %v680
    %682 = vmatmul.f32.gmra.mxu0 %v604
    %v683 = vpop.f32.mrf.mxu0
    %v684 = vadd.f32 0.0, %v683
    %685 = vmatmul.f32.gmra.mxu0 %v606
    %v686 = vpop.f32.mrf.mxu0
    %v687 = vadd.f32 0.0, %v686
    %688 = vmatmul.f32.gmra.mxu0 %v608
    %v689 = vpop.f32.mrf.mxu0
    %v690 = vadd.f32 0.0, %v689
    %691 = vmatmul.f32.gmra.mxu0 %v610
    %v692 = vpop.f32.mrf.mxu0
    %v693 = vadd.f32 0.0, %v692
    %694 = vmatmul.f32.gmra.mxu0 %v612
    %v695 = vpop.f32.mrf.mxu0
    %v696 = vadd.f32 0.0, %v695
    %697 = vmatmul.f32.gmra.mxu0 %v615
    %v698 = vpop.f32.mrf.mxu0
    %v699 = vadd.f32 0.0, %v698
    %700 = vmatmul.f32.gmra.mxu0 %v617
    %v701 = vpop.f32.mrf.mxu0
    %v702 = vadd.f32 0.0, %v701
    %703 = vmatmul.f32.gmra.mxu0 %v619
    %v704 = vpop.f32.mrf.mxu0
    %v705 = vadd.f32 0.0, %v704
    %706 = vmatmul.f32.gmra.mxu0 %v621
    %v707 = vpop.f32.mrf.mxu0
    %v708 = vadd.f32 0.0, %v707
    %709 = vmatmul.f32.gmra.mxu0 %v623
    %v710 = vpop.f32.mrf.mxu0
    %v711 = vadd.f32 0.0, %v710
    %712 = vmatmul.f32.gmra.mxu0 %v626
    %v713 = vpop.f32.mrf.mxu0
    %v714 = vadd.f32 0.0, %v713
    %715 = vmatmul.f32.gmra.mxu0 %v628
    %v716 = vpop.f32.mrf.mxu0
    %v717 = vadd.f32 0.0, %v716
    %718 = vmatmul.f32.gmra.mxu0 %v630
    %v719 = vpop.f32.mrf.mxu0
    %v720 = vadd.f32 0.0, %v719
    %721 = vmatmul.f32.gmra.mxu0 %v632
    %v722 = vpop.f32.mrf.mxu0
    %v723 = vadd.f32 0.0, %v722
    %724 = vmatmul.f32.gmra.mxu0 %v634
    %v725 = vpop.f32.mrf.mxu0
    %v726 = vadd.f32 0.0, %v725
    %727 = vmatmul.f32.gmra.mxu0 %v637
    %v728 = vpop.f32.mrf.mxu0
    %v729 = vadd.f32 0.0, %v728
    %730 = vmatmul.f32.gmra.mxu0 %v640
    %v731 = vpop.f32.mrf.mxu0
    %v732 = vadd.f32 0.0, %v731
    %733 = vmatmul.f32.gmra.mxu0 %v643
    %v734 = vpop.f32.mrf.mxu0
    %v735 = vadd.f32 0.0, %v734
    %736 = vdwg.mxu0
    %v737 = vadd.f32 %v463, %v663
    %v738 = vadd.f32 %v466, %v666
    %v739 = vadd.f32 %v469, %v669
    %v740 = vadd.f32 %v472, %v672
    %v741 = vadd.f32 %v475, %v675
    %v742 = vadd.f32 %v478, %v678
    %v743 = vadd.f32 %v481, %v681
    %v744 = vadd.f32 %v484, %v684
    %v745 = vadd.f32 %v487, %v687
    %v746 = vadd.f32 %v490, %v690
    %v747 = vadd.f32 %v493, %v693
    %v748 = vadd.f32 %v496, %v696
    %v749 = vadd.f32 %v499, %v699
    %v750 = vadd.f32 %v502, %v702
    %v751 = vadd.f32 %v505, %v705
    %v752 = vadd.f32 %v508, %v708
    %v753 = vadd.f32 %v511, %v711
    %v754 = vadd.f32 %v514, %v714
    %v755 = vadd.f32 %v517, %v717
    %v756 = vadd.f32 %v520, %v720
    %v757 = vadd.f32 %v523, %v723
    %v758 = vadd.f32 %v526, %v726
    %v759 = vadd.f32 %v529, %v729
    %v760 = vadd.f32 %v532, %v732
    %v761 = vadd.f32 %v535, %v735
    %v762 = vrot.slane %v51, 2
    %v763 = vsel %vm112, %v118, %v762
    %v764 = vrot.slane %v52, 2
    %v765 = vsel %vm112, %v762, %v764
    %v766 = vsel %vm112, %v764, %v544
    %v768 = vrot.slane %v53, 4
    %v769 = vrot.slane %v54, 4
    %v770 = vsel %vm123, %v768, %v769
    %v771 = vrot.slane %v55, 4
    %v772 = vsel %vm123, %v769, %v771
    %v774 = vrot.slane %v56, 6
    %v775 = vrot.slane %v57, 6
    %v776 = vsel %vm133, %v774, %v775
    %v777 = vsel %vm133, %v775, %v556
    %v779 = vrot.slane %v62, 2
    %v780 = vsel %vm112, %v149, %v779
    %v781 = vrot.slane %v63, 2
    %v782 = vsel %vm112, %v779, %v781
    %v783 = vsel %vm112, %v781, %v563
    %v785 = vrot.slane %v64, 4
    %v786 = vrot.slane %v65, 4
    %v787 = vsel %vm123, %v785, %v786
    %v788 = vrot.slane %v66, 4
    %v789 = vsel %vm123, %v786, %v788
    %v791 = vrot.slane %v67, 6
    %v792 = vrot.slane %v68, 6
    %v793 = vsel %vm133, %v791, %v792
    %v794 = vsel %vm133, %v792, %v575
    %v797 = vrot.slane %v73, 2
    %v798 = vsel %vm112, %v178, %v797
    %v799 = vrot.slane %v74, 2
    %v800 = vsel %vm112, %v797, %v799
    %v801 = vrot.slane %v75, 2
    %v802 = vsel %vm112, %v799, %v801
    %v804 = vsel %vm123, %v50, %v763
    %v805 = vsel %vm123, %v771, %v774
    %v806 = vsel %vm123, %v61, %v780
    %v807 = vsel %vm123, %v788, %v791
    %v808 = vsel %vm123, %v72, %v798
    %v809 = vsel %vm242, %v48, 0
    %v811 = vsel %vm242, %v49, 0
    %v814 = vsel %vm242, %v804, 0
    %v816 = vsel %vm242, %v765, 0
    %v818 = vsel %vm242, %v766, 0
    %v820 = vsel %vm242, %v770, 0
    %v822 = vsel %vm242, %v772, 0
    %v825 = vsel %vm242, %v805, 0
    %v827 = vsel %vm242, %v776, 0
    %v829 = vsel %vm242, %v777, 0
    %v831 = vsel %vm242, %v59, 0
    %v833 = vsel %vm242, %v60, 0
    %v836 = vsel %vm242, %v806, 0
    %v838 = vsel %vm242, %v782, 0
    %v840 = vsel %vm242, %v783, 0
    %v842 = vsel %vm242, %v787, 0
    %v844 = vsel %vm242, %v789, 0
    %v847 = vsel %vm242, %v807, 0
    %v849 = vsel %vm242, %v793, 0
    %v851 = vsel %vm242, %v794, 0
    %v853 = vsel %vm242, %v70, 0
    %v855 = vsel %vm242, %v71, 0
    %v858 = vsel %vm242, %v808, 0
    %v860 = vsel %vm242, %v800, 0
    %v862 = vsel %vm242, %v802, 0
    %864 = vmatpush.msra.mxu0 0.0
    %865 = vmatpush.msra.mxu0 0.0
    %866 = vmatpush.msra.mxu0 0.0
    %867 = vmatpush.msra.mxu0 0.0
    %868 = vmatpush.msra.mxu0 0.0
    %869 = vmatpush.msra.mxu0 0.0
    %870 = vmatpush.msra.mxu0 0.0
    %871 = vmatpush.msra.mxu0 0.0
    %872 = vmatpush.msra.mxu0 %v107
    %873 = vmatpush.msra.mxu0 %v106
    %874 = vmatpush.msra.mxu0 %v105
    %875 = vmatpush.msra.mxu0 %v104
    %876 = vmatpush.msra.mxu0 %v103
    %877 = vmatpush.msra.mxu0 %v102
    %878 = vmatpush.msra.mxu0 %v101
    %879 = vmatpush.msra.mxu0 %v100
    %880 = vmatmul.f32.gmra.mxu0 %v809
    %v881 = vpop.f32.mrf.mxu0
    %v882 = vadd.f32 0.0, %v881
    %883 = vmatmul.f32.gmra.mxu0 %v811
    %v884 = vpop.f32.mrf.mxu0
    %v885 = vadd.f32 0.0, %v884
    %886 = vmatmul.f32.gmra.mxu0 %v814
    %v887 = vpop.f32.mrf.mxu0
    %v888 = vadd.f32 0.0, %v887
    %889 = vmatmul.f32.gmra.mxu0 %v816
    %v890 = vpop.f32.mrf.mxu0
    %v891 = vadd.f32 0.0, %v890
    %892 = vmatmul.f32.gmra.mxu0 %v818
    %v893 = vpop.f32.mrf.mxu0
    %v894 = vadd.f32 0.0, %v893
    %895 = vmatmul.f32.gmra.mxu0 %v820
    %v896 = vpop.f32.mrf.mxu0
    %v897 = vadd.f32 0.0, %v896
    %898 = vmatmul.f32.gmra.mxu0 %v822
    %v899 = vpop.f32.mrf.mxu0
    %v900 = vadd.f32 0.0, %v899
    %901 = vmatmul.f32.gmra.mxu0 %v825
    %v902 = vpop.f32.mrf.mxu0
    %v903 = vadd.f32 0.0, %v902
    %904 = vmatmul.f32.gmra.mxu0 %v827
    %v905 = vpop.f32.mrf.mxu0
    %v906 = vadd.f32 0.0, %v905
    %907 = vmatmul.f32.gmra.mxu0 %v829
    %v908 = vpop.f32.mrf.mxu0
    %v909 = vadd.f32 0.0, %v908
    %910 = vmatmul.f32.gmra.mxu0 %v831
    %v911 = vpop.f32.mrf.mxu0
    %v912 = vadd.f32 0.0, %v911
    %913 = vmatmul.f32.gmra.mxu0 %v833
    %v914 = vpop.f32.mrf.mxu0
    %v915 = vadd.f32 0.0, %v914
    %916 = vmatmul.f32.gmra.mxu0 %v836
    %v917 = vpop.f32.mrf.mxu0
    %v918 = vadd.f32 0.0, %v917
    %919 = vmatmul.f32.gmra.mxu0 %v838
    %v920 = vpop.f32.mrf.mxu0
    %v921 = vadd.f32 0.0, %v920
    %922 = vmatmul.f32.gmra.mxu0 %v840
    %v923 = vpop.f32.mrf.mxu0
    %v924 = vadd.f32 0.0, %v923
    %925 = vmatmul.f32.gmra.mxu0 %v842
    %v926 = vpop.f32.mrf.mxu0
    %v927 = vadd.f32 0.0, %v926
    %928 = vmatmul.f32.gmra.mxu0 %v844
    %v929 = vpop.f32.mrf.mxu0
    %v930 = vadd.f32 0.0, %v929
    %931 = vmatmul.f32.gmra.mxu0 %v847
    %v932 = vpop.f32.mrf.mxu0
    %v933 = vadd.f32 0.0, %v932
    %934 = vmatmul.f32.gmra.mxu0 %v849
    %v935 = vpop.f32.mrf.mxu0
    %v936 = vadd.f32 0.0, %v935
    %937 = vmatmul.f32.gmra.mxu0 %v851
    %v938 = vpop.f32.mrf.mxu0
    %v939 = vadd.f32 0.0, %v938
    %940 = vmatmul.f32.gmra.mxu0 %v853
    %v941 = vpop.f32.mrf.mxu0
    %v942 = vadd.f32 0.0, %v941
    %943 = vmatmul.f32.gmra.mxu0 %v855
    %v944 = vpop.f32.mrf.mxu0
    %v945 = vadd.f32 0.0, %v944
    %946 = vmatmul.f32.gmra.mxu0 %v858
    %v947 = vpop.f32.mrf.mxu0
    %v948 = vadd.f32 0.0, %v947
    %949 = vmatmul.f32.gmra.mxu0 %v860
    %v950 = vpop.f32.mrf.mxu0
    %v951 = vadd.f32 0.0, %v950
    %952 = vmatmul.f32.gmra.mxu0 %v862
    %v953 = vpop.f32.mrf.mxu0
    %v954 = vadd.f32 0.0, %v953
    %955 = vdwg.mxu0
    %v956 = vadd.f32 %v737, %v882
    %v957 = vadd.f32 %v738, %v885
    %v958 = vadd.f32 %v739, %v888
    %v959 = vadd.f32 %v740, %v891
    %v960 = vadd.f32 %v741, %v894
    %v961 = vadd.f32 %v742, %v897
    %v962 = vadd.f32 %v743, %v900
    %v963 = vadd.f32 %v744, %v903
    %v964 = vadd.f32 %v745, %v906
    %v965 = vadd.f32 %v746, %v909
    %v966 = vadd.f32 %v747, %v912
    %v967 = vadd.f32 %v748, %v915
    %v968 = vadd.f32 %v749, %v918
    %v969 = vadd.f32 %v750, %v921
    %v970 = vadd.f32 %v751, %v924
    %v971 = vadd.f32 %v752, %v927
    %v972 = vadd.f32 %v753, %v930
    %v973 = vadd.f32 %v754, %v933
    %v974 = vadd.f32 %v755, %v936
    %v975 = vadd.f32 %v756, %v939
    %v976 = vadd.f32 %v757, %v942
    %v977 = vadd.f32 %v758, %v945
    %v978 = vadd.f32 %v759, %v948
    %v979 = vadd.f32 %v760, %v951
    %v980 = vadd.f32 %v761, %v954
    %v981 = vld [vmem:[%s2] sm:$0x1]
    %v983 = vperm.slane %v981, 0
    %v985 = vadd.f32 %v956, %v983
    %v986 = vadd.f32 %v957, %v983
    %v987 = vadd.f32 %v958, %v983
    %v988 = vadd.f32 %v959, %v983
    %v989 = vadd.f32 %v960, %v983
    %v990 = vadd.f32 %v961, %v983
    %v991 = vadd.f32 %v962, %v983
    %v992 = vadd.f32 %v963, %v983
    %v993 = vadd.f32 %v964, %v983
    %v994 = vadd.f32 %v965, %v983
    %v995 = vadd.f32 %v966, %v983
    %v996 = vadd.f32 %v967, %v983
    %v997 = vadd.f32 %v968, %v983
    %v998 = vadd.f32 %v969, %v983
    %v999 = vadd.f32 %v970, %v983
    %v1000 = vadd.f32 %v971, %v983
    %v1001 = vadd.f32 %v972, %v983
    %v1002 = vadd.f32 %v973, %v983
    %v1003 = vadd.f32 %v974, %v983
    %v1004 = vadd.f32 %v975, %v983
    %v1005 = vadd.f32 %v976, %v983
    %v1006 = vadd.f32 %v977, %v983
    %v1007 = vadd.f32 %v978, %v983
    %v1008 = vadd.f32 %v979, %v983
    %v1009 = vadd.f32 %v980, %v983
    %v1010 = vmax.f32 %v985, 0.0
    %v1011 = vmax.f32 %v986, 0.0
    %v1012 = vmax.f32 %v987, 0.0
    %v1013 = vmax.f32 %v988, 0.0
    %v1014 = vmax.f32 %v989, 0.0
    %v1015 = vmax.f32 %v990, 0.0
    %v1016 = vmax.f32 %v991, 0.0
    %v1017 = vmax.f32 %v992, 0.0
    %v1018 = vmax.f32 %v993, 0.0
    %v1019 = vmax.f32 %v994, 0.0
    %v1020 = vmax.f32 %v995, 0.0
    %v1021 = vmax.f32 %v996, 0.0
    %v1022 = vmax.f32 %v997, 0.0
    %v1023 = vmax.f32 %v998, 0.0
    %v1024 = vmax.f32 %v999, 0.0
    %v1025 = vmax.f32 %v1000, 0.0
    %v1026 = vmax.f32 %v1001, 0.0
    %v1027 = vmax.f32 %v1002, 0.0
    %v1028 = vmax.f32 %v1003, 0.0
    %v1029 = vmax.f32 %v1004, 0.0
    %v1030 = vmax.f32 %v1005, 0.0
    %v1031 = vmax.f32 %v1006, 0.0
    %v1032 = vmax.f32 %v1007, 0.0
    %v1033 = vmax.f32 %v1008, 0.0
    %v1034 = vmax.f32 %v1009, 0.0
    %v1035 = vld [vmem:[%s3] sm:$0xff]
    %v1036 = vld [vmem:[%s3 + $0x8] sm:$0xff]
    %v1037 = vld [vmem:[%s3 + $0x10] sm:$0xff]
    %v1038 = vld [vmem:[%s3 + $0x18] sm:$0xff]
    %v1039 = vld [vmem:[%s3 + $0x20] sm:$0xff]
    %v1040 = vld [vmem:[%s3 + $0x28] sm:$0xff]
    %v1041 = vld [vmem:[%s3 + $0x30] sm:$0xff]
    %v1042 = vld [vmem:[%s3 + $0x38] sm:$0xff]
    %v1043 = vld [vmem:[%s3 + $0x40] sm:$0xff]
    %v1044 = vld [vmem:[%s3 + $0x48] sm:$0xff]
    %v1045 = vld [vmem:[%s3 + $0x50] sm:$0xff]
    %v1046 = vld [vmem:[%s3 + $0x58] sm:$0xff]
    %v1047 = vld [vmem:[%s3 + $0x60] sm:$0xff]
    %v1048 = vld [vmem:[%s3 + $0x68] sm:$0xff]
    %v1049 = vld [vmem:[%s3 + $0x70] sm:$0xff]
    %v1050 = vld [vmem:[%s3 + $0x78] sm:$0xff]
    %v1051 = vld [vmem:[%s3 + $0x80] sm:$0xff]
    %v1052 = vld [vmem:[%s3 + $0x88] sm:$0xff]
    %v1053 = vld [vmem:[%s3 + $0x90] sm:$0xff]
    %v1054 = vld [vmem:[%s3 + $0x98] sm:$0xff]
    %v1055 = vld [vmem:[%s3 + $0xa0] sm:$0xff]
    %v1056 = vld [vmem:[%s3 + $0xa8] sm:$0xff]
    %v1057 = vld [vmem:[%s3 + $0xb0] sm:$0xff]
    %v1058 = vld [vmem:[%s3 + $0xb8] sm:$0xff]
    %v1059 = vld [vmem:[%s3 + $0xc0] sm:$0xff]
    %v1060 = vld [vmem:[%s3 + $0xc8] sm:$0xff]
    %v1061 = vld [vmem:[%s3 + $0xd0] sm:$0xff]
    %v1062 = vld [vmem:[%s3 + $0xd8] sm:$0xff]
    %v1063 = vld [vmem:[%s3 + $0xe0] sm:$0xff]
    %v1064 = vld [vmem:[%s3 + $0xe8] sm:$0xff]
    %v1065 = vld [vmem:[%s3 + $0xf0] sm:$0xff]
    %v1066 = vld [vmem:[%s3 + $0xf8] sm:$0xff]
    %v1067 = vld [vmem:[%s3 + $0x100] sm:$0xff]
    %v1068 = vld [vmem:[%s3 + $0x108] sm:$0xff]
    %v1069 = vld [vmem:[%s3 + $0x110] sm:$0xff]
    %v1070 = vld [vmem:[%s3 + $0x118] sm:$0xff]
    %v1071 = vld [vmem:[%s3 + $0x120] sm:$0xff]
    %v1072 = vld [vmem:[%s3 + $0x128] sm:$0xff]
    %v1073 = vld [vmem:[%s3 + $0x130] sm:$0xff]
    %v1074 = vld [vmem:[%s3 + $0x138] sm:$0xff]
    %v1075 = vld [vmem:[%s3 + $0x140] sm:$0xff]
    %v1076 = vld [vmem:[%s3 + $0x148] sm:$0xff]
    %v1077 = vld [vmem:[%s3 + $0x150] sm:$0xff]
    %v1078 = vld [vmem:[%s3 + $0x158] sm:$0xff]
    %v1079 = vld [vmem:[%s3 + $0x160] sm:$0xff]
    %v1080 = vld [vmem:[%s3 + $0x168] sm:$0xff]
    %v1081 = vld [vmem:[%s3 + $0x170] sm:$0xff]
    %v1082 = vld [vmem:[%s3 + $0x178] sm:$0xff]
    %v1083 = vld [vmem:[%s3 + $0x180] sm:$0xff]
    %v1084 = vld [vmem:[%s3 + $0x188] sm:$0xff]
    %v1085 = vld [vmem:[%s3 + $0x190] sm:$0xff]
    %v1086 = vld [vmem:[%s3 + $0x198] sm:$0xff]
    %v1087 = vld [vmem:[%s3 + $0x1a0] sm:$0xff]
    %v1088 = vld [vmem:[%s3 + $0x1a8] sm:$0xff]
    %v1089 = vld [vmem:[%s3 + $0x1b0] sm:$0xff]
    %v1090 = vld [vmem:[%s3 + $0x1b8] sm:$0xff]
    %v1091 = vld [vmem:[%s3 + $0x1c0] sm:$0xff]
    %v1092 = vld [vmem:[%s3 + $0x1c8] sm:$0xff]
    %v1093 = vld [vmem:[%s3 + $0x1d0] sm:$0xff]
    %v1094 = vld [vmem:[%s3 + $0x1d8] sm:$0xff]
    %v1095 = vld [vmem:[%s3 + $0x1e0] sm:$0xff]
    %v1096 = vld [vmem:[%s3 + $0x1e8] sm:$0xff]
    %v1097 = vld [vmem:[%s3 + $0x1f0] sm:$0xff]
    %v1098 = vld [vmem:[%s3 + $0x1f8] sm:$0xff]
    %v1100 = vrot.slane %v1010, 2
    %v1103 = vrot.slane %v1011, 4
    %v1105 = vrot.slane %v1011, 6
    %v1108 = vrot.slane %v1015, 2
    %v1111 = vrot.slane %v1016, 4
    %v1113 = vrot.slane %v1016, 6
    %v1116 = vrot.slane %v1020, 2
    %v1119 = vrot.slane %v1021, 4
    %v1121 = vrot.slane %v1021, 6
    %v1124 = vrot.slane %v1025, 2
    %v1127 = vrot.slane %v1026, 4
    %v1129 = vrot.slane %v1026, 6
    %v1131 = vsel %vm133, %v1010, %v1100
    %v1132 = vsel %vm123, %v1131, %v1103
    %v1133 = vsel %vm112, %v1132, %v1105
    %v1134 = vsel %vm133, %v1015, %v1108
    %v1135 = vsel %vm123, %v1134, %v1111
    %v1136 = vsel %vm112, %v1135, %v1113
    %v1137 = vsel %vm133, %v1020, %v1116
    %v1138 = vsel %vm123, %v1137, %v1119
    %v1139 = vsel %vm112, %v1138, %v1121
    %v1140 = vsel %vm133, %v1025, %v1124
    %v1141 = vsel %vm123, %v1140, %v1127
    %v1142 = vsel %vm112, %v1141, %v1129
    %v1143 = vrot.slane %v1010, 4
    %v1145 = vrot.slane %v1015, 4
    %v1147 = vrot.slane %v1020, 4
    %v1149 = vrot.slane %v1025, 4
    %v1151 = vsel %vm133, %v1100, %v1143
    %v1152 = vsel %vm123, %v1151, %v1105
    %v1153 = vsel %vm112, %v1152, %v1011
    %v1154 = vsel %vm133, %v1108, %v1145
    %v1155 = vsel %vm123, %v1154, %v1113
    %v1156 = vsel %vm112, %v1155, %v1016
    %v1157 = vsel %vm133, %v1116, %v1147
    %v1158 = vsel %vm123, %v1157, %v1121
    %v1159 = vsel %vm112, %v1158, %v1021
    %v1160 = vsel %vm133, %v1124, %v1149
    %v1161 = vsel %vm123, %v1160, %v1129
    %v1162 = vsel %vm112, %v1161, %v1026
    %vm1163 = vcmask 261120
    %v1165 = vsel %vm1163, %v1153, 0
    %v1168 = vsel %vm1163, %v1156, 0
    %v1171 = vsel %vm1163, %v1159, 0
    %v1174 = vsel %vm1163, %v1162, 0
    %1176 = vmatpush.msra.mxu0 0.0
    %1177 = vmatpush.msra.mxu0 0.0
    %1178 = vmatpush.msra.mxu0 0.0
    %1179 = vmatpush.msra.mxu0 0.0
    %1180 = vmatpush.msra.mxu0 0.0
    %1181 = vmatpush.msra.mxu0 0.0
    %1182 = vmatpush.msra.mxu0 0.0
    %1183 = vmatpush.msra.mxu0 0.0
    %1184 = vmatpush.msra.mxu0 0.0
    %1185 = vmatpush.msra.mxu0 0.0
    %1186 = vmatpush.msra.mxu0 0.0
    %1187 = vmatpush.msra.mxu0 0.0
    %1188 = vmatpush.msra.mxu0 %v1042
    %1189 = vmatpush.msra.mxu0 %v1041
    %1190 = vmatpush.msra.mxu0 %v1040
    %1191 = vmatpush.msra.mxu0 %v1039
    %1192 = vmatmul.f32.gmra.mxu0 %v1165
    %v1193 = vpop.f32.mrf.mxu0
    %v1194 = vadd.f32 0.0, %v1193
    %1195 = vmatmul.f32.gmra.mxu0 %v1168
    %v1196 = vpop.f32.mrf.mxu0
    %v1197 = vadd.f32 0.0, %v1196
    %1198 = vmatmul.f32.gmra.mxu0 %v1171
    %v1199 = vpop.f32.mrf.mxu0
    %v1200 = vadd.f32 0.0, %v1199
    %1201 = vmatmul.f32.gmra.mxu0 %v1174
    %v1202 = vpop.f32.mrf.mxu0
    %v1203 = vadd.f32 0.0, %v1202
    %1204 = vdwg.mxu0
    %v1206 = vsel %vm1163, %v1133, 0
    %v1209 = vsel %vm1163, %v1136, 0
    %v1212 = vsel %vm1163, %v1139, 0
    %v1215 = vsel %vm1163, %v1142, 0
    %1217 = vmatpush.msra.mxu0 0.0
    %1218 = vmatpush.msra.mxu0 0.0
    %1219 = vmatpush.msra.mxu0 0.0
    %1220 = vmatpush.msra.mxu0 0.0
    %1221 = vmatpush.msra.mxu0 0.0
    %1222 = vmatpush.msra.mxu0 0.0
    %1223 = vmatpush.msra.mxu0 0.0
    %1224 = vmatpush.msra.mxu0 0.0
    %1225 = vmatpush.msra.mxu0 0.0
    %1226 = vmatpush.msra.mxu0 0.0
    %1227 = vmatpush.msra.mxu0 0.0
    %1228 = vmatpush.msra.mxu0 0.0
    %1229 = vmatpush.msra.mxu0 %v1038
    %1230 = vmatpush.msra.mxu0 %v1037
    %1231 = vmatpush.msra.mxu0 %v1036
    %1232 = vmatpush.msra.mxu0 %v1035
    %1233 = vmatmul.f32.gmra.mxu0 %v1206
    %v1234 = vpop.f32.mrf.mxu0
    %v1235 = vadd.f32 %v1194, %v1234
    %1236 = vmatmul.f32.gmra.mxu0 %v1209
    %v1237 = vpop.f32.mrf.mxu0
    %v1238 = vadd.f32 %v1197, %v1237
    %1239 = vmatmul.f32.gmra.mxu0 %v1212
    %v1240 = vpop.f32.mrf.mxu0
    %v1241 = vadd.f32 %v1200, %v1240
    %1242 = vmatmul.f32.gmra.mxu0 %v1215
    %v1243 = vpop.f32.mrf.mxu0
    %v1244 = vadd.f32 %v1203, %v1243
    %1245 = vdwg.mxu0
    %v1247 = vrot.slane %v1012, 2
    %v1250 = vrot.slane %v1017, 2
    %v1253 = vrot.slane %v1022, 2
    %v1256 = vrot.slane %v1027, 2
    %v1258 = vsel %vm133, %v1143, %v1105
    %v1259 = vsel %vm123, %v1258, %v1011
    %v1260 = vsel %vm112, %v1259, %v1247
    %v1261 = vsel %vm133, %v1145, %v1113
    %v1262 = vsel %vm123, %v1261, %v1016
    %v1263 = vsel %vm112, %v1262, %v1250
    %v1264 = vsel %vm133, %v1147, %v1121
    %v1265 = vsel %vm123, %v1264, %v1021
    %v1266 = vsel %vm112, %v1265, %v1253
    %v1267 = vsel %vm133, %v1149, %v1129
    %v1268 = vsel %vm123, %v1267, %v1026
    %v1269 = vsel %vm112, %v1268, %v1256
    %v1271 = vsel %vm1163, %v1260, 0
    %v1274 = vsel %vm1163, %v1263, 0
    %v1277 = vsel %vm1163, %v1266, 0
    %v1280 = vsel %vm1163, %v1269, 0
    %1282 = vmatpush.msra.mxu0 0.0
    %1283 = vmatpush.msra.mxu0 0.0
    %1284 = vmatpush.msra.mxu0 0.0
    %1285 = vmatpush.msra.mxu0 0.0
    %1286 = vmatpush.msra.mxu0 0.0
    %1287 = vmatpush.msra.mxu0 0.0
    %1288 = vmatpush.msra.mxu0 0.0
    %1289 = vmatpush.msra.mxu0 0.0
    %1290 = vmatpush.msra.mxu0 0.0
    %1291 = vmatpush.msra.mxu0 0.0
    %1292 = vmatpush.msra.mxu0 0.0
    %1293 = vmatpush.msra.mxu0 0.0
    %1294 = vmatpush.msra.mxu0 %v1046
    %1295 = vmatpush.msra.mxu0 %v1045
    %1296 = vmatpush.msra.mxu0 %v1044
    %1297 = vmatpush.msra.mxu0 %v1043
    %1298 = vmatmul.f32.gmra.mxu0 %v1271
    %v1299 = vpop.f32.mrf.mxu0
    %v1300 = vadd.f32 0.0, %v1299
    %1301 = vmatmul.f32.gmra.mxu0 %v1274
    %v1302 = vpop.f32.mrf.mxu0
    %v1303 = vadd.f32 0.0, %v1302
    %1304 = vmatmul.f32.gmra.mxu0 %v1277
    %v1305 = vpop.f32.mrf.mxu0
    %v1306 = vadd.f32 0.0, %v1305
    %1307 = vmatmul.f32.gmra.mxu0 %v1280
    %v1308 = vpop.f32.mrf.mxu0
    %v1309 = vadd.f32 0.0, %v1308
    %1310 = vdwg.mxu0
    %v1311 = vadd.f32 %v1235, %v1300
    %v1312 = vadd.f32 %v1238, %v1303
    %v1313 = vadd.f32 %v1241, %v1306
    %v1314 = vadd.f32 %v1244, %v1309
    %v1315 = vrot.slane %v1010, 6
    %v1317 = vrot.slane %v1011, 2
    %v1319 = vrot.slane %v1012, 4
    %v1321 = vrot.slane %v1015, 6
    %v1323 = vrot.slane %v1016, 2
    %v1325 = vrot.slane %v1017, 4
    %v1327 = vrot.slane %v1020, 6
    %v1329 = vrot.slane %v1021, 2
    %v1331 = vrot.slane %v1022, 4
    %v1333 = vrot.slane %v1025, 6
    %v1335 = vrot.slane %v1026, 2
    %v1337 = vrot.slane %v1027, 4
    %v1339 = vsel %vm133, %v1315, %v1011
    %v1340 = vsel %vm123, %v1339, %v1317
    %v1341 = vsel %vm112, %v1340, %v1319
    %v1342 = vsel %vm133, %v1321, %v1016
    %v1343 = vsel %vm123, %v1342, %v1323
    %v1344 = vsel %vm112, %v1343, %v1325
    %v1345 = vsel %vm133, %v1327, %v1021
    %v1346 = vsel %vm123, %v1345, %v1329
    %v1347 = vsel %vm112, %v1346, %v1331
    %v1348 = vsel %vm133, %v1333, %v1026
    %v1349 = vsel %vm123, %v1348, %v1335
    %v1350 = vsel %vm112, %v1349, %v1337
    %v1352 = vsel %vm1163, %v1341, 0
    %v1355 = vsel %vm1163, %v1344, 0
    %v1358 = vsel %vm1163, %v1347, 0
    %v1361 = vsel %vm1163, %v1350, 0
    %1363 = vmatpush.msra.mxu0 0.0
    %1364 = vmatpush.msra.mxu0 0.0
    %1365 = vmatpush.msra.mxu0 0.0
    %1366 = vmatpush.msra.mxu0 0.0
    %1367 = vmatpush.msra.mxu0 0.0
    %1368 = vmatpush.msra.mxu0 0.0
    %1369 = vmatpush.msra.mxu0 0.0
    %1370 = vmatpush.msra.mxu0 0.0
    %1371 = vmatpush.msra.mxu0 0.0
    %1372 = vmatpush.msra.mxu0 0.0
    %1373 = vmatpush.msra.mxu0 0.0
    %1374 = vmatpush.msra.mxu0 0.0
    %1375 = vmatpush.msra.mxu0 %v1050
    %1376 = vmatpush.msra.mxu0 %v1049
    %1377 = vmatpush.msra.mxu0 %v1048
    %1378 = vmatpush.msra.mxu0 %v1047
    %1379 = vmatmul.f32.gmra.mxu0 %v1352
    %v1380 = vpop.f32.mrf.mxu0
    %v1381 = vadd.f32 0.0, %v1380
    %1382 = vmatmul.f32.gmra.mxu0 %v1355
    %v1383 = vpop.f32.mrf.mxu0
    %v1384 = vadd.f32 0.0, %v1383
    %1385 = vmatmul.f32.gmra.mxu0 %v1358
    %v1386 = vpop.f32.mrf.mxu0
    %v1387 = vadd.f32 0.0, %v1386
    %1388 = vmatmul.f32.gmra.mxu0 %v1361
    %v1389 = vpop.f32.mrf.mxu0
    %v1390 = vadd.f32 0.0, %v1389
    %1391 = vdwg.mxu0
    %v1392 = vadd.f32 %v1311, %v1381
    %v1393 = vadd.f32 %v1312, %v1384
    %v1394 = vadd.f32 %v1313, %v1387
    %v1395 = vadd.f32 %v1314, %v1390
    %v1397 = vrot.slane %v1013, 6
    %v1400 = vrot.slane %v1014, 2
    %v1403 = vrot.slane %v1018, 6
    %v1406 = vrot.slane %v1019, 2
    %v1409 = vrot.slane %v1023, 6
    %v1412 = vrot.slane %v1024, 2
    %v1415 = vrot.slane %v1028, 6
    %v1418 = vrot.slane %v1029, 2
    %v1420 = vsel %vm133, %v1319, %v1397
    %v1421 = vsel %vm123, %v1420, %v1013
    %v1422 = vsel %vm112, %v1421, %v1400
    %v1423 = vsel %vm133, %v1325, %v1403
    %v1424 = vsel %vm123, %v1423, %v1018
    %v1425 = vsel %vm112, %v1424, %v1406
    %v1426 = vsel %vm133, %v1331, %v1409
    %v1427 = vsel %vm123, %v1426, %v1023
    %v1428 = vsel %vm112, %v1427, %v1412
    %v1429 = vsel %vm133, %v1337, %v1415
    %v1430 = vsel %vm123, %v1429, %v1028
    %v1431 = vsel %vm112, %v1430, %v1418
    %v1433 = vsel %vm1163, %v1422, 0
    %v1436 = vsel %vm1163, %v1425, 0
    %v1439 = vsel %vm1163, %v1428, 0
    %v1442 = vsel %vm1163, %v1431, 0
    %1444 = vmatpush.msra.mxu0 0.0
    %1445 = vmatpush.msra.mxu0 0.0
    %1446 = vmatpush.msra.mxu0 0.0
    %1447 = vmatpush.msra.mxu0 0.0
    %1448 = vmatpush.msra.mxu0 0.0
    %1449 = vmatpush.msra.mxu0 0.0
    %1450 = vmatpush.msra.mxu0 0.0
    %1451 = vmatpush.msra.mxu0 0.0
    %1452 = vmatpush.msra.mxu0 0.0
    %1453 = vmatpush.msra.mxu0 0.0
    %1454 = vmatpush.msra.mxu0 0.0
    %1455 = vmatpush.msra.mxu0 0.0
    %1456 = vmatpush.msra.mxu0 %v1054
    %1457 = vmatpush.msra.mxu0 %v1053
    %1458 = vmatpush.msra.mxu0 %v1052
    %1459 = vmatpush.msra.mxu0 %v1051
    %1460 = vmatmul.f32.gmra.mxu0 %v1433
    %v1461 = vpop.f32.mrf.mxu0
    %v1462 = vadd.f32 0.0, %v1461
    %1463 = vmatmul.f32.gmra.mxu0 %v1436
    %v1464 = vpop.f32.mrf.mxu0
    %v1465 = vadd.f32 0.0, %v1464
    %1466 = vmatmul.f32.gmra.mxu0 %v1439
    %v1467 = vpop.f32.mrf.mxu0
    %v1468 = vadd.f32 0.0, %v1467
    %1469 = vmatmul.f32.gmra.mxu0 %v1442
    %v1470 = vpop.f32.mrf.mxu0
    %v1471 = vadd.f32 0.0, %v1470
    %1472 = vdwg.mxu0
    %v1473 = vadd.f32 %v1392, %v1462
    %v1474 = vadd.f32 %v1393, %v1465
    %v1475 = vadd.f32 %v1394, %v1468
    %v1476 = vadd.f32 %v1395, %v1471
    %v1477 = vrot.slane %v1012, 6
    %v1479 = vrot.slane %v1013, 2
    %v1481 = vrot.slane %v1014, 4
    %v1483 = vrot.slane %v1017, 6
    %v1485 = vrot.slane %v1018, 2
    %v1487 = vrot.slane %v1019, 4
    %v1489 = vrot.slane %v1022, 6
    %v1491 = vrot.slane %v1023, 2
    %v1493 = vrot.slane %v1024, 4
    %v1495 = vrot.slane %v1027, 6
    %v1497 = vrot.slane %v1028, 2
    %v1499 = vrot.slane %v1029, 4
    %v1501 = vsel %vm133, %v1477, %v1013
    %v1502 = vsel %vm123, %v1501, %v1479
    %v1503 = vsel %vm112, %v1502, %v1481
    %v1504 = vsel %vm133, %v1483, %v1018
    %v1505 = vsel %vm123, %v1504, %v1485
    %v1506 = vsel %vm112, %v1505, %v1487
    %v1507 = vsel %vm133, %v1489, %v1023
    %v1508 = vsel %vm123, %v1507, %v1491
    %v1509 = vsel %vm112, %v1508, %v1493
    %v1510 = vsel %vm133, %v1495, %v1028
    %v1511 = vsel %vm123, %v1510, %v1497
    %v1512 = vsel %vm112, %v1511, %v1499
    %v1514 = vsel %vm1163, %v1503, 0
    %v1517 = vsel %vm1163, %v1506, 0
    %v1520 = vsel %vm1163, %v1509, 0
    %v1523 = vsel %vm1163, %v1512, 0
    %1525 = vmatpush.msra.mxu0 0.0
    %1526 = vmatpush.msra.mxu0 0.0
    %1527 = vmatpush.msra.mxu0 0.0
    %1528 = vmatpush.msra.mxu0 0.0
    %1529 = vmatpush.msra.mxu0 0.0
    %1530 = vmatpush.msra.mxu0 0.0
    %1531 = vmatpush.msra.mxu0 0.0
    %1532 = vmatpush.msra.mxu0 0.0
    %1533 = vmatpush.msra.mxu0 0.0
    %1534 = vmatpush.msra.mxu0 0.0
    %1535 = vmatpush.msra.mxu0 0.0
    %1536 = vmatpush.msra.mxu0 0.0
    %1537 = vmatpush.msra.mxu0 %v1058
    %1538 = vmatpush.msra.mxu0 %v1057
    %1539 = vmatpush.msra.mxu0 %v1056
    %1540 = vmatpush.msra.mxu0 %v1055
    %1541 = vmatmul.f32.gmra.mxu0 %v1514
    %v1542 = vpop.f32.mrf.mxu0
    %v1543 = vadd.f32 0.0, %v1542
    %1544 = vmatmul.f32.gmra.mxu0 %v1517
    %v1545 = vpop.f32.mrf.mxu0
    %v1546 = vadd.f32 0.0, %v1545
    %1547 = vmatmul.f32.gmra.mxu0 %v1520
    %v1548 = vpop.f32.mrf.mxu0
    %v1549 = vadd.f32 0.0, %v1548
    %1550 = vmatmul.f32.gmra.mxu0 %v1523
    %v1551 = vpop.f32.mrf.mxu0
    %v1552 = vadd.f32 0.0, %v1551
    %1553 = vdwg.mxu0
    %v1554 = vadd.f32 %v1473, %v1543
    %v1555 = vadd.f32 %v1474, %v1546
    %v1556 = vadd.f32 %v1475, %v1549
    %v1557 = vadd.f32 %v1476, %v1552
    %v1558 = vrot.slane %v1014, 6
    %v1560 = vrot.slane %v1019, 6
    %v1562 = vrot.slane %v1024, 6
    %v1564 = vrot.slane %v1029, 6
    %v1566 = vsel %vm133, %v1013, %v1479
    %v1567 = vsel %vm123, %v1566, %v1481
    %v1568 = vsel %vm112, %v1567, %v1558
    %v1569 = vsel %vm133, %v1018, %v1485
    %v1570 = vsel %vm123, %v1569, %v1487
    %v1571 = vsel %vm112, %v1570, %v1560
    %v1572 = vsel %vm133, %v1023, %v1491
    %v1573 = vsel %vm123, %v1572, %v1493
    %v1574 = vsel %vm112, %v1573, %v1562
    %v1575 = vsel %vm133, %v1028, %v1497
    %v1576 = vsel %vm123, %v1575, %v1499
    %v1577 = vsel %vm112, %v1576, %v1564
    %v1579 = vsel %vm1163, %v1568, 0
    %v1582 = vsel %vm1163, %v1571, 0
    %v1585 = vsel %vm1163, %v1574, 0
    %v1588 = vsel %vm1163, %v1577, 0
    %1590 = vmatpush.msra.mxu0 0.0
    %1591 = vmatpush.msra.mxu0 0.0
    %1592 = vmatpush.msra.mxu0 0.0
    %1593 = vmatpush.msra.mxu0 0.0
    %1594 = vmatpush.msra.mxu0 0.0
    %1595 = vmatpush.msra.mxu0 0.0
    %1596 = vmatpush.msra.mxu0 0.0
    %1597 = vmatpush.msra.mxu0 0.0
    %1598 = vmatpush.msra.mxu0 0.0
    %1599 = vmatpush.msra.mxu0 0.0
    %1600 = vmatpush.msra.mxu0 0.0
    %1601 = vmatpush.msra.mxu0 0.0
    %1602 = vmatpush.msra.mxu0 %v1062
    %1603 = vmatpush.msra.mxu0 %v1061
    %1604 = vmatpush.msra.mxu0 %v1060
    %1605 = vmatpush.msra.mxu0 %v1059
    %1606 = vmatmul.f32.gmra.mxu0 %v1579
    %v1607 = vpop.f32.mrf.mxu0
    %v1608 = vadd.f32 0.0, %v1607
    %1609 = vmatmul.f32.gmra.mxu0 %v1582
    %v1610 = vpop.f32.mrf.mxu0
    %v1611 = vadd.f32 0.0, %v1610
    %1612 = vmatmul.f32.gmra.mxu0 %v1585
    %v1613 = vpop.f32.mrf.mxu0
    %v1614 = vadd.f32 0.0, %v1613
    %1615 = vmatmul.f32.gmra.mxu0 %v1588
    %v1616 = vpop.f32.mrf.mxu0
    %v1617 = vadd.f32 0.0, %v1616
    %1618 = vdwg.mxu0
    %v1619 = vadd.f32 %v1554, %v1608
    %v1620 = vadd.f32 %v1555, %v1611
    %v1621 = vadd.f32 %v1556, %v1614
    %v1622 = vadd.f32 %v1557, %v1617
    %v1623 = vrot.slane %v1013, 4
    %v1625 = vrot.slane %v1018, 4
    %v1627 = vrot.slane %v1023, 4
    %v1629 = vrot.slane %v1028, 4
    %v1631 = vsel %vm133, %v1479, %v1623
    %v1632 = vsel %vm123, %v1631, %v1558
    %v1633 = vsel %vm112, %v1632, %v1014
    %v1634 = vsel %vm133, %v1485, %v1625
    %v1635 = vsel %vm123, %v1634, %v1560
    %v1636 = vsel %vm112, %v1635, %v1019
    %v1637 = vsel %vm133, %v1491, %v1627
    %v1638 = vsel %vm123, %v1637, %v1562
    %v1639 = vsel %vm112, %v1638, %v1024
    %v1640 = vsel %vm133, %v1497, %v1629
    %v1641 = vsel %vm123, %v1640, %v1564
    %v1642 = vsel %vm112, %v1641, %v1029
    %v1644 = vsel %vm1163, %v1633, 0
    %v1647 = vsel %vm1163, %v1636, 0
    %v1650 = vsel %vm1163, %v1639, 0
    %v1653 = vsel %vm1163, %v1642, 0
    %1655 = vmatpush.msra.mxu0 0.0
    %1656 = vmatpush.msra.mxu0 0.0
    %1657 = vmatpush.msra.mxu0 0.0
    %1658 = vmatpush.msra.mxu0 0.0
    %1659 = vmatpush.msra.mxu0 0.0
    %1660 = vmatpush.msra.mxu0 0.0
    %1661 = vmatpush.msra.mxu0 0.0
    %1662 = vmatpush.msra.mxu0 0.0
    %1663 = vmatpush.msra.mxu0 0.0
    %1664 = vmatpush.msra.mxu0 0.0
    %1665 = vmatpush.msra.mxu0 0.0
    %1666 = vmatpush.msra.mxu0 0.0
    %1667 = vmatpush.msra.mxu0 %v1066
    %1668 = vmatpush.msra.mxu0 %v1065
    %1669 = vmatpush.msra.mxu0 %v1064
    %1670 = vmatpush.msra.mxu0 %v1063
    %1671 = vmatmul.f32.gmra.mxu0 %v1644
    %v1672 = vpop.f32.mrf.mxu0
    %v1673 = vadd.f32 0.0, %v1672
    %1674 = vmatmul.f32.gmra.mxu0 %v1647
    %v1675 = vpop.f32.mrf.mxu0
    %v1676 = vadd.f32 0.0, %v1675
    %1677 = vmatmul.f32.gmra.mxu0 %v1650
    %v1678 = vpop.f32.mrf.mxu0
    %v1679 = vadd.f32 0.0, %v1678
    %1680 = vmatmul.f32.gmra.mxu0 %v1653
    %v1681 = vpop.f32.mrf.mxu0
    %v1682 = vadd.f32 0.0, %v1681
    %1683 = vdwg.mxu0
    %v1684 = vadd.f32 %v1619, %v1673
    %v1685 = vadd.f32 %v1620, %v1676
    %v1686 = vadd.f32 %v1621, %v1679
    %v1687 = vadd.f32 %v1622, %v1682
    %v1689 = vrot.slane %v1030, 2
    %v1692 = vrot.slane %v1031, 4
    %v1694 = vrot.slane %v1031, 6
    %v1696 = vsel %vm133, %v1030, %v1689
    %v1697 = vsel %vm123, %v1696, %v1692
    %v1698 = vsel %vm112, %v1697, %v1694
    %v1700 = vsel %vm1163, %v1698, 0
    %1702 = vmatpush.msra.mxu0 0.0
    %1703 = vmatpush.msra.mxu0 0.0
    %1704 = vmatpush.msra.mxu0 0.0
    %1705 = vmatpush.msra.mxu0 0.0
    %1706 = vmatpush.msra.mxu0 0.0
    %1707 = vmatpush.msra.mxu0 0.0
    %1708 = vmatpush.msra.mxu0 0.0
    %1709 = vmatpush.msra.mxu0 0.0
    %1710 = vmatpush.msra.mxu0 0.0
    %1711 = vmatpush.msra.mxu0 0.0
    %1712 = vmatpush.msra.mxu0 0.0
    %1713 = vmatpush.msra.mxu0 0.0
    %1714 = vmatpush.msra.mxu0 %v1070
    %1715 = vmatpush.msra.mxu0 %v1069
    %1716 = vmatpush.msra.mxu0 %v1068
    %1717 = vmatpush.msra.mxu0 %v1067
    %1718 = vmatmul.f32.gmra.mxu0 %v1209
    %v1719 = vpop.f32.mrf.mxu0
    %v1720 = vadd.f32 0.0, %v1719
    %1721 = vmatmul.f32.gmra.mxu0 %v1212
    %v1722 = vpop.f32.mrf.mxu0
    %v1723 = vadd.f32 0.0, %v1722
    %1724 = vmatmul.f32.gmra.mxu0 %v1215
    %v1725 = vpop.f32.mrf.mxu0
    %v1726 = vadd.f32 0.0, %v1725
    %1727 = vmatmul.f32.gmra.mxu0 %v1700
    %v1728 = vpop.f32.mrf.mxu0
    %v1729 = vadd.f32 0.0, %v1728
    %1730 = vdwg.mxu0
    %v1731 = vadd.f32 %v1684, %v1720
    %v1732 = vadd.f32 %v1685, %v1723
    %v1733 = vadd.f32 %v1686, %v1726
    %v1734 = vadd.f32 %v1687, %v1729
    %v1735 = vrot.slane %v1030, 4
    %v1737 = vsel %vm133, %v1689, %v1735
    %v1738 = vsel %vm123, %v1737, %v1694
    %v1739 = vsel %vm112, %v1738, %v1031
    %v1741 = vsel %vm1163, %v1739, 0
    %1743 = vmatpush.msra.mxu0 0.0
    %1744 = vmatpush.msra.mxu0 0.0
    %1745 = vmatpush.msra.mxu0 0.0
    %1746 = vmatpush.msra.mxu0 0.0
    %1747 = vmatpush.msra.mxu0 0.0
    %1748 = vmatpush.msra.mxu0 0.0
    %1749 = vmatpush.msra.mxu0 0.0
    %1750 = vmatpush.msra.mxu0 0.0
    %1751 = vmatpush.msra.mxu0 0.0
    %1752 = vmatpush.msra.mxu0 0.0
    %1753 = vmatpush.msra.mxu0 0.0
    %1754 = vmatpush.msra.mxu0 0.0
    %1755 = vmatpush.msra.mxu0 %v1074
    %1756 = vmatpush.msra.mxu0 %v1073
    %1757 = vmatpush.msra.mxu0 %v1072
    %1758 = vmatpush.msra.mxu0 %v1071
    %1759 = vmatmul.f32.gmra.mxu0 %v1168
    %v1760 = vpop.f32.mrf.mxu0
    %v1761 = vadd.f32 0.0, %v1760
    %1762 = vmatmul.f32.gmra.mxu0 %v1171
    %v1763 = vpop.f32.mrf.mxu0
    %v1764 = vadd.f32 0.0, %v1763
    %1765 = vmatmul.f32.gmra.mxu0 %v1174
    %v1766 = vpop.f32.mrf.mxu0
    %v1767 = vadd.f32 0.0, %v1766
    %1768 = vmatmul.f32.gmra.mxu0 %v1741
    %v1769 = vpop.f32.mrf.mxu0
    %v1770 = vadd.f32 0.0, %v1769
    %1771 = vdwg.mxu0
    %v1772 = vadd.f32 %v1731, %v1761
    %v1773 = vadd.f32 %v1732, %v1764
    %v1774 = vadd.f32 %v1733, %v1767
    %v1775 = vadd.f32 %v1734, %v1770
    %v1777 = vrot.slane %v1032, 2
    %v1779 = vsel %vm133, %v1735, %v1694
    %v1780 = vsel %vm123, %v1779, %v1031
    %v1781 = vsel %vm112, %v1780, %v1777
    %v1783 = vsel %vm1163, %v1781, 0
    %1785 = vmatpush.msra.mxu0 0.0
    %1786 = vmatpush.msra.mxu0 0.0
    %1787 = vmatpush.msra.mxu0 0.0
    %1788 = vmatpush.msra.mxu0 0.0
    %1789 = vmatpush.msra.mxu0 0.0
    %1790 = vmatpush.msra.mxu0 0.0
    %1791 = vmatpush.msra.mxu0 0.0
    %1792 = vmatpush.msra.mxu0 0.0
    %1793 = vmatpush.msra.mxu0 0.0
    %1794 = vmatpush.msra.mxu0 0.0
    %1795 = vmatpush.msra.mxu0 0.0
    %1796 = vmatpush.msra.mxu0 0.0
    %1797 = vmatpush.msra.mxu0 %v1078
    %1798 = vmatpush.msra.mxu0 %v1077
    %1799 = vmatpush.msra.mxu0 %v1076
    %1800 = vmatpush.msra.mxu0 %v1075
    %1801 = vmatmul.f32.gmra.mxu0 %v1274
    %v1802 = vpop.f32.mrf.mxu0
    %v1803 = vadd.f32 0.0, %v1802
    %1804 = vmatmul.f32.gmra.mxu0 %v1277
    %v1805 = vpop.f32.mrf.mxu0
    %v1806 = vadd.f32 0.0, %v1805
    %1807 = vmatmul.f32.gmra.mxu0 %v1280
    %v1808 = vpop.f32.mrf.mxu0
    %v1809 = vadd.f32 0.0, %v1808
    %1810 = vmatmul.f32.gmra.mxu0 %v1783
    %v1811 = vpop.f32.mrf.mxu0
    %v1812 = vadd.f32 0.0, %v1811
    %1813 = vdwg.mxu0
    %v1814 = vadd.f32 %v1772, %v1803
    %v1815 = vadd.f32 %v1773, %v1806
    %v1816 = vadd.f32 %v1774, %v1809
    %v1817 = vadd.f32 %v1775, %v1812
    %v1818 = vrot.slane %v1030, 6
    %v1820 = vrot.slane %v1031, 2
    %v1822 = vrot.slane %v1032, 4
    %v1824 = vsel %vm133, %v1818, %v1031
    %v1825 = vsel %vm123, %v1824, %v1820
    %v1826 = vsel %vm112, %v1825, %v1822
    %v1828 = vsel %vm1163, %v1826, 0
    %1830 = vmatpush.msra.mxu0 0.0
    %1831 = vmatpush.msra.mxu0 0.0
    %1832 = vmatpush.msra.mxu0 0.0
    %1833 = vmatpush.msra.mxu0 0.0
    %1834 = vmatpush.msra.mxu0 0.0
    %1835 = vmatpush.msra.mxu0 0.0
    %1836 = vmatpush.msra.mxu0 0.0
    %1837 = vmatpush.msra.mxu0 0.0
    %1838 = vmatpush.msra.mxu0 0.0
    %1839 = vmatpush.msra.mxu0 0.0
    %1840 = vmatpush.msra.mxu0 0.0
    %1841 = vmatpush.msra.mxu0 0.0
    %1842 = vmatpush.msra.mxu0 %v1082
    %1843 = vmatpush.msra.mxu0 %v1081
    %1844 = vmatpush.msra.mxu0 %v1080
    %1845 = vmatpush.msra.mxu0 %v1079
    %1846 = vmatmul.f32.gmra.mxu0 %v1355
    %v1847 = vpop.f32.mrf.mxu0
    %v1848 = vadd.f32 0.0, %v1847
    %1849 = vmatmul.f32.gmra.mxu0 %v1358
    %v1850 = vpop.f32.mrf.mxu0
    %v1851 = vadd.f32 0.0, %v1850
    %1852 = vmatmul.f32.gmra.mxu0 %v1361
    %v1853 = vpop.f32.mrf.mxu0
    %v1854 = vadd.f32 0.0, %v1853
    %1855 = vmatmul.f32.gmra.mxu0 %v1828
    %v1856 = vpop.f32.mrf.mxu0
    %v1857 = vadd.f32 0.0, %v1856
    %1858 = vdwg.mxu0
    %v1859 = vadd.f32 %v1814, %v1848
    %v1860 = vadd.f32 %v1815, %v1851
    %v1861 = vadd.f32 %v1816, %v1854
    %v1862 = vadd.f32 %v1817, %v1857
    %v1864 = vrot.slane %v1033, 6
    %v1867 = vrot.slane %v1034, 2
    %v1869 = vsel %vm133, %v1822, %v1864
    %v1870 = vsel %vm123, %v1869, %v1033
    %v1871 = vsel %vm112, %v1870, %v1867
    %v1873 = vsel %vm1163, %v1871, 0
    %1875 = vmatpush.msra.mxu0 0.0
    %1876 = vmatpush.msra.mxu0 0.0
    %1877 = vmatpush.msra.mxu0 0.0
    %1878 = vmatpush.msra.mxu0 0.0
    %1879 = vmatpush.msra.mxu0 0.0
    %1880 = vmatpush.msra.mxu0 0.0
    %1881 = vmatpush.msra.mxu0 0.0
    %1882 = vmatpush.msra.mxu0 0.0
    %1883 = vmatpush.msra.mxu0 0.0
    %1884 = vmatpush.msra.mxu0 0.0
    %1885 = vmatpush.msra.mxu0 0.0
    %1886 = vmatpush.msra.mxu0 0.0
    %1887 = vmatpush.msra.mxu0 %v1086
    %1888 = vmatpush.msra.mxu0 %v1085
    %1889 = vmatpush.msra.mxu0 %v1084
    %1890 = vmatpush.msra.mxu0 %v1083
    %1891 = vmatmul.f32.gmra.mxu0 %v1436
    %v1892 = vpop.f32.mrf.mxu0
    %v1893 = vadd.f32 0.0, %v1892
    %1894 = vmatmul.f32.gmra.mxu0 %v1439
    %v1895 = vpop.f32.mrf.mxu0
    %v1896 = vadd.f32 0.0, %v1895
    %1897 = vmatmul.f32.gmra.mxu0 %v1442
    %v1898 = vpop.f32.mrf.mxu0
    %v1899 = vadd.f32 0.0, %v1898
    %1900 = vmatmul.f32.gmra.mxu0 %v1873
    %v1901 = vpop.f32.mrf.mxu0
    %v1902 = vadd.f32 0.0, %v1901
    %1903 = vdwg.mxu0
    %v1904 = vadd.f32 %v1859, %v1893
    %v1905 = vadd.f32 %v1860, %v1896
    %v1906 = vadd.f32 %v1861, %v1899
    %v1907 = vadd.f32 %v1862, %v1902
    %v1908 = vrot.slane %v1032, 6
    %v1910 = vrot.slane %v1033, 2
    %v1912 = vrot.slane %v1034, 4
    %v1914 = vsel %vm133, %v1908, %v1033
    %v1915 = vsel %vm123, %v1914, %v1910
    %v1916 = vsel %vm112, %v1915, %v1912
    %v1918 = vsel %vm1163, %v1916, 0
    %1920 = vmatpush.msra.mxu0 0.0
    %1921 = vmatpush.msra.mxu0 0.0
    %1922 = vmatpush.msra.mxu0 0.0
    %1923 = vmatpush.msra.mxu0 0.0
    %1924 = vmatpush.msra.mxu0 0.0
    %1925 = vmatpush.msra.mxu0 0.0
    %1926 = vmatpush.msra.mxu0 0.0
    %1927 = vmatpush.msra.mxu0 0.0
    %1928 = vmatpush.msra.mxu0 0.0
    %1929 = vmatpush.msra.mxu0 0.0
    %1930 = vmatpush.msra.mxu0 0.0
    %1931 = vmatpush.msra.mxu0 0.0
    %1932 = vmatpush.msra.mxu0 %v1090
    %1933 = vmatpush.msra.mxu0 %v1089
    %1934 = vmatpush.msra.mxu0 %v1088
    %1935 = vmatpush.msra.mxu0 %v1087
    %1936 = vmatmul.f32.gmra.mxu0 %v1517
    %v1937 = vpop.f32.mrf.mxu0
    %v1938 = vadd.f32 0.0, %v1937
    %1939 = vmatmul.f32.gmra.mxu0 %v1520
    %v1940 = vpop.f32.mrf.mxu0
    %v1941 = vadd.f32 0.0, %v1940
    %1942 = vmatmul.f32.gmra.mxu0 %v1523
    %v1943 = vpop.f32.mrf.mxu0
    %v1944 = vadd.f32 0.0, %v1943
    %1945 = vmatmul.f32.gmra.mxu0 %v1918
    %v1946 = vpop.f32.mrf.mxu0
    %v1947 = vadd.f32 0.0, %v1946
    %1948 = vdwg.mxu0
    %v1949 = vadd.f32 %v1904, %v1938
    %v1950 = vadd.f32 %v1905, %v1941
    %v1951 = vadd.f32 %v1906, %v1944
    %v1952 = vadd.f32 %v1907, %v1947
    %v1953 = vrot.slane %v1034, 6
    %v1955 = vsel %vm133, %v1033, %v1910
    %v1956 = vsel %vm123, %v1955, %v1912
    %v1957 = vsel %vm112, %v1956, %v1953
    %v1959 = vsel %vm1163, %v1957, 0
    %1961 = vmatpush.msra.mxu0 0.0
    %1962 = vmatpush.msra.mxu0 0.0
    %1963 = vmatpush.msra.mxu0 0.0
    %1964 = vmatpush.msra.mxu0 0.0
    %1965 = vmatpush.msra.mxu0 0.0
    %1966 = vmatpush.msra.mxu0 0.0
    %1967 = vmatpush.msra.mxu0 0.0
    %1968 = vmatpush.msra.mxu0 0.0
    %1969 = vmatpush.msra.mxu0 0.0
    %1970 = vmatpush.msra.mxu0 0.0
    %1971 = vmatpush.msra.mxu0 0.0
    %1972 = vmatpush.msra.mxu0 0.0
    %1973 = vmatpush.msra.mxu0 %v1094
    %1974 = vmatpush.msra.mxu0 %v1093
    %1975 = vmatpush.msra.mxu0 %v1092
    %1976 = vmatpush.msra.mxu0 %v1091
    %1977 = vmatmul.f32.gmra.mxu0 %v1582
    %v1978 = vpop.f32.mrf.mxu0
    %v1979 = vadd.f32 0.0, %v1978
    %1980 = vmatmul.f32.gmra.mxu0 %v1585
    %v1981 = vpop.f32.mrf.mxu0
    %v1982 = vadd.f32 0.0, %v1981
    %1983 = vmatmul.f32.gmra.mxu0 %v1588
    %v1984 = vpop.f32.mrf.mxu0
    %v1985 = vadd.f32 0.0, %v1984
    %1986 = vmatmul.f32.gmra.mxu0 %v1959
    %v1987 = vpop.f32.mrf.mxu0
    %v1988 = vadd.f32 0.0, %v1987
    %1989 = vdwg.mxu0
    %v1990 = vadd.f32 %v1949, %v1979
    %v1991 = vadd.f32 %v1950, %v1982
    %v1992 = vadd.f32 %v1951, %v1985
    %v1993 = vadd.f32 %v1952, %v1988
    %v1994 = vrot.slane %v1033, 4
    %v1996 = vsel %vm133, %v1910, %v1994
    %v1997 = vsel %vm123, %v1996, %v1953
    %v1998 = vsel %vm112, %v1997, %v1034
    %v2000 = vsel %vm1163, %v1998, 0
    %2002 = vmatpush.msra.mxu0 0.0
    %2003 = vmatpush.msra.mxu0 0.0
    %2004 = vmatpush.msra.mxu0 0.0
    %2005 = vmatpush.msra.mxu0 0.0
    %2006 = vmatpush.msra.mxu0 0.0
    %2007 = vmatpush.msra.mxu0 0.0
    %2008 = vmatpush.msra.mxu0 0.0
    %2009 = vmatpush.msra.mxu0 0.0
    %2010 = vmatpush.msra.mxu0 0.0
    %2011 = vmatpush.msra.mxu0 0.0
    %2012 = vmatpush.msra.mxu0 0.0
    %2013 = vmatpush.msra.mxu0 0.0
    %2014 = vmatpush.msra.mxu0 %v1098
    %2015 = vmatpush.msra.mxu0 %v1097
    %2016 = vmatpush.msra.mxu0 %v1096
    %2017 = vmatpush.msra.mxu0 %v1095
    %2018 = vmatmul.f32.gmra.mxu0 %v1647
    %v2019 = vpop.f32.mrf.mxu0
    %v2020 = vadd.f32 0.0, %v2019
    %2021 = vmatmul.f32.gmra.mxu0 %v1650
    %v2022 = vpop.f32.mrf.mxu0
    %v2023 = vadd.f32 0.0, %v2022
    %2024 = vmatmul.f32.gmra.mxu0 %v1653
    %v2025 = vpop.f32.mrf.mxu0
    %v2026 = vadd.f32 0.0, %v2025
    %2027 = vmatmul.f32.gmra.mxu0 %v2000
    %v2028 = vpop.f32.mrf.mxu0
    %v2029 = vadd.f32 0.0, %v2028
    %2030 = vdwg.mxu0
    %v2031 = vadd.f32 %v1990, %v2020
    %v2032 = vadd.f32 %v1991, %v2023
    %v2033 = vadd.f32 %v1992, %v2026
    %v2034 = vadd.f32 %v1993, %v2029
    %v2035 = vld [vmem:[%s4] sm:$0x1]
    %v2037 = vperm.slane %v2035, 0
    %v2039 = vadd.f32 %v2031, %v2037
    %v2040 = vadd.f32 %v2032, %v2037
    %v2041 = vadd.f32 %v2033, %v2037
    %v2042 = vadd.f32 %v2034, %v2037
    %v2043 = vmax.f32 %v2039, 0.0
    %v2044 = vmax.f32 %v2040, 0.0
    %v2045 = vmax.f32 %v2041, 0.0
    %v2046 = vmax.f32 %v2042, 0.0
    %v2047 = vld [vmem:[%s5] sm:$0xff]
    %v2048 = vld [vmem:[%s5 + $0x8] sm:$0xff]
    %v2049 = vld [vmem:[%s5 + $0x10] sm:$0xff]
    %v2050 = vld [vmem:[%s5 + $0x18] sm:$0xff]
    %v2051 = vld [vmem:[%s5 + $0x20] sm:$0xff]
    %v2052 = vld [vmem:[%s5 + $0x28] sm:$0xff]
    %v2053 = vld [vmem:[%s5 + $0x30] sm:$0xff]
    %v2054 = vld [vmem:[%s5 + $0x38] sm:$0xff]
    %v2055 = vld [vmem:[%s5 + $0x40] sm:$0xff]
    %v2056 = vld [vmem:[%s5 + $0x48] sm:$0xff]
    %v2057 = vld [vmem:[%s5 + $0x50] sm:$0xff]
    %v2058 = vld [vmem:[%s5 + $0x58] sm:$0xff]
    %v2059 = vld [vmem:[%s5 + $0x60] sm:$0xff]
    %v2060 = vld [vmem:[%s5 + $0x68] sm:$0xff]
    %v2061 = vld [vmem:[%s5 + $0x70] sm:$0xff]
    %v2062 = vld [vmem:[%s5 + $0x78] sm:$0xff]
    %v2063 = vld [vmem:[%s5 + $0x80] sm:$0xff]
    %v2064 = vld [vmem:[%s5 + $0x88] sm:$0xff]
    %v2065 = vld [vmem:[%s5 + $0x90] sm:$0xff]
    %v2066 = vld [vmem:[%s5 + $0x98] sm:$0xff]
    %v2067 = vld [vmem:[%s5 + $0xa0] sm:$0xff]
    %v2068 = vld [vmem:[%s5 + $0xa8] sm:$0xff]
    %v2069 = vld [vmem:[%s5 + $0xb0] sm:$0xff]
    %v2070 = vld [vmem:[%s5 + $0xb8] sm:$0xff]
    %v2071 = vld [vmem:[%s5 + $0xc0] sm:$0xff]
    %v2072 = vld [vmem:[%s5 + $0xc8] sm:$0xff]
    %v2073 = vld [vmem:[%s5 + $0xd0] sm:$0xff]
    %v2074 = vld [vmem:[%s5 + $0xd8] sm:$0xff]
    %v2075 = vld [vmem:[%s5 + $0xe0] sm:$0xff]
    %v2076 = vld [vmem:[%s5 + $0xe8] sm:$0xff]
    %v2077 = vld [vmem:[%s5 + $0xf0] sm:$0xff]
    %v2078 = vld [vmem:[%s5 + $0xf8] sm:$0xff]
    %v2079 = vld [vmem:[%s5 + $0x100] sm:$0xff]
    %v2080 = vld [vmem:[%s5 + $0x108] sm:$0xff]
    %v2081 = vld [vmem:[%s5 + $0x110] sm:$0xff]
    %v2082 = vld [vmem:[%s5 + $0x118] sm:$0xff]
    %v2083 = vld [vmem:[%s5 + $0x120] sm:$0xff]
    %v2084 = vld [vmem:[%s5 + $0x128] sm:$0xff]
    %v2085 = vld [vmem:[%s5 + $0x130] sm:$0xff]
    %v2086 = vld [vmem:[%s5 + $0x138] sm:$0xff]
    %v2087 = vld [vmem:[%s5 + $0x140] sm:$0xff]
    %v2088 = vld [vmem:[%s5 + $0x148] sm:$0xff]
    %v2089 = vld [vmem:[%s5 + $0x150] sm:$0xff]
    %v2090 = vld [vmem:[%s5 + $0x158] sm:$0xff]
    %v2091 = vld [vmem:[%s5 + $0x160] sm:$0xff]
    %v2092 = vld [vmem:[%s5 + $0x168] sm:$0xff]
    %v2093 = vld [vmem:[%s5 + $0x170] sm:$0xff]
    %v2094 = vld [vmem:[%s5 + $0x178] sm:$0xff]
    %v2095 = vld [vmem:[%s5 + $0x180] sm:$0xff]
    %v2096 = vld [vmem:[%s5 + $0x188] sm:$0xff]
    %v2097 = vld [vmem:[%s5 + $0x190] sm:$0xff]
    %v2098 = vld [vmem:[%s5 + $0x198] sm:$0xff]
    %v2099 = vld [vmem:[%s5 + $0x1a0] sm:$0xff]
    %v2100 = vld [vmem:[%s5 + $0x1a8] sm:$0xff]
    %v2101 = vld [vmem:[%s5 + $0x1b0] sm:$0xff]
    %v2102 = vld [vmem:[%s5 + $0x1b8] sm:$0xff]
    %v2103 = vld [vmem:[%s5 + $0x1c0] sm:$0xff]
    %v2104 = vld [vmem:[%s5 + $0x1c8] sm:$0xff]
    %v2105 = vld [vmem:[%s5 + $0x1d0] sm:$0xff]
    %v2106 = vld [vmem:[%s5 + $0x1d8] sm:$0xff]
    %v2107 = vld [vmem:[%s5 + $0x1e0] sm:$0xff]
    %v2108 = vld [vmem:[%s5 + $0x1e8] sm:$0xff]
    %v2109 = vld [vmem:[%s5 + $0x1f0] sm:$0xff]
    %v2110 = vld [vmem:[%s5 + $0x1f8] sm:$0xff]
    %v2111 = vld [vmem:[%s5 + $0x200] sm:$0xff]
    %v2112 = vld [vmem:[%s5 + $0x208] sm:$0xff]
    %v2113 = vld [vmem:[%s5 + $0x210] sm:$0xff]
    %v2114 = vld [vmem:[%s5 + $0x218] sm:$0xff]
    %v2115 = vld [vmem:[%s5 + $0x220] sm:$0xff]
    %v2116 = vld [vmem:[%s5 + $0x228] sm:$0xff]
    %v2117 = vld [vmem:[%s5 + $0x230] sm:$0xff]
    %v2118 = vld [vmem:[%s5 + $0x238] sm:$0xff]
    %v2120 = vrot.slane %v2044, 4
    %v2122 = vsel %vm123, %v2043, %v2120
    %v2124 = vrot.slane %v2043, 2
    %v2126 = vrot.slane %v2044, 6
    %v2128 = vsel %vm123, %v2124, %v2126
    %v2130 = vsel %vm242, %v2128, 0
    %2132 = vmatpush.msra.mxu0 0.0
    %2133 = vmatpush.msra.mxu0 0.0
    %2134 = vmatpush.msra.mxu0 0.0
    %2135 = vmatpush.msra.mxu0 0.0
    %2136 = vmatpush.msra.mxu0 0.0
    %2137 = vmatpush.msra.mxu0 0.0
    %2138 = vmatpush.msra.mxu0 0.0
    %2139 = vmatpush.msra.mxu0 0.0
    %2140 = vmatpush.msra.mxu0 %v2062
    %2141 = vmatpush.msra.mxu0 %v2061
    %2142 = vmatpush.msra.mxu0 %v2060
    %2143 = vmatpush.msra.mxu0 %v2059
    %2144 = vmatpush.msra.mxu0 %v2058
    %2145 = vmatpush.msra.mxu0 %v2057
    %2146 = vmatpush.msra.mxu0 %v2056
    %2147 = vmatpush.msra.mxu0 %v2055
    %2148 = vmatmul.f32.gmra.mxu0 %v2130
    %v2149 = vpop.f32.mrf.mxu0
    %v2150 = vadd.f32 0.0, %v2149
    %2151 = vdwg.mxu0
    %v2153 = vsel %vm242, %v2122, 0
    %2155 = vmatpush.msra.mxu0 0.0
    %2156 = vmatpush.msra.mxu0 0.0
    %2157 = vmatpush.msra.mxu0 0.0
    %2158 = vmatpush.msra.mxu0 0.0
    %2159 = vmatpush.msra.mxu0 0.0
    %2160 = vmatpush.msra.mxu0 0.0
    %2161 = vmatpush.msra.mxu0 0.0
    %2162 = vmatpush.msra.mxu0 0.0
    %2163 = vmatpush.msra.mxu0 %v2054
    %2164 = vmatpush.msra.mxu0 %v2053
    %2165 = vmatpush.msra.mxu0 %v2052
    %2166 = vmatpush.msra.mxu0 %v2051
    %2167 = vmatpush.msra.mxu0 %v2050
    %2168 = vmatpush.msra.mxu0 %v2049
    %2169 = vmatpush.msra.mxu0 %v2048
    %2170 = vmatpush.msra.mxu0 %v2047
    %2171 = vmatmul.f32.gmra.mxu0 %v2153
    %v2172 = vpop.f32.mrf.mxu0
    %v2173 = vadd.f32 %v2150, %v2172
    %2174 = vdwg.mxu0
    %v2175 = vrot.slane %v2043, 4
    %v2177 = vsel %vm123, %v2175, %v2044
    %v2179 = vsel %vm242, %v2177, 0
    %2181 = vmatpush.msra.mxu0 0.0
    %2182 = vmatpush.msra.mxu0 0.0
    %2183 = vmatpush.msra.mxu0 0.0
    %2184 = vmatpush.msra.mxu0 0.0
    %2185 = vmatpush.msra.mxu0 0.0
    %2186 = vmatpush.msra.mxu0 0.0
    %2187 = vmatpush.msra.mxu0 0.0
    %2188 = vmatpush.msra.mxu0 0.0
    %2189 = vmatpush.msra.mxu0 %v2070
    %2190 = vmatpush.msra.mxu0 %v2069
    %2191 = vmatpush.msra.mxu0 %v2068
    %2192 = vmatpush.msra.mxu0 %v2067
    %2193 = vmatpush.msra.mxu0 %v2066
    %2194 = vmatpush.msra.mxu0 %v2065
    %2195 = vmatpush.msra.mxu0 %v2064
    %2196 = vmatpush.msra.mxu0 %v2063
    %2197 = vmatmul.f32.gmra.mxu0 %v2179
    %v2198 = vpop.f32.mrf.mxu0
    %v2199 = vadd.f32 0.0, %v2198
    %2200 = vdwg.mxu0
    %v2201 = vadd.f32 %v2173, %v2199
    %v2203 = vrot.slane %v2045, 4
    %v2205 = vsel %vm123, %v2044, %v2203
    %v2207 = vsel %vm242, %v2205, 0
    %2209 = vmatpush.msra.mxu0 0.0
    %2210 = vmatpush.msra.mxu0 0.0
    %2211 = vmatpush.msra.mxu0 0.0
    %2212 = vmatpush.msra.mxu0 0.0
    %2213 = vmatpush.msra.mxu0 0.0
    %2214 = vmatpush.msra.mxu0 0.0
    %2215 = vmatpush.msra.mxu0 0.0
    %2216 = vmatpush.msra.mxu0 0.0
    %2217 = vmatpush.msra.mxu0 %v2078
    %2218 = vmatpush.msra.mxu0 %v2077
    %2219 = vmatpush.msra.mxu0 %v2076
    %2220 = vmatpush.msra.mxu0 %v2075
    %2221 = vmatpush.msra.mxu0 %v2074
    %2222 = vmatpush.msra.mxu0 %v2073
    %2223 = vmatpush.msra.mxu0 %v2072
    %2224 = vmatpush.msra.mxu0 %v2071
    %2225 = vmatmul.f32.gmra.mxu0 %v2207
    %v2226 = vpop.f32.mrf.mxu0
    %v2227 = vadd.f32 0.0, %v2226
    %2228 = vdwg.mxu0
    %v2229 = vadd.f32 %v2201, %v2227
    %v2230 = vrot.slane %v2044, 2
    %v2232 = vrot.slane %v2045, 6
    %v2234 = vsel %vm123, %v2230, %v2232
    %v2236 = vsel %vm242, %v2234, 0
    %2238 = vmatpush.msra.mxu0 0.0
    %2239 = vmatpush.msra.mxu0 0.0
    %2240 = vmatpush.msra.mxu0 0.0
    %2241 = vmatpush.msra.mxu0 0.0
    %2242 = vmatpush.msra.mxu0 0.0
    %2243 = vmatpush.msra.mxu0 0.0
    %2244 = vmatpush.msra.mxu0 0.0
    %2245 = vmatpush.msra.mxu0 0.0
    %2246 = vmatpush.msra.mxu0 %v2086
    %2247 = vmatpush.msra.mxu0 %v2085
    %2248 = vmatpush.msra.mxu0 %v2084
    %2249 = vmatpush.msra.mxu0 %v2083
    %2250 = vmatpush.msra.mxu0 %v2082
    %2251 = vmatpush.msra.mxu0 %v2081
    %2252 = vmatpush.msra.mxu0 %v2080
    %2253 = vmatpush.msra.mxu0 %v2079
    %2254 = vmatmul.f32.gmra.mxu0 %v2236
    %v2255 = vpop.f32.mrf.mxu0
    %v2256 = vadd.f32 0.0, %v2255
    %2257 = vdwg.mxu0
    %v2258 = vadd.f32 %v2229, %v2256
    %v2259 = vsel %vm123, %v2120, %v2045
    %v2261 = vsel %vm242, %v2259, 0
    %2263 = vmatpush.msra.mxu0 0.0
    %2264 = vmatpush.msra.mxu0 0.0
    %2265 = vmatpush.msra.mxu0 0.0
    %2266 = vmatpush.msra.mxu0 0.0
    %2267 = vmatpush.msra.mxu0 0.0
    %2268 = vmatpush.msra.mxu0 0.0
    %2269 = vmatpush.msra.mxu0 0.0
    %2270 = vmatpush.msra.mxu0 0.0
    %2271 = vmatpush.msra.mxu0 %v2094
    %2272 = vmatpush.msra.mxu0 %v2093
    %2273 = vmatpush.msra.mxu0 %v2092
    %2274 = vmatpush.msra.mxu0 %v2091
    %2275 = vmatpush.msra.mxu0 %v2090
    %2276 = vmatpush.msra.mxu0 %v2089
    %2277 = vmatpush.msra.mxu0 %v2088
    %2278 = vmatpush.msra.mxu0 %v2087
    %2279 = vmatmul.f32.gmra.mxu0 %v2261
    %v2280 = vpop.f32.mrf.mxu0
    %v2281 = vadd.f32 0.0, %v2280
    %2282 = vdwg.mxu0
    %v2283 = vadd.f32 %v2258, %v2281
    %v2285 = vrot.slane %v2046, 4
    %v2287 = vsel %vm123, %v2045, %v2285
    %v2289 = vsel %vm242, %v2287, 0
    %2291 = vmatpush.msra.mxu0 0.0
    %2292 = vmatpush.msra.mxu0 0.0
    %2293 = vmatpush.msra.mxu0 0.0
    %2294 = vmatpush.msra.mxu0 0.0
    %2295 = vmatpush.msra.mxu0 0.0
    %2296 = vmatpush.msra.mxu0 0.0
    %2297 = vmatpush.msra.mxu0 0.0
    %2298 = vmatpush.msra.mxu0 0.0
    %2299 = vmatpush.msra.mxu0 %v2102
    %2300 = vmatpush.msra.mxu0 %v2101
    %2301 = vmatpush.msra.mxu0 %v2100
    %2302 = vmatpush.msra.mxu0 %v2099
    %2303 = vmatpush.msra.mxu0 %v2098
    %2304 = vmatpush.msra.mxu0 %v2097
    %2305 = vmatpush.msra.mxu0 %v2096
    %2306 = vmatpush.msra.mxu0 %v2095
    %2307 = vmatmul.f32.gmra.mxu0 %v2289
    %v2308 = vpop.f32.mrf.mxu0
    %v2309 = vadd.f32 0.0, %v2308
    %2310 = vdwg.mxu0
    %v2311 = vadd.f32 %v2283, %v2309
    %v2312 = vrot.slane %v2045, 2
    %v2314 = vrot.slane %v2046, 6
    %v2316 = vsel %vm123, %v2312, %v2314
    %v2318 = vsel %vm242, %v2316, 0
    %2320 = vmatpush.msra.mxu0 0.0
    %2321 = vmatpush.msra.mxu0 0.0
    %2322 = vmatpush.msra.mxu0 0.0
    %2323 = vmatpush.msra.mxu0 0.0
    %2324 = vmatpush.msra.mxu0 0.0
    %2325 = vmatpush.msra.mxu0 0.0
    %2326 = vmatpush.msra.mxu0 0.0
    %2327 = vmatpush.msra.mxu0 0.0
    %2328 = vmatpush.msra.mxu0 %v2110
    %2329 = vmatpush.msra.mxu0 %v2109
    %2330 = vmatpush.msra.mxu0 %v2108
    %2331 = vmatpush.msra.mxu0 %v2107
    %2332 = vmatpush.msra.mxu0 %v2106
    %2333 = vmatpush.msra.mxu0 %v2105
    %2334 = vmatpush.msra.mxu0 %v2104
    %2335 = vmatpush.msra.mxu0 %v2103
    %2336 = vmatmul.f32.gmra.mxu0 %v2318
    %v2337 = vpop.f32.mrf.mxu0
    %v2338 = vadd.f32 0.0, %v2337
    %2339 = vdwg.mxu0
    %v2340 = vadd.f32 %v2311, %v2338
    %v2341 = vsel %vm123, %v2203, %v2046
    %v2343 = vsel %vm242, %v2341, 0
    %2345 = vmatpush.msra.mxu0 0.0
    %2346 = vmatpush.msra.mxu0 0.0
    %2347 = vmatpush.msra.mxu0 0.0
    %2348 = vmatpush.msra.mxu0 0.0
    %2349 = vmatpush.msra.mxu0 0.0
    %2350 = vmatpush.msra.mxu0 0.0
    %2351 = vmatpush.msra.mxu0 0.0
    %2352 = vmatpush.msra.mxu0 0.0
    %2353 = vmatpush.msra.mxu0 %v2118
    %2354 = vmatpush.msra.mxu0 %v2117
    %2355 = vmatpush.msra.mxu0 %v2116
    %2356 = vmatpush.msra.mxu0 %v2115
    %2357 = vmatpush.msra.mxu0 %v2114
    %2358 = vmatpush.msra.mxu0 %v2113
    %2359 = vmatpush.msra.mxu0 %v2112
    %2360 = vmatpush.msra.mxu0 %v2111
    %2361 = vmatmul.f32.gmra.mxu0 %v2343
    %v2362 = vpop.f32.mrf.mxu0
    %v2363 = vadd.f32 0.0, %v2362
    %2364 = vdwg.mxu0
    %v2365 = vadd.f32 %v2340, %v2363
    %v2366 = vld [vmem:[%s6] sm:$0x1]
    %v2368 = vperm.slane %v2366, 0
    %v2370 = vadd.f32 %v2365, %v2368
    %v2371 = vmax.f32 %v2370, 0.0
    %v2372 = vld [vmem:[%s11] sm:$0xff]
    %v2373 = vld [vmem:[%s11 + $0x8] sm:$0xff]
    %v2374 = vld [vmem:[%s11 + $0x10] sm:$0xff]
    %v2375 = vld [vmem:[%s11 + $0x18] sm:$0xff]
    %v2376 = vld [vmem:[%s11 + $0x20] sm:$0xff]
    %v2377 = vld [vmem:[%s11 + $0x28] sm:$0xff]
    %v2378 = vld [vmem:[%s11 + $0x30] sm:$0xff]
    %v2379 = vld [vmem:[%s11 + $0x38] sm:$0xff]
    %v2380 = vld [vmem:[%s11 + $0x40] sm:$0xff]
    %v2381 = vld [vmem:[%s11 + $0x48] sm:$0xff]
    %v2382 = vld [vmem:[%s11 + $0x50] sm:$0xff]
    %v2383 = vld [vmem:[%s11 + $0x58] sm:$0xff]
    %v2384 = vld [vmem:[%s11 + $0x60] sm:$0xff]
    %v2385 = vld [vmem:[%s11 + $0x68] sm:$0xff]
    %v2386 = vld [vmem:[%s11 + $0x70] sm:$0xff]
    %v2387 = vld [vmem:[%s11 + $0x78] sm:$0xff]
    %v2388 = vld [vmem:[%s11 + $0x80] sm:$0xff]
    %v2389 = vld [vmem:[%s11 + $0x88] sm:$0xff]
    %v2390 = vld [vmem:[%s11 + $0x90] sm:$0xff]
    %v2391 = vld [vmem:[%s11 + $0x98] sm:$0xff]
    %v2392 = vld [vmem:[%s11 + $0xa0] sm:$0xff]
    %v2393 = vld [vmem:[%s11 + $0xa8] sm:$0xff]
    %v2394 = vld [vmem:[%s11 + $0xb0] sm:$0xff]
    %v2395 = vld [vmem:[%s11 + $0xb8] sm:$0xff]
    %v2396 = vld [vmem:[%s11 + $0xc0] sm:$0xff]
    %v2397 = vld [vmem:[%s11 + $0xc8] sm:$0xff]
    %v2398 = vld [vmem:[%s11 + $0xd0] sm:$0xff]
    %v2399 = vld [vmem:[%s11 + $0xd8] sm:$0xff]
    %v2400 = vld [vmem:[%s11 + $0xe0] sm:$0xff]
    %v2401 = vld [vmem:[%s11 + $0xe8] sm:$0xff]
    %v2402 = vld [vmem:[%s11 + $0xf0] sm:$0xff]
    %v2403 = vld [vmem:[%s11 + $0xf8] sm:$0xff]
    %v2404 = vld [vmem:[%s11 + $0x100] sm:$0xff]
    %v2405 = vld [vmem:[%s11 + $0x108] sm:$0xff]
    %v2406 = vld [vmem:[%s11 + $0x110] sm:$0xff]
    %v2407 = vld [vmem:[%s11 + $0x118] sm:$0xff]
    %v2408 = vld [vmem:[%s11 + $0x120] sm:$0xff]
    %v2409 = vld [vmem:[%s11 + $0x128] sm:$0xff]
    %v2410 = vld [vmem:[%s11 + $0x130] sm:$0xff]
    %v2411 = vld [vmem:[%s11 + $0x138] sm:$0xff]
    %v2412 = vld [vmem:[%s11 + $0x140] sm:$0xff]
    %v2413 = vld [vmem:[%s11 + $0x148] sm:$0xff]
    %v2414 = vld [vmem:[%s11 + $0x150] sm:$0xff]
    %v2415 = vld [vmem:[%s11 + $0x158] sm:$0xff]
    %v2416 = vld [vmem:[%s11 + $0x160] sm:$0xff]
    %v2417 = vld [vmem:[%s11 + $0x168] sm:$0xff]
    %v2418 = vld [vmem:[%s11 + $0x170] sm:$0xff]
    %v2419 = vld [vmem:[%s11 + $0x178] sm:$0xff]
    %v2420 = vld [vmem:[%s11 + $0x180] sm:$0xff]
    %v2421 = vld [vmem:[%s11 + $0x188] sm:$0xff]
    %v2422 = vld [vmem:[%s11 + $0x190] sm:$0xff]
    %v2423 = vld [vmem:[%s11 + $0x198] sm:$0xff]
    %v2424 = vld [vmem:[%s11 + $0x1a0] sm:$0xff]
    %v2425 = vld [vmem:[%s11 + $0x1a8] sm:$0xff]
    %v2426 = vld [vmem:[%s11 + $0x1b0] sm:$0xff]
    %v2427 = vld [vmem:[%s11 + $0x1b8] sm:$0xff]
    %v2428 = vld [vmem:[%s11 + $0x1c0] sm:$0xff]
    %v2429 = vld [vmem:[%s11 + $0x1c8] sm:$0xff]
    %v2430 = vld [vmem:[%s11 + $0x1d0] sm:$0xff]
    %v2431 = vld [vmem:[%s11 + $0x1d8] sm:$0xff]
    %v2432 = vld [vmem:[%s11 + $0x1e0] sm:$0xff]
    %v2433 = vld [vmem:[%s11 + $0x1e8] sm:$0xff]
    %v2434 = vld [vmem:[%s11 + $0x1f0] sm:$0xff]
    %v2435 = vld [vmem:[%s11 + $0x1f8] sm:$0xff]
    %v2436 = vld [vmem:[%s7] sm:$0xff]
    %v2437 = vld [vmem:[%s7 + $0x8] sm:$0xff]
    %v2438 = vld [vmem:[%s7 + $0x10] sm:$0xff]
    %v2439 = vld [vmem:[%s7 + $0x18] sm:$0xff]
    %v2440 = vld [vmem:[%s7 + $0x20] sm:$0xff]
    %v2441 = vld [vmem:[%s7 + $0x28] sm:$0xff]
    %v2442 = vld [vmem:[%s7 + $0x30] sm:$0xff]
    %v2443 = vld [vmem:[%s7 + $0x38] sm:$0xff]
    %v2444 = vld [vmem:[%s7 + $0x40] sm:$0xff]
    %v2445 = vld [vmem:[%s7 + $0x48] sm:$0xff]
    %v2446 = vld [vmem:[%s7 + $0x50] sm:$0xff]
    %v2447 = vld [vmem:[%s7 + $0x58] sm:$0xff]
    %v2448 = vld [vmem:[%s7 + $0x60] sm:$0xff]
    %v2449 = vld [vmem:[%s7 + $0x68] sm:$0xff]
    %v2450 = vld [vmem:[%s7 + $0x70] sm:$0xff]
    %v2451 = vld [vmem:[%s7 + $0x78] sm:$0xff]
    %v2452 = vld [vmem:[%s7 + $0x80] sm:$0xff]
    %v2453 = vld [vmem:[%s7 + $0x88] sm:$0xff]
    %v2454 = vld [vmem:[%s7 + $0x90] sm:$0xff]
    %v2455 = vld [vmem:[%s7 + $0x98] sm:$0xff]
    %v2456 = vld [vmem:[%s7 + $0xa0] sm:$0xff]
    %v2457 = vld [vmem:[%s7 + $0xa8] sm:$0xff]
    %v2458 = vld [vmem:[%s7 + $0xb0] sm:$0xff]
    %v2459 = vld [vmem:[%s7 + $0xb8] sm:$0xff]
    %v2460 = vld [vmem:[%s7 + $0xc0] sm:$0xff]
    %v2461 = vld [vmem:[%s7 + $0xc8] sm:$0xff]
    %v2462 = vld [vmem:[%s7 + $0xd0] sm:$0xff]
    %v2463 = vld [vmem:[%s7 + $0xd8] sm:$0xff]
    %v2464 = vld [vmem:[%s7 + $0xe0] sm:$0xff]
    %v2465 = vld [vmem:[%s7 + $0xe8] sm:$0xff]
    %v2466 = vld [vmem:[%s7 + $0xf0] sm:$0xff]
    %v2467 = vld [vmem:[%s7 + $0xf8] sm:$0xff]
    %v2468 = vld [vmem:[%s7 + $0x100] sm:$0xff]
    %v2469 = vld [vmem:[%s7 + $0x108] sm:$0xff]
    %v2470 = vld [vmem:[%s7 + $0x110] sm:$0xff]
    %v2471 = vld [vmem:[%s7 + $0x118] sm:$0xff]
    %v2472 = vld [vmem:[%s7 + $0x120] sm:$0xff]
    %v2473 = vld [vmem:[%s7 + $0x128] sm:$0xff]
    %v2474 = vld [vmem:[%s7 + $0x130] sm:$0xff]
    %v2475 = vld [vmem:[%s7 + $0x138] sm:$0xff]
    %v2476 = vld [vmem:[%s7 + $0x140] sm:$0xff]
    %v2477 = vld [vmem:[%s7 + $0x148] sm:$0xff]
    %v2478 = vld [vmem:[%s7 + $0x150] sm:$0xff]
    %v2479 = vld [vmem:[%s7 + $0x158] sm:$0xff]
    %v2480 = vld [vmem:[%s7 + $0x160] sm:$0xff]
    %v2481 = vld [vmem:[%s7 + $0x168] sm:$0xff]
    %v2482 = vld [vmem:[%s7 + $0x170] sm:$0xff]
    %v2483 = vld [vmem:[%s7 + $0x178] sm:$0xff]
    %v2484 = vld [vmem:[%s7 + $0x180] sm:$0xff]
    %v2485 = vld [vmem:[%s7 + $0x188] sm:$0xff]
    %v2486 = vld [vmem:[%s7 + $0x190] sm:$0xff]
    %v2487 = vld [vmem:[%s7 + $0x198] sm:$0xff]
    %v2488 = vld [vmem:[%s7 + $0x1a0] sm:$0xff]
    %v2489 = vld [vmem:[%s7 + $0x1a8] sm:$0xff]
    %v2490 = vld [vmem:[%s7 + $0x1b0] sm:$0xff]
    %v2491 = vld [vmem:[%s7 + $0x1b8] sm:$0xff]
    %v2492 = vld [vmem:[%s7 + $0x1c0] sm:$0xff]
    %v2493 = vld [vmem:[%s7 + $0x1c8] sm:$0xff]
    %v2494 = vld [vmem:[%s7 + $0x1d0] sm:$0xff]
    %v2495 = vld [vmem:[%s7 + $0x1d8] sm:$0xff]
    %v2496 = vld [vmem:[%s7 + $0x1e0] sm:$0xff]
    %v2497 = vld [vmem:[%s7 + $0x1e8] sm:$0xff]
    %v2498 = vld [vmem:[%s7 + $0x1f0] sm:$0xff]
    %v2499 = vld [vmem:[%s7 + $0x1f8] sm:$0xff]
    %v2501 = vrot.slane %v2371, 2
    %v2502 = vsel %vm242, %v2501, 0
    %2504 = vmatpush.msra.mxu0 0.0
    %2505 = vmatpush.msra.mxu0 0.0
    %2506 = vmatpush.msra.mxu0 0.0
    %2507 = vmatpush.msra.mxu0 0.0
    %2508 = vmatpush.msra.mxu0 0.0
    %2509 = vmatpush.msra.mxu0 0.0
    %2510 = vmatpush.msra.mxu0 0.0
    %2511 = vmatpush.msra.mxu0 0.0
    %2512 = vmatpush.msra.mxu0 %v2402
    %2513 = vmatpush.msra.mxu0 %v2400
    %2514 = vmatpush.msra.mxu0 %v2398
    %2515 = vmatpush.msra.mxu0 %v2396
    %2516 = vmatpush.msra.mxu0 %v2394
    %2517 = vmatpush.msra.mxu0 %v2392
    %2518 = vmatpush.msra.mxu0 %v2390
    %2519 = vmatpush.msra.mxu0 %v2388
    %2520 = vmatmul.f32.gmra.mxu0 %v2502
    %v2521 = vpop.f32.mrf.mxu0
    %v2522 = vadd.f32 0.0, %v2521
    %2523 = vdwg.mxu0
    %2524 = vmatpush.msra.mxu0 0.0
    %2525 = vmatpush.msra.mxu0 0.0
    %2526 = vmatpush.msra.mxu0 0.0
    %2527 = vmatpush.msra.mxu0 0.0
    %2528 = vmatpush.msra.mxu0 0.0
    %2529 = vmatpush.msra.mxu0 0.0
    %2530 = vmatpush.msra.mxu0 0.0
    %2531 = vmatpush.msra.mxu0 0.0
    %2532 = vmatpush.msra.mxu0 %v2403
    %2533 = vmatpush.msra.mxu0 %v2401
    %2534 = vmatpush.msra.mxu0 %v2399
    %2535 = vmatpush.msra.mxu0 %v2397
    %2536 = vmatpush.msra.mxu0 %v2395
    %2537 = vmatpush.msra.mxu0 %v2393
    %2538 = vmatpush.msra.mxu0 %v2391
    %2539 = vmatpush.msra.mxu0 %v2389
    %2540 = vmatmul.f32.gmra.mxu0 %v2502
    %v2541 = vpop.f32.mrf.mxu0
    %v2542 = vadd.f32 0.0, %v2541
    %2543 = vdwg.mxu0
    %v2544 = vsel %vm242, %v2371, 0
    %2546 = vmatpush.msra.mxu0 0.0
    %2547 = vmatpush.msra.mxu0 0.0
    %2548 = vmatpush.msra.mxu0 0.0
    %2549 = vmatpush.msra.mxu0 0.0
    %2550 = vmatpush.msra.mxu0 0.0
    %2551 = vmatpush.msra.mxu0 0.0
    %2552 = vmatpush.msra.mxu0 0.0
    %2553 = vmatpush.msra.mxu0 0.0
    %2554 = vmatpush.msra.mxu0 %v2386
    %2555 = vmatpush.msra.mxu0 %v2384
    %2556 = vmatpush.msra.mxu0 %v2382
    %2557 = vmatpush.msra.mxu0 %v2380
    %2558 = vmatpush.msra.mxu0 %v2378
    %2559 = vmatpush.msra.mxu0 %v2376
    %2560 = vmatpush.msra.mxu0 %v2374
    %2561 = vmatpush.msra.mxu0 %v2372
    %2562 = vmatmul.f32.gmra.mxu0 %v2544
    %v2563 = vpop.f32.mrf.mxu0
    %v2564 = vadd.f32 %v2522, %v2563
    %2565 = vdwg.mxu0
    %2566 = vmatpush.msra.mxu0 0.0
    %2567 = vmatpush.msra.mxu0 0.0
    %2568 = vmatpush.msra.mxu0 0.0
    %2569 = vmatpush.msra.mxu0 0.0
    %2570 = vmatpush.msra.mxu0 0.0
    %2571 = vmatpush.msra.mxu0 0.0
    %2572 = vmatpush.msra.mxu0 0.0
    %2573 = vmatpush.msra.mxu0 0.0
    %2574 = vmatpush.msra.mxu0 %v2387
    %2575 = vmatpush.msra.mxu0 %v2385
    %2576 = vmatpush.msra.mxu0 %v2383
    %2577 = vmatpush.msra.mxu0 %v2381
    %2578 = vmatpush.msra.mxu0 %v2379
    %2579 = vmatpush.msra.mxu0 %v2377
    %2580 = vmatpush.msra.mxu0 %v2375
    %2581 = vmatpush.msra.mxu0 %v2373
    %2582 = vmatmul.f32.gmra.mxu0 %v2544
    %v2583 = vpop.f32.mrf.mxu0
    %v2584 = vadd.f32 %v2542, %v2583
    %2585 = vdwg.mxu0
    %v2586 = vrot.slane %v2371, 4
    %v2587 = vsel %vm242, %v2586, 0
    %2589 = vmatpush.msra.mxu0 0.0
    %2590 = vmatpush.msra.mxu0 0.0
    %2591 = vmatpush.msra.mxu0 0.0
    %2592 = vmatpush.msra.mxu0 0.0
    %2593 = vmatpush.msra.mxu0 0.0
    %2594 = vmatpush.msra.mxu0 0.0
    %2595 = vmatpush.msra.mxu0 0.0
    %2596 = vmatpush.msra.mxu0 0.0
    %2597 = vmatpush.msra.mxu0 %v2418
    %2598 = vmatpush.msra.mxu0 %v2416
    %2599 = vmatpush.msra.mxu0 %v2414
    %2600 = vmatpush.msra.mxu0 %v2412
    %2601 = vmatpush.msra.mxu0 %v2410
    %2602 = vmatpush.msra.mxu0 %v2408
    %2603 = vmatpush.msra.mxu0 %v2406
    %2604 = vmatpush.msra.mxu0 %v2404
    %2605 = vmatmul.f32.gmra.mxu0 %v2587
    %v2606 = vpop.f32.mrf.mxu0
    %v2607 = vadd.f32 0.0, %v2606
    %2608 = vdwg.mxu0
    %2609 = vmatpush.msra.mxu0 0.0
    %2610 = vmatpush.msra.mxu0 0.0
    %2611 = vmatpush.msra.mxu0 0.0
    %2612 = vmatpush.msra.mxu0 0.0
    %2613 = vmatpush.msra.mxu0 0.0
    %2614 = vmatpush.msra.mxu0 0.0
    %2615 = vmatpush.msra.mxu0 0.0
    %2616 = vmatpush.msra.mxu0 0.0
    %2617 = vmatpush.msra.mxu0 %v2419
    %2618 = vmatpush.msra.mxu0 %v2417
    %2619 = vmatpush.msra.mxu0 %v2415
    %2620 = vmatpush.msra.mxu0 %v2413
    %2621 = vmatpush.msra.mxu0 %v2411
    %2622 = vmatpush.msra.mxu0 %v2409
    %2623 = vmatpush.msra.mxu0 %v2407
    %2624 = vmatpush.msra.mxu0 %v2405
    %2625 = vmatmul.f32.gmra.mxu0 %v2587
    %v2626 = vpop.f32.mrf.mxu0
    %v2627 = vadd.f32 0.0, %v2626
    %2628 = vdwg.mxu0
    %v2629 = vadd.f32 %v2564, %v2607
    %v2630 = vadd.f32 %v2584, %v2627
    %v2631 = vrot.slane %v2371, 6
    %v2632 = vsel %vm242, %v2631, 0
    %2634 = vmatpush.msra.mxu0 0.0
    %2635 = vmatpush.msra.mxu0 0.0
    %2636 = vmatpush.msra.mxu0 0.0
    %2637 = vmatpush.msra.mxu0 0.0
    %2638 = vmatpush.msra.mxu0 0.0
    %2639 = vmatpush.msra.mxu0 0.0
    %2640 = vmatpush.msra.mxu0 0.0
    %2641 = vmatpush.msra.mxu0 0.0
    %2642 = vmatpush.msra.mxu0 %v2434
    %2643 = vmatpush.msra.mxu0 %v2432
    %2644 = vmatpush.msra.mxu0 %v2430
    %2645 = vmatpush.msra.mxu0 %v2428
    %2646 = vmatpush.msra.mxu0 %v2426
    %2647 = vmatpush.msra.mxu0 %v2424
    %2648 = vmatpush.msra.mxu0 %v2422
    %2649 = vmatpush.msra.mxu0 %v2420
    %2650 = vmatmul.f32.gmra.mxu0 %v2632
    %v2651 = vpop.f32.mrf.mxu0
    %v2652 = vadd.f32 0.0, %v2651
    %2653 = vdwg.mxu0
    %2654 = vmatpush.msra.mxu0 0.0
    %2655 = vmatpush.msra.mxu0 0.0
    %2656 = vmatpush.msra.mxu0 0.0
    %2657 = vmatpush.msra.mxu0 0.0
    %2658 = vmatpush.msra.mxu0 0.0
    %2659 = vmatpush.msra.mxu0 0.0
    %2660 = vmatpush.msra.mxu0 0.0
    %2661 = vmatpush.msra.mxu0 0.0
    %2662 = vmatpush.msra.mxu0 %v2435
    %2663 = vmatpush.msra.mxu0 %v2433
    %2664 = vmatpush.msra.mxu0 %v2431
    %2665 = vmatpush.msra.mxu0 %v2429
    %2666 = vmatpush.msra.mxu0 %v2427
    %2667 = vmatpush.msra.mxu0 %v2425
    %2668 = vmatpush.msra.mxu0 %v2423
    %2669 = vmatpush.msra.mxu0 %v2421
    %2670 = vmatmul.f32.gmra.mxu0 %v2632
    %v2671 = vpop.f32.mrf.mxu0
    %v2672 = vadd.f32 0.0, %v2671
    %2673 = vdwg.mxu0
    %v2674 = vadd.f32 %v2629, %v2652
    %v2675 = vadd.f32 %v2630, %v2672
    %v2678 = vrot.slane %v2675, 6
    %v2679 = vsel %vm133, %v2674, %v2678
    %2681 = vst [vmem:[#allocation4] sm:$0xf] %v2679
    %2682 = vmatpush.msra.mxu0 0.0
    %2683 = vmatpush.msra.mxu0 0.0
    %2684 = vmatpush.msra.mxu0 0.0
    %2685 = vmatpush.msra.mxu0 0.0
    %2686 = vmatpush.msra.mxu0 0.0
    %2687 = vmatpush.msra.mxu0 0.0
    %2688 = vmatpush.msra.mxu0 0.0
    %2689 = vmatpush.msra.mxu0 0.0
    %2690 = vmatpush.msra.mxu0 %v2466
    %2691 = vmatpush.msra.mxu0 %v2464
    %2692 = vmatpush.msra.mxu0 %v2462
    %2693 = vmatpush.msra.mxu0 %v2460
    %2694 = vmatpush.msra.mxu0 %v2458
    %2695 = vmatpush.msra.mxu0 %v2456
    %2696 = vmatpush.msra.mxu0 %v2454
    %2697 = vmatpush.msra.mxu0 %v2452
    %2698 = vmatmul.f32.gmra.mxu0 %v2502
    %v2699 = vpop.f32.mrf.mxu0
    %v2700 = vadd.f32 0.0, %v2699
    %2701 = vdwg.mxu0
    %2702 = vmatpush.msra.mxu0 0.0
    %2703 = vmatpush.msra.mxu0 0.0
    %2704 = vmatpush.msra.mxu0 0.0
    %2705 = vmatpush.msra.mxu0 0.0
    %2706 = vmatpush.msra.mxu0 0.0
    %2707 = vmatpush.msra.mxu0 0.0
    %2708 = vmatpush.msra.mxu0 0.0
    %2709 = vmatpush.msra.mxu0 0.0
    %2710 = vmatpush.msra.mxu0 %v2467
    %2711 = vmatpush.msra.mxu0 %v2465
    %2712 = vmatpush.msra.mxu0 %v2463
    %2713 = vmatpush.msra.mxu0 %v2461
    %2714 = vmatpush.msra.mxu0 %v2459
    %2715 = vmatpush.msra.mxu0 %v2457
    %2716 = vmatpush.msra.mxu0 %v2455
    %2717 = vmatpush.msra.mxu0 %v2453
    %2718 = vmatmul.f32.gmra.mxu0 %v2502
    %v2719 = vpop.f32.mrf.mxu0
    %v2720 = vadd.f32 0.0, %v2719
    %2721 = vdwg.mxu0
    %2722 = vmatpush.msra.mxu0 0.0
    %2723 = vmatpush.msra.mxu0 0.0
    %2724 = vmatpush.msra.mxu0 0.0
    %2725 = vmatpush.msra.mxu0 0.0
    %2726 = vmatpush.msra.mxu0 0.0
    %2727 = vmatpush.msra.mxu0 0.0
    %2728 = vmatpush.msra.mxu0 0.0
    %2729 = vmatpush.msra.mxu0 0.0
    %2730 = vmatpush.msra.mxu0 %v2450
    %2731 = vmatpush.msra.mxu0 %v2448
    %2732 = vmatpush.msra.mxu0 %v2446
    %2733 = vmatpush.msra.mxu0 %v2444
    %2734 = vmatpush.msra.mxu0 %v2442
    %2735 = vmatpush.msra.mxu0 %v2440
    %2736 = vmatpush.msra.mxu0 %v2438
    %2737 = vmatpush.msra.mxu0 %v2436
    %2738 = vmatmul.f32.gmra.mxu0 %v2544
    %v2739 = vpop.f32.mrf.mxu0
    %v2740 = vadd.f32 %v2700, %v2739
    %2741 = vdwg.mxu0
    %2742 = vmatpush.msra.mxu0 0.0
    %2743 = vmatpush.msra.mxu0 0.0
    %2744 = vmatpush.msra.mxu0 0.0
    %2745 = vmatpush.msra.mxu0 0.0
    %2746 = vmatpush.msra.mxu0 0.0
    %2747 = vmatpush.msra.mxu0 0.0
    %2748 = vmatpush.msra.mxu0 0.0
    %2749 = vmatpush.msra.mxu0 0.0
    %2750 = vmatpush.msra.mxu0 %v2451
    %2751 = vmatpush.msra.mxu0 %v2449
    %2752 = vmatpush.msra.mxu0 %v2447
    %2753 = vmatpush.msra.mxu0 %v2445
    %2754 = vmatpush.msra.mxu0 %v2443
    %2755 = vmatpush.msra.mxu0 %v2441
    %2756 = vmatpush.msra.mxu0 %v2439
    %2757 = vmatpush.msra.mxu0 %v2437
    %2758 = vmatmul.f32.gmra.mxu0 %v2544
    %v2759 = vpop.f32.mrf.mxu0
    %v2760 = vadd.f32 %v2720, %v2759
    %2761 = vdwg.mxu0
    %2762 = vmatpush.msra.mxu0 0.0
    %2763 = vmatpush.msra.mxu0 0.0
    %2764 = vmatpush.msra.mxu0 0.0
    %2765 = vmatpush.msra.mxu0 0.0
    %2766 = vmatpush.msra.mxu0 0.0
    %2767 = vmatpush.msra.mxu0 0.0
    %2768 = vmatpush.msra.mxu0 0.0
    %2769 = vmatpush.msra.mxu0 0.0
    %2770 = vmatpush.msra.mxu0 %v2482
    %2771 = vmatpush.msra.mxu0 %v2480
    %2772 = vmatpush.msra.mxu0 %v2478
    %2773 = vmatpush.msra.mxu0 %v2476
    %2774 = vmatpush.msra.mxu0 %v2474
    %2775 = vmatpush.msra.mxu0 %v2472
    %2776 = vmatpush.msra.mxu0 %v2470
    %2777 = vmatpush.msra.mxu0 %v2468
    %2778 = vmatmul.f32.gmra.mxu0 %v2587
    %v2779 = vpop.f32.mrf.mxu0
    %v2780 = vadd.f32 0.0, %v2779
    %2781 = vdwg.mxu0
    %2782 = vmatpush.msra.mxu0 0.0
    %2783 = vmatpush.msra.mxu0 0.0
    %2784 = vmatpush.msra.mxu0 0.0
    %2785 = vmatpush.msra.mxu0 0.0
    %2786 = vmatpush.msra.mxu0 0.0
    %2787 = vmatpush.msra.mxu0 0.0
    %2788 = vmatpush.msra.mxu0 0.0
    %2789 = vmatpush.msra.mxu0 0.0
    %2790 = vmatpush.msra.mxu0 %v2483
    %2791 = vmatpush.msra.mxu0 %v2481
    %2792 = vmatpush.msra.mxu0 %v2479
    %2793 = vmatpush.msra.mxu0 %v2477
    %2794 = vmatpush.msra.mxu0 %v2475
    %2795 = vmatpush.msra.mxu0 %v2473
    %2796 = vmatpush.msra.mxu0 %v2471
    %2797 = vmatpush.msra.mxu0 %v2469
    %2798 = vmatmul.f32.gmra.mxu0 %v2587
    %v2799 = vpop.f32.mrf.mxu0
    %v2800 = vadd.f32 0.0, %v2799
    %2801 = vdwg.mxu0
    %v2802 = vadd.f32 %v2740, %v2780
    %v2803 = vadd.f32 %v2760, %v2800
    %2804 = vmatpush.msra.mxu0 0.0
    %2805 = vmatpush.msra.mxu0 0.0
    %2806 = vmatpush.msra.mxu0 0.0
    %2807 = vmatpush.msra.mxu0 0.0
    %2808 = vmatpush.msra.mxu0 0.0
    %2809 = vmatpush.msra.mxu0 0.0
    %2810 = vmatpush.msra.mxu0 0.0
    %2811 = vmatpush.msra.mxu0 0.0
    %2812 = vmatpush.msra.mxu0 %v2498
    %2813 = vmatpush.msra.mxu0 %v2496
    %2814 = vmatpush.msra.mxu0 %v2494
    %2815 = vmatpush.msra.mxu0 %v2492
    %2816 = vmatpush.msra.mxu0 %v2490
    %2817 = vmatpush.msra.mxu0 %v2488
    %2818 = vmatpush.msra.mxu0 %v2486
    %2819 = vmatpush.msra.mxu0 %v2484
    %2820 = vmatmul.f32.gmra.mxu0 %v2632
    %v2821 = vpop.f32.mrf.mxu0
    %v2822 = vadd.f32 0.0, %v2821
    %2823 = vdwg.mxu0
    %2824 = vmatpush.msra.mxu0 0.0
    %2825 = vmatpush.msra.mxu0 0.0
    %2826 = vmatpush.msra.mxu0 0.0
    %2827 = vmatpush.msra.mxu0 0.0
    %2828 = vmatpush.msra.mxu0 0.0
    %2829 = vmatpush.msra.mxu0 0.0
    %2830 = vmatpush.msra.mxu0 0.0
    %2831 = vmatpush.msra.mxu0 0.0
    %2832 = vmatpush.msra.mxu0 %v2499
    %2833 = vmatpush.msra.mxu0 %v2497
    %2834 = vmatpush.msra.mxu0 %v2495
    %2835 = vmatpush.msra.mxu0 %v2493
    %2836 = vmatpush.msra.mxu0 %v2491
    %2837 = vmatpush.msra.mxu0 %v2489
    %2838 = vmatpush.msra.mxu0 %v2487
    %2839 = vmatpush.msra.mxu0 %v2485
    %2840 = vmatmul.f32.gmra.mxu0 %v2632
    %v2841 = vpop.f32.mrf.mxu0
    %v2842 = vadd.f32 0.0, %v2841
    %2843 = vdwg.mxu0
    %v2844 = vadd.f32 %v2802, %v2822
    %v2845 = vadd.f32 %v2803, %v2842
    %v2846 = vld [vmem:[%s8] sm:$0x3]
    %v2848 = vperm.slane %v2846, 0
    %v2849 = vperm.slane %v2846, 1
    %v2852 = vadd.f32 %v2844, %v2848
    %v2853 = vadd.f32 %v2845, %v2849
    %vm2854 = vcmp.gt.f32.partialorder %v2852, 0.0
    %vm2855 = vcmp.gt.f32.partialorder %v2853, 0.0
    %v2856 = vmul.f32 %v2852, 0.01
    %v2857 = vmul.f32 %v2853, 0.01
    %v2858 = vsel %vm2854, %v2852, %v2856
    %v2859 = vsel %vm2855, %v2853, %v2857
    %v2860 = vld [vmem:[%s9] sm:$0xff]
    %v2861 = vld [vmem:[%s9 + $0x8] sm:$0xff]
    %v2862 = vld [vmem:[%s9 + $0x10] sm:$0xff]
    %v2863 = vld [vmem:[%s9 + $0x18] sm:$0xff]
    %v2864 = vld [vmem:[%s9 + $0x20] sm:$0xff]
    %v2865 = vld [vmem:[%s9 + $0x28] sm:$0xff]
    %v2866 = vld [vmem:[%s9 + $0x30] sm:$0xff]
    %v2867 = vld [vmem:[%s9 + $0x38] sm:$0xff]
    %v2868 = vld [vmem:[%s9 + $0x40] sm:$0xff]
    %v2869 = vld [vmem:[%s9 + $0x48] sm:$0xff]
    %v2870 = vld [vmem:[%s9 + $0x50] sm:$0xff]
    %v2871 = vld [vmem:[%s9 + $0x58] sm:$0xff]
    %v2872 = vld [vmem:[%s9 + $0x60] sm:$0xff]
    %v2873 = vld [vmem:[%s9 + $0x68] sm:$0xff]
    %v2874 = vld [vmem:[%s9 + $0x70] sm:$0xff]
    %v2875 = vld [vmem:[%s9 + $0x78] sm:$0xff]
    %v2876 = vld [vmem:[%s9 + $0x80] sm:$0xff]
    %v2877 = vld [vmem:[%s9 + $0x88] sm:$0xff]
    %v2878 = vld [vmem:[%s9 + $0x90] sm:$0xff]
    %v2879 = vld [vmem:[%s9 + $0x98] sm:$0xff]
    %v2880 = vld [vmem:[%s9 + $0xa0] sm:$0xff]
    %v2881 = vld [vmem:[%s9 + $0xa8] sm:$0xff]
    %v2882 = vld [vmem:[%s9 + $0xb0] sm:$0xff]
    %v2883 = vld [vmem:[%s9 + $0xb8] sm:$0xff]
    %v2884 = vld [vmem:[%s9 + $0xc0] sm:$0xff]
    %v2885 = vld [vmem:[%s9 + $0xc8] sm:$0xff]
    %v2886 = vld [vmem:[%s9 + $0xd0] sm:$0xff]
    %v2887 = vld [vmem:[%s9 + $0xd8] sm:$0xff]
    %v2888 = vld [vmem:[%s9 + $0xe0] sm:$0xff]
    %v2889 = vld [vmem:[%s9 + $0xe8] sm:$0xff]
    %v2890 = vld [vmem:[%s9 + $0xf0] sm:$0xff]
    %v2891 = vld [vmem:[%s9 + $0xf8] sm:$0xff]
    %v2892 = vld [vmem:[%s10] sm:$0x1]
    %v2894 = vperm.slane %v2892, 0
    %2896 = vmatpush.msra.mxu0 %v2875
    %2897 = vmatpush.msra.mxu0 %v2874
    %2898 = vmatpush.msra.mxu0 %v2873
    %2899 = vmatpush.msra.mxu0 %v2872
    %2900 = vmatpush.msra.mxu0 %v2871
    %2901 = vmatpush.msra.mxu0 %v2870
    %2902 = vmatpush.msra.mxu0 %v2869
    %2903 = vmatpush.msra.mxu0 %v2868
    %2904 = vmatpush.msra.mxu0 %v2867
    %2905 = vmatpush.msra.mxu0 %v2866
    %2906 = vmatpush.msra.mxu0 %v2865
    %2907 = vmatpush.msra.mxu0 %v2864
    %2908 = vmatpush.msra.mxu0 %v2863
    %2909 = vmatpush.msra.mxu0 %v2862
    %2910 = vmatpush.msra.mxu0 %v2861
    %2911 = vmatpush.msra.mxu0 %v2860
    %2912 = vmatmul.f32.gmra.mxu0 %v2858
    %v2913 = vpop.f32.mrf.mxu0
    %v2914 = vadd.f32 %v2894, %v2913
    %2915 = vdwg.mxu0
    %2916 = vmatpush.msra.mxu0 %v2891
    %2917 = vmatpush.msra.mxu0 %v2890
    %2918 = vmatpush.msra.mxu0 %v2889
    %2919 = vmatpush.msra.mxu0 %v2888
    %2920 = vmatpush.msra.mxu0 %v2887
    %2921 = vmatpush.msra.mxu0 %v2886
    %2922 = vmatpush.msra.mxu0 %v2885
    %2923 = vmatpush.msra.mxu0 %v2884
    %2924 = vmatpush.msra.mxu0 %v2883
    %2925 = vmatpush.msra.mxu0 %v2882
    %2926 = vmatpush.msra.mxu0 %v2881
    %2927 = vmatpush.msra.mxu0 %v2880
    %2928 = vmatpush.msra.mxu0 %v2879
    %2929 = vmatpush.msra.mxu0 %v2878
    %2930 = vmatpush.msra.mxu0 %v2877
    %2931 = vmatpush.msra.mxu0 %v2876
    %2932 = vmatmul.f32.gmra.mxu0 %v2859
    %v2933 = vpop.f32.mrf.mxu0
    %v2934 = vadd.f32 %v2914, %v2933
    %2935 = vdwg.mxu0
    %vm2936 = vcmask 41984
    %v2937 = vsel %vm2936, %v2934, 0.0
    %2938 = vadd.xlane.f32.xlu0 %v2937
    %v2939 = vpop.xlane.xlu0 %2938
    %v2940 = vrot.slane %v2939, 4
    %v2941 = vadd.f32 %v2939, %v2940
    %v2942 = vrot.slane %v2941, 2
    %v2943 = vadd.f32 %v2941, %v2942
    %v2944 = vrot.slane %v2943, 1
    %v2945 = vadd.f32 %v2943, %v2944
    %s2946 = vtos %v2945
    %v2947 = vrcp.pop 12.0
    %v2948 = vmul.f32 12.0, %v2947
    %v2949 = vsub.f32 1.0, %v2948
    %v2950 = vmul.f32 %v2947, %v2949
    %v2951 = vadd.f32 %v2947, %v2950
    %vm2952 = vweird.f32 %v2947
    %v2953 = vsel %vm2952, %v2947, %v2951
    %s2954 = vtos %v2953
    %s2955 = smul.f32 %s2946, %s2954
    %v2956 = vstv %s2955
    %v2957 = vsub.f32 %v2934, %v2956
    %2959 = vset.pattern.permute.xlu0 6
    %2960 = vperm.xlu0 %2959, %v2934
    %v2961 = vpop.permute.xlu0 %2960
    %v2963 = vadd.f32 %v2961, %v2957
    %2964 = vst.msk [vmem:[#allocation2] sm:$0x3] %vm2936, %v2963
    // Predicated region
    $region50: #{duel_cnn_forward.1} parent=1 // pred_check
      _
    $region51: #{duel_cnn_forward.1} parent=1 // pred_check_branch
      %2966 = sbr.rel (0) target = $region53
    $region52: #{duel_cnn_forward.1} parent=1 // pred_region
      %2968 = vsyncadd [#allocation3], 0
      %s2970 = sshll.u32 [#allocation2], 4
      %s2971 = int_to_ptr.vmem [resolvable:$true] %s2970
      %s2972 = sshll.u32 %s12, 4
      %s2973 = int_to_ptr.hbm [resolvable:$true] %s2972
      %2975 = dma.vmem_to_hbm [thread:$0]  %s2971, 32, %s2973, [#allocation3]
    $region53: #{duel_cnn_forward.1} parent=1 // pred_fallthru
      _
    // Predicated region
    $region54: #{duel_cnn_forward.1} parent=1 // pred_check
      _
    $region55: #{duel_cnn_forward.1} parent=1 // pred_check_branch
      %2977 = sbr.rel (0) target = $region57
    $region56: #{duel_cnn_forward.1} parent=1 // pred_region
      %2979 = vsyncadd [#allocation5], 0
      %s2981 = sshll.u32 [#allocation4], 4
      %s2982 = int_to_ptr.vmem [resolvable:$true] %s2981
      %s2983 = sshll.u32 %s13, 4
      %s2984 = int_to_ptr.hbm [resolvable:$true] %s2983
      %2986 = dma.vmem_to_hbm [thread:$0]  %s2982, 64, %s2984, [#allocation5]
    $region57: #{duel_cnn_forward.1} parent=1 // pred_fallthru
      _
    // Predicated region
    $region58: #{duel_cnn_forward.1} parent=1 // pred_check
      _
    $region59: #{duel_cnn_forward.1} parent=1 // pred_check_branch
      %2988 = sbr.rel (0) target = $region61
    $region60: #{duel_cnn_forward.1} parent=1 // pred_region
      %2990 = dma.done [#allocation3], 32
    $region61: #{duel_cnn_forward.1} parent=1 // pred_fallthru
      _
    // Predicated region
    $region62: #{duel_cnn_forward.1} parent=1 // pred_check
      _
    $region63: #{duel_cnn_forward.1} parent=1 // pred_check_branch
      %2992 = sbr.rel (0) target = $region65
    $region64: #{duel_cnn_forward.1} parent=1 // pred_region
      %2994 = dma.done [#allocation5], 64
    $region65: #{duel_cnn_forward.1} parent=1 // pred_fallthru
      _
    %2995 = vsyncpa [#allocation3], 1
    %2996 = vsyncpa [#allocation5], 1

</llo_original>
